<compile_context>
chip_gen: v7x
topology: tpu7x:2x2x1
jax: 0.10.0
libtpu: 0.0.40
codegen_flags: <defaults>
</compile_context>

<pallas_src>
import functools

import jax
import jax.numpy as jnp
from jax.experimental import pallas as pl
from jax.experimental.pallas import tpu as pltpu

NUM_LAYERS = 5
NEG_SLOPE = 0.01   # nn.LeakyReLU default
LN_EPS = 1e-5      # nn.LayerNorm default
LANE = 128


def fcn_block_kernel(x_ref, convw_ref, projw_ref, params_ref, o_ref, *,
                     seq_len, num_layers):
    rows, C = x_ref.shape
    x = x_ref[...].astype(jnp.float32)                      # (rows, C)
    params = params_ref[...].astype(jnp.float32)            # (num_layers+3, 128)

    # Row masks for zero padding at each sequence boundary (hoisted out of the
    # layer loop).  Rows with t == 0 have no x[t-1]; rows with t == T-1 no x[t+1].
    t_idx = jax.lax.broadcasted_iota(jnp.int32, (rows, 1), 0) % seq_len
    first_row = t_idx == 0
    last_row = t_idx == seq_len - 1

    # num_layers x (Conv1d k=3 pad=1 -> LeakyReLU -> Dropout[eval=identity]).
    # Each layer = three small (rows,C)@(C,C) MXU dots summed in f32 — no lane
    # concatenation on the serial critical path.
    for l in range(num_layers):
        b = params[l:l + 1, :C]                              # (1, C) conv bias
        x_prev = jnp.where(first_row, 0.0, jnp.roll(x, 1, axis=0))
        x_next = jnp.where(last_row, 0.0, jnp.roll(x, -1, axis=0))
        y = (jnp.dot(x_prev, convw_ref[3 * l + 0], preferred_element_type=jnp.float32)
             + jnp.dot(x, convw_ref[3 * l + 1], preferred_element_type=jnp.float32)
             + jnp.dot(x_next, convw_ref[3 * l + 2], preferred_element_type=jnp.float32)
             + b)
        x = jnp.where(y > 0, y, NEG_SLOPE * y)               # LeakyReLU (f32 VPU)
        # TODO(synk): nn.Dropout(p=0.2) is identity in eval/inference mode; no-op here.

    # LayerNorm over the channel (last) dim of the (B,T,C) layout — matches
    # nn.LayerNorm(input_dim) applied after x.transpose(1, 2) in the module.
    ln_g = params[num_layers:num_layers + 1, :C]
    ln_b = params[num_layers + 1:num_layers + 2, :C]
    mean = jnp.mean(x, axis=-1, keepdims=True)
    var = jnp.mean((x - mean) ** 2, axis=-1, keepdims=True)
    xn = (x - mean) * jax.lax.rsqrt(var + LN_EPS) * ln_g + ln_b

    # proj: Conv1d kernel_size=1 == (rows, C) @ (C, Cout_p) + bias.
    # Cout_p is a multiple of 128 -> lane-dense, unmasked store.
    proj_b = params[num_layers + 2:num_layers + 3, :o_ref.shape[1]]
    out = jnp.dot(xn, projw_ref[...], preferred_element_type=jnp.float32) + proj_b
    o_ref[...] = out.astype(o_ref.dtype)


def _pack_params(conv_b, ln_g, ln_b, proj_b_padded, width):
    """Pack all small per-channel vectors into one (L+3, width) f32 tile.
    Rows: conv biases 0..L-1, LN gamma, LN beta, proj bias."""
    rows = [conv_b.astype(jnp.float32)]
    rows += [v.reshape(1, -1).astype(jnp.float32) for v in (ln_g, ln_b, proj_b_padded)]
    rows = [jnp.pad(r, ((0, 0), (0, width - r.shape[1]))) for r in rows]
    return jnp.concatenate(rows, axis=0)


def fcn_block(x, conv_w, conv_b, ln_g, ln_b, proj_w, proj_b, *,
              block_b=None, out_dtype=jnp.float32):
    """x: (B,T,C); conv_w: (L,3,C,C) tap order [t-1,t,t+1]; conv_b: (L,C);
    ln_g/ln_b: (1,C); proj_w: (C,Cout); proj_b: (1,Cout)."""
    B, T, C = x.shape
    L = conv_w.shape[0]
    assert conv_w.shape == (L, 3, C, C) and conv_b.shape == (L, C)
    Cin, Cout = proj_w.shape
    assert Cin == C
    Cout_p = pl.cdiv(Cout, LANE) * LANE

    # Lane-dense output: zero-pad the projection to Cout_p output channels.
    proj_w_p = jnp.pad(proj_w.astype(jnp.float32), ((0, 0), (0, Cout_p - Cout)))
    proj_b_p = jnp.pad(proj_b.reshape(1, -1).astype(jnp.float32),
                       ((0, 0), (0, Cout_p - Cout)))

    width = max(C, Cout_p)
    params = _pack_params(conv_b, ln_g, ln_b, proj_b_p, width)        # (L+3, width)
    conv_w_flat = conv_w.astype(jnp.float32).reshape(L * 3, C, C)

    # Default: whole batch in ONE grid step (single-TC v5e/v6e; kernel is
    # overhead-bound).  On v7x pass block_b=B//2 once bb*T rows >= ~256 so the
    # 2-way "parallel" split actually amortizes the per-step cost.
    bb = B if block_b is None else block_b
    assert B % bb == 0 and (bb * T) % 8 == 0
    grid = (B // bb,)
    rows_blk = bb * T

    x2 = x.reshape(B * T, C)                                          # flatten in wrapper

    cost = pl.CostEstimate(
        flops=B * T * (L * 3 * 2 * C * C + 2 * C * Cout_p),
        transcendentals=B * T,                                        # rsqrt per row
        bytes_accessed=4 * (x2.size + B * T * Cout_p
                            + conv_w_flat.size + proj_w_p.size + params.size),
    )

    kernel = functools.partial(fcn_block_kernel, seq_len=T, num_layers=L)

    out_p = pl.pallas_call(
        kernel,
        out_shape=jax.ShapeDtypeStruct((B * T, Cout_p), out_dtype),
        grid_spec=pltpu.PrefetchScalarGridSpec(
            num_scalar_prefetch=0,
            grid=grid,
            in_specs=[
                pl.BlockSpec((rows_blk, C), lambda i: (i, 0)),
                pl.BlockSpec(conv_w_flat.shape, lambda i: (0, 0, 0)),
                pl.BlockSpec(proj_w_p.shape, lambda i: (0, 0)),
                pl.BlockSpec(params.shape, lambda i: (0, 0)),
            ],
            out_specs=pl.BlockSpec((rows_blk, Cout_p), lambda i: (i, 0)),
        ),
        compiler_params=pltpu.CompilerParams(dimension_semantics=("parallel",)),
        cost_estimate=cost,
    )(x2, conv_w_flat, proj_w_p, params)

    return out_p.reshape(B, T, Cout_p)[..., :Cout]


def ref_forward(x, conv_w, conv_b, ln_g, ln_b, proj_w, proj_b):
    """Pure-JAX f32 reference of the PyTorch forward (eval mode)."""
    h = x.astype(jnp.float32)
    L = conv_w.shape[0]
    for l in range(L):
        hp = jnp.pad(h, ((0, 0), (1, 1), (0, 0)))
        y = (jnp.einsum("btc,cd->btd", hp[:, :-2], conv_w[l, 0])
             + jnp.einsum("btc,cd->btd", hp[:, 1:-1], conv_w[l, 1])
             + jnp.einsum("btc,cd->btd", hp[:, 2:], conv_w[l, 2])
             + conv_b[l])
        h = jnp.where(y > 0, y, NEG_SLOPE * y)
    mean = jnp.mean(h, axis=-1, keepdims=True)
    var = jnp.mean((h - mean) ** 2, axis=-1, keepdims=True)
    hn = (h - mean) * jax.lax.rsqrt(var + LN_EPS) * ln_g + ln_b
    return jnp.einsum("btc,cd->btd", hn, proj_w) + proj_b


if __name__ == "__main__":
    key = jax.random.PRNGKey(0)
    B, T, C, Cout = 4, 16, 8, 4                      # batch, seq, input_dim, output_dim
    ks = jax.random.split(key, 7)

    # Deterministic synthetic parameters in the folded layout documented above.
    x = jax.random.normal(ks[0], (B, T, C), jnp.float32)
    conv_w = 0.2 * jax.random.normal(ks[1], (NUM_LAYERS, 3, C, C), jnp.float32)
    conv_b = 0.1 * jax.random.normal(ks[2], (NUM_LAYERS, C), jnp.float32)
    ln_g = jnp.ones((1, C), jnp.float32) + 0.1 * jax.random.normal(ks[3], (1, C), jnp.float32)
    ln_b = 0.1 * jax.random.normal(ks[4], (1, C), jnp.float32)
    proj_w = 0.3 * jax.random.normal(ks[5], (C, Cout), jnp.float32)
    proj_b = 0.1 * jax.random.normal(ks[6], (1, Cout), jnp.float32)

    out = jax.block_until_ready(fcn_block(x, conv_w, conv_b, ln_g, ln_b, proj_w, proj_b))
    assert out.shape == (B, T, Cout), out.shape

    ref = ref_forward(x, conv_w, conv_b, ln_g, ln_b, proj_w, proj_b)
    err = float(jnp.max(jnp.abs(out - ref)))
    # f32 math end-to-end; tolerance covers the MXU's reduced-precision f32 passes
    # (default dot precision) across the 5 stacked conv layers.
    assert jnp.allclose(out, ref, atol=5e-2, rtol=5e-2), err
    print("KERNEL_OK")
</pallas_src>

<mosaic_0001>
module attributes {stable_mosaic.version = 11 : i64} {
  func.func @fcn_block_kernel(%arg0: i32, %arg1: memref<64x8xf32, #tpu.memory_space<vmem>>, %arg2: memref<15x8x8xf32, #tpu.memory_space<vmem>>, %arg3: memref<8x128xf32, #tpu.memory_space<vmem>>, %arg4: memref<8x128xf32, #tpu.memory_space<vmem>>, %arg5: memref<64x128xf32, #tpu.memory_space<vmem>>) attributes {dimension_semantics = [#tpu.dimension_semantics<parallel>], iteration_bounds = array<i64: 1>, scalar_prefetch = 0 : i64, scratch_operands = 0 : i64, tpu.core_type = #tpu.core_type<tc>, window_params = [{transform_indices = @transform_0, window_bounds = array<i64: 64, 8>}, {pipeline_mode = #tpu.pipeline_mode<synchronous>, transform_indices = @transform_1, window_bounds = array<i64: 15, 8, 8>}, {pipeline_mode = #tpu.pipeline_mode<synchronous>, transform_indices = @transform_2, window_bounds = array<i64: 8, 128>}, {pipeline_mode = #tpu.pipeline_mode<synchronous>, transform_indices = @transform_3, window_bounds = array<i64: 8, 128>}, {transform_indices = @transform_4, window_bounds = array<i64: 64, 128>}]} {
    %c0 = arith.constant 0 : index
    %c0_0 = arith.constant 0 : index
    %0 = vector.load %arg1[%c0, %c0_0] : memref<64x8xf32, #tpu.memory_space<vmem>>, vector<64x8xf32>
    %c0_1 = arith.constant 0 : index
    %c0_2 = arith.constant 0 : index
    %1 = vector.load %arg4[%c0_1, %c0_2] : memref<8x128xf32, #tpu.memory_space<vmem>>, vector<8x128xf32>
    %2 = tpu.iota {dimensions = array<i32: 0>} : vector<64x1xi32>
    %c16_i32 = arith.constant 16 : i32
    %c0_i32 = arith.constant 0 : i32
    %3 = arith.cmpi eq, %c16_i32, %c0_i32 : i32
    %c1_i32 = arith.constant 1 : i32
    %4 = arith.select %3, %c1_i32, %c16_i32 : i32
    %5 = vector.broadcast %4 : i32 to vector<64x1xi32>
    %6 = arith.remsi %2, %5 : vector<64x1xi32>
    %c0_i32_3 = arith.constant 0 : i32
    %7 = vector.broadcast %c0_i32_3 : i32 to vector<64x1xi32>
    %8 = arith.cmpi ne, %6, %7 : vector<64x1xi32>
    %c0_i32_4 = arith.constant 0 : i32
    %9 = vector.broadcast %c0_i32_4 : i32 to vector<64x1xi32>
    %10 = arith.cmpi slt, %6, %9 : vector<64x1xi32>
    %c0_i32_5 = arith.constant 0 : i32
    %11 = arith.cmpi slt, %4, %c0_i32_5 : i32
    %12 = vector.broadcast %11 : i1 to vector<64x1xi1>
    %13 = vector.broadcast %12 : vector<64x1xi1> to vector<64x1xi1>
    %14 = arith.xori %10, %13 : vector<64x1xi1>
    %15 = arith.andi %14, %8 : vector<64x1xi1>
    %16 = vector.broadcast %4 : i32 to vector<64x1xi32>
    %17 = arith.addi %6, %16 : vector<64x1xi32>
    %18 = arith.select %15, %17, %6 : vector<64x1xi1>, vector<64x1xi32>
    %c0_i32_6 = arith.constant 0 : i32
    %19 = vector.broadcast %c0_i32_6 : i32 to vector<64x1xi32>
    %20 = arith.cmpi eq, %18, %19 : vector<64x1xi32>
    %c15_i32 = arith.constant 15 : i32
    %21 = vector.broadcast %c15_i32 : i32 to vector<64x1xi32>
    %22 = arith.cmpi eq, %18, %21 : vector<64x1xi32>
    %23 = vector.extract_strided_slice %1 {offsets = [0, 0], sizes = [1, 8], strides = [1, 1]} : vector<8x128xf32> to vector<1x8xf32>
    %24 = vector.extract_strided_slice %0 {offsets = [63, 0], sizes = [1, 8], strides = [1, 1]} : vector<64x8xf32> to vector<1x8xf32>
    %25 = vector.extract_strided_slice %0 {offsets = [0, 0], sizes = [63, 8], strides = [1, 1]} : vector<64x8xf32> to vector<63x8xf32>
    %26 = tpu.concatenate %24, %25 in 0 : vector<1x8xf32>, vector<63x8xf32> -> vector<64x8xf32>
    %cst = arith.constant 0.000000e+00 : f32
    %27 = vector.shape_cast %20 : vector<64x1xi1> to vector<64x1xi1>
    %28 = vector.broadcast %27 : vector<64x1xi1> to vector<64x8xi1>
    %29 = vector.broadcast %cst : f32 to vector<64x8xf32>
    %30 = arith.select %28, %29, %26 : vector<64x8xi1>, vector<64x8xf32>
    %31 = vector.extract_strided_slice %0 {offsets = [1, 0], sizes = [63, 8], strides = [1, 1]} : vector<64x8xf32> to vector<63x8xf32>
    %32 = vector.extract_strided_slice %0 {offsets = [0, 0], sizes = [1, 8], strides = [1, 1]} : vector<64x8xf32> to vector<1x8xf32>
    %33 = tpu.concatenate %31, %32 in 0 : vector<63x8xf32>, vector<1x8xf32> -> vector<64x8xf32>
    %cst_7 = arith.constant 0.000000e+00 : f32
    %34 = vector.shape_cast %22 : vector<64x1xi1> to vector<64x1xi1>
    %35 = vector.broadcast %34 : vector<64x1xi1> to vector<64x8xi1>
    %36 = vector.broadcast %cst_7 : f32 to vector<64x8xf32>
    %37 = arith.select %35, %36, %33 : vector<64x8xi1>, vector<64x8xf32>
    %c0_8 = arith.constant 0 : index
    %c0_9 = arith.constant 0 : index
    %c0_10 = arith.constant 0 : index
    %38 = vector.load %arg2[%c0_8, %c0_9, %c0_10] : memref<15x8x8xf32, #tpu.memory_space<vmem>>, vector<1x8x8xf32>
    %39 = vector.shape_cast %38 : vector<1x8x8xf32> to vector<8x8xf32>
    %cst_11 = arith.constant dense<0.000000e+00> : vector<64x8xf32>
    %40 = tpu.matmul %30, %39, %cst_11 {dimension_numbers = #tpu.dot_dimension_numbers<[1], [0], [0], [1], [0, 0, 1, 1], [], []>} : vector<64x8xf32>, vector<8x8xf32>, vector<64x8xf32> -> vector<64x8xf32>
    %c1 = arith.constant 1 : index
    %c0_12 = arith.constant 0 : index
    %c0_13 = arith.constant 0 : index
    %41 = vector.load %arg2[%c1, %c0_12, %c0_13] : memref<15x8x8xf32, #tpu.memory_space<vmem>>, vector<1x8x8xf32>
    %42 = vector.shape_cast %41 : vector<1x8x8xf32> to vector<8x8xf32>
    %cst_14 = arith.constant dense<0.000000e+00> : vector<64x8xf32>
    %43 = tpu.matmul %0, %42, %cst_14 {dimension_numbers = #tpu.dot_dimension_numbers<[1], [0], [0], [1], [0, 0, 1, 1], [], []>} : vector<64x8xf32>, vector<8x8xf32>, vector<64x8xf32> -> vector<64x8xf32>
    %44 = arith.addf %40, %43 : vector<64x8xf32>
    %c2 = arith.constant 2 : index
    %c0_15 = arith.constant 0 : index
    %c0_16 = arith.constant 0 : index
    %45 = vector.load %arg2[%c2, %c0_15, %c0_16] : memref<15x8x8xf32, #tpu.memory_space<vmem>>, vector<1x8x8xf32>
    %46 = vector.shape_cast %45 : vector<1x8x8xf32> to vector<8x8xf32>
    %cst_17 = arith.constant dense<0.000000e+00> : vector<64x8xf32>
    %47 = tpu.matmul %37, %46, %cst_17 {dimension_numbers = #tpu.dot_dimension_numbers<[1], [0], [0], [1], [0, 0, 1, 1], [], []>} : vector<64x8xf32>, vector<8x8xf32>, vector<64x8xf32> -> vector<64x8xf32>
    %48 = arith.addf %44, %47 : vector<64x8xf32>
    %49 = vector.broadcast %23 : vector<1x8xf32> to vector<64x8xf32>
    %50 = arith.addf %48, %49 : vector<64x8xf32>
    %cst_18 = arith.constant 0.000000e+00 : f32
    %51 = vector.broadcast %cst_18 : f32 to vector<64x8xf32>
    %52 = arith.cmpf ogt, %50, %51 : vector<64x8xf32>
    %cst_19 = arith.constant 0.00999999977 : f32
    %53 = vector.broadcast %cst_19 : f32 to vector<64x8xf32>
    %54 = arith.mulf %53, %50 : vector<64x8xf32>
    %55 = arith.select %52, %50, %54 : vector<64x8xi1>, vector<64x8xf32>
    %56 = vector.extract_strided_slice %1 {offsets = [1, 0], sizes = [1, 8], strides = [1, 1]} : vector<8x128xf32> to vector<1x8xf32>
    %57 = vector.extract_strided_slice %55 {offsets = [63, 0], sizes = [1, 8], strides = [1, 1]} : vector<64x8xf32> to vector<1x8xf32>
    %58 = vector.extract_strided_slice %55 {offsets = [0, 0], sizes = [63, 8], strides = [1, 1]} : vector<64x8xf32> to vector<63x8xf32>
    %59 = tpu.concatenate %57, %58 in 0 : vector<1x8xf32>, vector<63x8xf32> -> vector<64x8xf32>
    %cst_20 = arith.constant 0.000000e+00 : f32
    %60 = vector.shape_cast %20 : vector<64x1xi1> to vector<64x1xi1>
    %61 = vector.broadcast %60 : vector<64x1xi1> to vector<64x8xi1>
    %62 = vector.broadcast %cst_20 : f32 to vector<64x8xf32>
    %63 = arith.select %61, %62, %59 : vector<64x8xi1>, vector<64x8xf32>
    %64 = vector.extract_strided_slice %55 {offsets = [1, 0], sizes = [63, 8], strides = [1, 1]} : vector<64x8xf32> to vector<63x8xf32>
    %65 = vector.extract_strided_slice %55 {offsets = [0, 0], sizes = [1, 8], strides = [1, 1]} : vector<64x8xf32> to vector<1x8xf32>
    %66 = tpu.concatenate %64, %65 in 0 : vector<63x8xf32>, vector<1x8xf32> -> vector<64x8xf32>
    %cst_21 = arith.constant 0.000000e+00 : f32
    %67 = vector.shape_cast %22 : vector<64x1xi1> to vector<64x1xi1>
    %68 = vector.broadcast %67 : vector<64x1xi1> to vector<64x8xi1>
    %69 = vector.broadcast %cst_21 : f32 to vector<64x8xf32>
    %70 = arith.select %68, %69, %66 : vector<64x8xi1>, vector<64x8xf32>
    %c3 = arith.constant 3 : index
    %c0_22 = arith.constant 0 : index
    %c0_23 = arith.constant 0 : index
    %71 = vector.load %arg2[%c3, %c0_22, %c0_23] : memref<15x8x8xf32, #tpu.memory_space<vmem>>, vector<1x8x8xf32>
    %72 = vector.shape_cast %71 : vector<1x8x8xf32> to vector<8x8xf32>
    %cst_24 = arith.constant dense<0.000000e+00> : vector<64x8xf32>
    %73 = tpu.matmul %63, %72, %cst_24 {dimension_numbers = #tpu.dot_dimension_numbers<[1], [0], [0], [1], [0, 0, 1, 1], [], []>} : vector<64x8xf32>, vector<8x8xf32>, vector<64x8xf32> -> vector<64x8xf32>
    %c4 = arith.constant 4 : index
    %c0_25 = arith.constant 0 : index
    %c0_26 = arith.constant 0 : index
    %74 = vector.load %arg2[%c4, %c0_25, %c0_26] : memref<15x8x8xf32, #tpu.memory_space<vmem>>, vector<1x8x8xf32>
    %75 = vector.shape_cast %74 : vector<1x8x8xf32> to vector<8x8xf32>
    %cst_27 = arith.constant dense<0.000000e+00> : vector<64x8xf32>
    %76 = tpu.matmul %55, %75, %cst_27 {dimension_numbers = #tpu.dot_dimension_numbers<[1], [0], [0], [1], [0, 0, 1, 1], [], []>} : vector<64x8xf32>, vector<8x8xf32>, vector<64x8xf32> -> vector<64x8xf32>
    %77 = arith.addf %73, %76 : vector<64x8xf32>
    %c5 = arith.constant 5 : index
    %c0_28 = arith.constant 0 : index
    %c0_29 = arith.constant 0 : index
    %78 = vector.load %arg2[%c5, %c0_28, %c0_29] : memref<15x8x8xf32, #tpu.memory_space<vmem>>, vector<1x8x8xf32>
    %79 = vector.shape_cast %78 : vector<1x8x8xf32> to vector<8x8xf32>
    %cst_30 = arith.constant dense<0.000000e+00> : vector<64x8xf32>
    %80 = tpu.matmul %70, %79, %cst_30 {dimension_numbers = #tpu.dot_dimension_numbers<[1], [0], [0], [1], [0, 0, 1, 1], [], []>} : vector<64x8xf32>, vector<8x8xf32>, vector<64x8xf32> -> vector<64x8xf32>
    %81 = arith.addf %77, %80 : vector<64x8xf32>
    %82 = vector.broadcast %56 : vector<1x8xf32> to vector<64x8xf32>
    %83 = arith.addf %81, %82 : vector<64x8xf32>
    %cst_31 = arith.constant 0.000000e+00 : f32
    %84 = vector.broadcast %cst_31 : f32 to vector<64x8xf32>
    %85 = arith.cmpf ogt, %83, %84 : vector<64x8xf32>
    %cst_32 = arith.constant 0.00999999977 : f32
    %86 = vector.broadcast %cst_32 : f32 to vector<64x8xf32>
    %87 = arith.mulf %86, %83 : vector<64x8xf32>
    %88 = arith.select %85, %83, %87 : vector<64x8xi1>, vector<64x8xf32>
    %89 = vector.extract_strided_slice %1 {offsets = [2, 0], sizes = [1, 8], strides = [1, 1]} : vector<8x128xf32> to vector<1x8xf32>
    %90 = vector.extract_strided_slice %88 {offsets = [63, 0], sizes = [1, 8], strides = [1, 1]} : vector<64x8xf32> to vector<1x8xf32>
    %91 = vector.extract_strided_slice %88 {offsets = [0, 0], sizes = [63, 8], strides = [1, 1]} : vector<64x8xf32> to vector<63x8xf32>
    %92 = tpu.concatenate %90, %91 in 0 : vector<1x8xf32>, vector<63x8xf32> -> vector<64x8xf32>
    %cst_33 = arith.constant 0.000000e+00 : f32
    %93 = vector.shape_cast %20 : vector<64x1xi1> to vector<64x1xi1>
    %94 = vector.broadcast %93 : vector<64x1xi1> to vector<64x8xi1>
    %95 = vector.broadcast %cst_33 : f32 to vector<64x8xf32>
    %96 = arith.select %94, %95, %92 : vector<64x8xi1>, vector<64x8xf32>
    %97 = vector.extract_strided_slice %88 {offsets = [1, 0], sizes = [63, 8], strides = [1, 1]} : vector<64x8xf32> to vector<63x8xf32>
    %98 = vector.extract_strided_slice %88 {offsets = [0, 0], sizes = [1, 8], strides = [1, 1]} : vector<64x8xf32> to vector<1x8xf32>
    %99 = tpu.concatenate %97, %98 in 0 : vector<63x8xf32>, vector<1x8xf32> -> vector<64x8xf32>
    %cst_34 = arith.constant 0.000000e+00 : f32
    %100 = vector.shape_cast %22 : vector<64x1xi1> to vector<64x1xi1>
    %101 = vector.broadcast %100 : vector<64x1xi1> to vector<64x8xi1>
    %102 = vector.broadcast %cst_34 : f32 to vector<64x8xf32>
    %103 = arith.select %101, %102, %99 : vector<64x8xi1>, vector<64x8xf32>
    %c6 = arith.constant 6 : index
    %c0_35 = arith.constant 0 : index
    %c0_36 = arith.constant 0 : index
    %104 = vector.load %arg2[%c6, %c0_35, %c0_36] : memref<15x8x8xf32, #tpu.memory_space<vmem>>, vector<1x8x8xf32>
    %105 = vector.shape_cast %104 : vector<1x8x8xf32> to vector<8x8xf32>
    %cst_37 = arith.constant dense<0.000000e+00> : vector<64x8xf32>
    %106 = tpu.matmul %96, %105, %cst_37 {dimension_numbers = #tpu.dot_dimension_numbers<[1], [0], [0], [1], [0, 0, 1, 1], [], []>} : vector<64x8xf32>, vector<8x8xf32>, vector<64x8xf32> -> vector<64x8xf32>
    %c7 = arith.constant 7 : index
    %c0_38 = arith.constant 0 : index
    %c0_39 = arith.constant 0 : index
    %107 = vector.load %arg2[%c7, %c0_38, %c0_39] : memref<15x8x8xf32, #tpu.memory_space<vmem>>, vector<1x8x8xf32>
    %108 = vector.shape_cast %107 : vector<1x8x8xf32> to vector<8x8xf32>
    %cst_40 = arith.constant dense<0.000000e+00> : vector<64x8xf32>
    %109 = tpu.matmul %88, %108, %cst_40 {dimension_numbers = #tpu.dot_dimension_numbers<[1], [0], [0], [1], [0, 0, 1, 1], [], []>} : vector<64x8xf32>, vector<8x8xf32>, vector<64x8xf32> -> vector<64x8xf32>
    %110 = arith.addf %106, %109 : vector<64x8xf32>
    %c8 = arith.constant 8 : index
    %c0_41 = arith.constant 0 : index
    %c0_42 = arith.constant 0 : index
    %111 = vector.load %arg2[%c8, %c0_41, %c0_42] : memref<15x8x8xf32, #tpu.memory_space<vmem>>, vector<1x8x8xf32>
    %112 = vector.shape_cast %111 : vector<1x8x8xf32> to vector<8x8xf32>
    %cst_43 = arith.constant dense<0.000000e+00> : vector<64x8xf32>
    %113 = tpu.matmul %103, %112, %cst_43 {dimension_numbers = #tpu.dot_dimension_numbers<[1], [0], [0], [1], [0, 0, 1, 1], [], []>} : vector<64x8xf32>, vector<8x8xf32>, vector<64x8xf32> -> vector<64x8xf32>
    %114 = arith.addf %110, %113 : vector<64x8xf32>
    %115 = vector.broadcast %89 : vector<1x8xf32> to vector<64x8xf32>
    %116 = arith.addf %114, %115 : vector<64x8xf32>
    %cst_44 = arith.constant 0.000000e+00 : f32
    %117 = vector.broadcast %cst_44 : f32 to vector<64x8xf32>
    %118 = arith.cmpf ogt, %116, %117 : vector<64x8xf32>
    %cst_45 = arith.constant 0.00999999977 : f32
    %119 = vector.broadcast %cst_45 : f32 to vector<64x8xf32>
    %120 = arith.mulf %119, %116 : vector<64x8xf32>
    %121 = arith.select %118, %116, %120 : vector<64x8xi1>, vector<64x8xf32>
    %122 = vector.extract_strided_slice %1 {offsets = [3, 0], sizes = [1, 8], strides = [1, 1]} : vector<8x128xf32> to vector<1x8xf32>
    %123 = vector.extract_strided_slice %121 {offsets = [63, 0], sizes = [1, 8], strides = [1, 1]} : vector<64x8xf32> to vector<1x8xf32>
    %124 = vector.extract_strided_slice %121 {offsets = [0, 0], sizes = [63, 8], strides = [1, 1]} : vector<64x8xf32> to vector<63x8xf32>
    %125 = tpu.concatenate %123, %124 in 0 : vector<1x8xf32>, vector<63x8xf32> -> vector<64x8xf32>
    %cst_46 = arith.constant 0.000000e+00 : f32
    %126 = vector.shape_cast %20 : vector<64x1xi1> to vector<64x1xi1>
    %127 = vector.broadcast %126 : vector<64x1xi1> to vector<64x8xi1>
    %128 = vector.broadcast %cst_46 : f32 to vector<64x8xf32>
    %129 = arith.select %127, %128, %125 : vector<64x8xi1>, vector<64x8xf32>
    %130 = vector.extract_strided_slice %121 {offsets = [1, 0], sizes = [63, 8], strides = [1, 1]} : vector<64x8xf32> to vector<63x8xf32>
    %131 = vector.extract_strided_slice %121 {offsets = [0, 0], sizes = [1, 8], strides = [1, 1]} : vector<64x8xf32> to vector<1x8xf32>
    %132 = tpu.concatenate %130, %131 in 0 : vector<63x8xf32>, vector<1x8xf32> -> vector<64x8xf32>
    %cst_47 = arith.constant 0.000000e+00 : f32
    %133 = vector.shape_cast %22 : vector<64x1xi1> to vector<64x1xi1>
    %134 = vector.broadcast %133 : vector<64x1xi1> to vector<64x8xi1>
    %135 = vector.broadcast %cst_47 : f32 to vector<64x8xf32>
    %136 = arith.select %134, %135, %132 : vector<64x8xi1>, vector<64x8xf32>
    %c9 = arith.constant 9 : index
    %c0_48 = arith.constant 0 : index
    %c0_49 = arith.constant 0 : index
    %137 = vector.load %arg2[%c9, %c0_48, %c0_49] : memref<15x8x8xf32, #tpu.memory_space<vmem>>, vector<1x8x8xf32>
    %138 = vector.shape_cast %137 : vector<1x8x8xf32> to vector<8x8xf32>
    %cst_50 = arith.constant dense<0.000000e+00> : vector<64x8xf32>
    %139 = tpu.matmul %129, %138, %cst_50 {dimension_numbers = #tpu.dot_dimension_numbers<[1], [0], [0], [1], [0, 0, 1, 1], [], []>} : vector<64x8xf32>, vector<8x8xf32>, vector<64x8xf32> -> vector<64x8xf32>
    %c10 = arith.constant 10 : index
    %c0_51 = arith.constant 0 : index
    %c0_52 = arith.constant 0 : index
    %140 = vector.load %arg2[%c10, %c0_51, %c0_52] : memref<15x8x8xf32, #tpu.memory_space<vmem>>, vector<1x8x8xf32>
    %141 = vector.shape_cast %140 : vector<1x8x8xf32> to vector<8x8xf32>
    %cst_53 = arith.constant dense<0.000000e+00> : vector<64x8xf32>
    %142 = tpu.matmul %121, %141, %cst_53 {dimension_numbers = #tpu.dot_dimension_numbers<[1], [0], [0], [1], [0, 0, 1, 1], [], []>} : vector<64x8xf32>, vector<8x8xf32>, vector<64x8xf32> -> vector<64x8xf32>
    %143 = arith.addf %139, %142 : vector<64x8xf32>
    %c11 = arith.constant 11 : index
    %c0_54 = arith.constant 0 : index
    %c0_55 = arith.constant 0 : index
    %144 = vector.load %arg2[%c11, %c0_54, %c0_55] : memref<15x8x8xf32, #tpu.memory_space<vmem>>, vector<1x8x8xf32>
    %145 = vector.shape_cast %144 : vector<1x8x8xf32> to vector<8x8xf32>
    %cst_56 = arith.constant dense<0.000000e+00> : vector<64x8xf32>
    %146 = tpu.matmul %136, %145, %cst_56 {dimension_numbers = #tpu.dot_dimension_numbers<[1], [0], [0], [1], [0, 0, 1, 1], [], []>} : vector<64x8xf32>, vector<8x8xf32>, vector<64x8xf32> -> vector<64x8xf32>
    %147 = arith.addf %143, %146 : vector<64x8xf32>
    %148 = vector.broadcast %122 : vector<1x8xf32> to vector<64x8xf32>
    %149 = arith.addf %147, %148 : vector<64x8xf32>
    %cst_57 = arith.constant 0.000000e+00 : f32
    %150 = vector.broadcast %cst_57 : f32 to vector<64x8xf32>
    %151 = arith.cmpf ogt, %149, %150 : vector<64x8xf32>
    %cst_58 = arith.constant 0.00999999977 : f32
    %152 = vector.broadcast %cst_58 : f32 to vector<64x8xf32>
    %153 = arith.mulf %152, %149 : vector<64x8xf32>
    %154 = arith.select %151, %149, %153 : vector<64x8xi1>, vector<64x8xf32>
    %155 = vector.extract_strided_slice %1 {offsets = [4, 0], sizes = [1, 8], strides = [1, 1]} : vector<8x128xf32> to vector<1x8xf32>
    %156 = vector.extract_strided_slice %154 {offsets = [63, 0], sizes = [1, 8], strides = [1, 1]} : vector<64x8xf32> to vector<1x8xf32>
    %157 = vector.extract_strided_slice %154 {offsets = [0, 0], sizes = [63, 8], strides = [1, 1]} : vector<64x8xf32> to vector<63x8xf32>
    %158 = tpu.concatenate %156, %157 in 0 : vector<1x8xf32>, vector<63x8xf32> -> vector<64x8xf32>
    %cst_59 = arith.constant 0.000000e+00 : f32
    %159 = vector.shape_cast %20 : vector<64x1xi1> to vector<64x1xi1>
    %160 = vector.broadcast %159 : vector<64x1xi1> to vector<64x8xi1>
    %161 = vector.broadcast %cst_59 : f32 to vector<64x8xf32>
    %162 = arith.select %160, %161, %158 : vector<64x8xi1>, vector<64x8xf32>
    %163 = vector.extract_strided_slice %154 {offsets = [1, 0], sizes = [63, 8], strides = [1, 1]} : vector<64x8xf32> to vector<63x8xf32>
    %164 = vector.extract_strided_slice %154 {offsets = [0, 0], sizes = [1, 8], strides = [1, 1]} : vector<64x8xf32> to vector<1x8xf32>
    %165 = tpu.concatenate %163, %164 in 0 : vector<63x8xf32>, vector<1x8xf32> -> vector<64x8xf32>
    %cst_60 = arith.constant 0.000000e+00 : f32
    %166 = vector.shape_cast %22 : vector<64x1xi1> to vector<64x1xi1>
    %167 = vector.broadcast %166 : vector<64x1xi1> to vector<64x8xi1>
    %168 = vector.broadcast %cst_60 : f32 to vector<64x8xf32>
    %169 = arith.select %167, %168, %165 : vector<64x8xi1>, vector<64x8xf32>
    %c12 = arith.constant 12 : index
    %c0_61 = arith.constant 0 : index
    %c0_62 = arith.constant 0 : index
    %170 = vector.load %arg2[%c12, %c0_61, %c0_62] : memref<15x8x8xf32, #tpu.memory_space<vmem>>, vector<1x8x8xf32>
    %171 = vector.shape_cast %170 : vector<1x8x8xf32> to vector<8x8xf32>
    %cst_63 = arith.constant dense<0.000000e+00> : vector<64x8xf32>
    %172 = tpu.matmul %162, %171, %cst_63 {dimension_numbers = #tpu.dot_dimension_numbers<[1], [0], [0], [1], [0, 0, 1, 1], [], []>} : vector<64x8xf32>, vector<8x8xf32>, vector<64x8xf32> -> vector<64x8xf32>
    %c13 = arith.constant 13 : index
    %c0_64 = arith.constant 0 : index
    %c0_65 = arith.constant 0 : index
    %173 = vector.load %arg2[%c13, %c0_64, %c0_65] : memref<15x8x8xf32, #tpu.memory_space<vmem>>, vector<1x8x8xf32>
    %174 = vector.shape_cast %173 : vector<1x8x8xf32> to vector<8x8xf32>
    %cst_66 = arith.constant dense<0.000000e+00> : vector<64x8xf32>
    %175 = tpu.matmul %154, %174, %cst_66 {dimension_numbers = #tpu.dot_dimension_numbers<[1], [0], [0], [1], [0, 0, 1, 1], [], []>} : vector<64x8xf32>, vector<8x8xf32>, vector<64x8xf32> -> vector<64x8xf32>
    %176 = arith.addf %172, %175 : vector<64x8xf32>
    %c14 = arith.constant 14 : index
    %c0_67 = arith.constant 0 : index
    %c0_68 = arith.constant 0 : index
    %177 = vector.load %arg2[%c14, %c0_67, %c0_68] : memref<15x8x8xf32, #tpu.memory_space<vmem>>, vector<1x8x8xf32>
    %178 = vector.shape_cast %177 : vector<1x8x8xf32> to vector<8x8xf32>
    %cst_69 = arith.constant dense<0.000000e+00> : vector<64x8xf32>
    %179 = tpu.matmul %169, %178, %cst_69 {dimension_numbers = #tpu.dot_dimension_numbers<[1], [0], [0], [1], [0, 0, 1, 1], [], []>} : vector<64x8xf32>, vector<8x8xf32>, vector<64x8xf32> -> vector<64x8xf32>
    %180 = arith.addf %176, %179 : vector<64x8xf32>
    %181 = vector.broadcast %155 : vector<1x8xf32> to vector<64x8xf32>
    %182 = arith.addf %180, %181 : vector<64x8xf32>
    %cst_70 = arith.constant 0.000000e+00 : f32
    %183 = vector.broadcast %cst_70 : f32 to vector<64x8xf32>
    %184 = arith.cmpf ogt, %182, %183 : vector<64x8xf32>
    %cst_71 = arith.constant 0.00999999977 : f32
    %185 = vector.broadcast %cst_71 : f32 to vector<64x8xf32>
    %186 = arith.mulf %185, %182 : vector<64x8xf32>
    %187 = arith.select %184, %182, %186 : vector<64x8xi1>, vector<64x8xf32>
    %188 = vector.extract_strided_slice %1 {offsets = [5, 0], sizes = [1, 8], strides = [1, 1]} : vector<8x128xf32> to vector<1x8xf32>
    %189 = vector.extract_strided_slice %1 {offsets = [6, 0], sizes = [1, 8], strides = [1, 1]} : vector<8x128xf32> to vector<1x8xf32>
    %cst_72 = arith.constant dense<0.000000e+00> : vector<64xf32>
    %190 = vector.multi_reduction <add>, %187, %cst_72 [1] : vector<64x8xf32> to vector<64xf32>
    %191 = vector.shape_cast %190 : vector<64xf32> to vector<64x1xf32>
    %cst_73 = arith.constant 8.000000e+00 : f32
    %192 = vector.broadcast %cst_73 : f32 to vector<64x1xf32>
    %193 = arith.divf %191, %192 : vector<64x1xf32>
    %194 = vector.broadcast %193 : vector<64x1xf32> to vector<64x8xf32>
    %195 = arith.subf %187, %194 : vector<64x8xf32>
    %196 = arith.mulf %195, %195 : vector<64x8xf32>
    %cst_74 = arith.constant dense<0.000000e+00> : vector<64xf32>
    %197 = vector.multi_reduction <add>, %196, %cst_74 [1] : vector<64x8xf32> to vector<64xf32>
    %198 = vector.shape_cast %197 : vector<64xf32> to vector<64x1xf32>
    %cst_75 = arith.constant 8.000000e+00 : f32
    %199 = vector.broadcast %cst_75 : f32 to vector<64x1xf32>
    %200 = arith.divf %198, %199 : vector<64x1xf32>
    %201 = vector.broadcast %193 : vector<64x1xf32> to vector<64x8xf32>
    %202 = arith.subf %187, %201 : vector<64x8xf32>
    %cst_76 = arith.constant 9.99999974E-6 : f32
    %203 = vector.broadcast %cst_76 : f32 to vector<64x1xf32>
    %204 = arith.addf %200, %203 : vector<64x1xf32>
    %205 = math.rsqrt %204 : vector<64x1xf32>
    %206 = vector.broadcast %205 : vector<64x1xf32> to vector<64x8xf32>
    %207 = arith.mulf %202, %206 : vector<64x8xf32>
    %208 = vector.broadcast %188 : vector<1x8xf32> to vector<64x8xf32>
    %209 = arith.mulf %207, %208 : vector<64x8xf32>
    %210 = vector.broadcast %189 : vector<1x8xf32> to vector<64x8xf32>
    %211 = arith.addf %209, %210 : vector<64x8xf32>
    %212 = vector.extract_strided_slice %1 {offsets = [7, 0], sizes = [1, 128], strides = [1, 1]} : vector<8x128xf32> to vector<1x128xf32>
    %c0_77 = arith.constant 0 : index
    %c0_78 = arith.constant 0 : index
    %213 = vector.load %arg3[%c0_77, %c0_78] : memref<8x128xf32, #tpu.memory_space<vmem>>, vector<8x128xf32>
    %cst_79 = arith.constant dense<0.000000e+00> : vector<64x128xf32>
    %214 = tpu.matmul %211, %213, %cst_79 {dimension_numbers = #tpu.dot_dimension_numbers<[1], [0], [0], [1], [0, 0, 1, 1], [], []>} : vector<64x8xf32>, vector<8x128xf32>, vector<64x128xf32> -> vector<64x128xf32>
    %215 = vector.broadcast %212 : vector<1x128xf32> to vector<64x128xf32>
    %216 = arith.addf %214, %215 : vector<64x128xf32>
    %c0_80 = arith.constant 0 : index
    %c0_81 = arith.constant 0 : index
    %217 = vector.load %arg5[%c0_80, %c0_81] : memref<64x128xf32, #tpu.memory_space<vmem>>, vector<64x128xf32>
    tpu.vector_store %arg5[%c0_80, %c0_81], %216 {strides = array<i32>} : memref<64x128xf32, #tpu.memory_space<vmem>>, vector<64x128xf32>,
    return
  }
  func.func @transform_0(%arg0: i32) -> (i32, i32) {
    %c0_i32 = arith.constant 0 : i32
    %c0_i32_0 = arith.constant 0 : i32
    return %arg0, %c0_i32 : i32, i32
  }
  func.func @transform_1(%arg0: i32) -> (i32, i32, i32) {
    %c0_i32 = arith.constant 0 : i32
    %c0_i32_0 = arith.constant 0 : i32
    %c0_i32_1 = arith.constant 0 : i32
    %c0_i32_2 = arith.constant 0 : i32
    return %c0_i32, %c0_i32_0, %c0_i32_1 : i32, i32, i32
  }
  func.func @transform_2(%arg0: i32) -> (i32, i32) {
    %c0_i32 = arith.constant 0 : i32
    %c0_i32_0 = arith.constant 0 : i32
    %c0_i32_1 = arith.constant 0 : i32
    return %c0_i32, %c0_i32_0 : i32, i32
  }
  func.func @transform_3(%arg0: i32) -> (i32, i32) {
    %c0_i32 = arith.constant 0 : i32
    %c0_i32_0 = arith.constant 0 : i32
    %c0_i32_1 = arith.constant 0 : i32
    return %c0_i32, %c0_i32_0 : i32, i32
  }
  func.func @transform_4(%arg0: i32) -> (i32, i32) {
    %c0_i32 = arith.constant 0 : i32
    %c0_i32_0 = arith.constant 0 : i32
    return %arg0, %c0_i32 : i32, i32
  }
}

</mosaic_0001>

<llo_original>
// kernel: tpu_custom_call.1
$region0: #{tpu_custom_call.1}
  #allocation0 [shape = 'u32[]', space=smem, size = 0x4, offset = 0x4, fixed_abs, tag = 'smem constant byte address 0x4 - core index']
  #allocation1 [shape = 'u32[144,128]{1,0:T(1,128)}', space=vmem, size = 0x12000, scoped, tag = 'internal scratch']
  %s0 = inlined_call_operand.vmem [shape: f32[64,8], index: 0, kind: input, shape index: {}]
  %s1 = inlined_call_operand.vmem [shape: f32[15,8,8], index: 1, kind: input, shape index: {}]
  %s2 = inlined_call_operand.vmem [shape: f32[8,128], index: 2, kind: input, shape index: {}]
  %s3 = inlined_call_operand.vmem [shape: f32[8,128], index: 3, kind: input, shape index: {}]
  %s4 = inlined_call_operand.hbm [shape: f32[64,128], index: 4, kind: output, shape index: {}]
  %s5 = sld [smem:[#allocation0]]
  $region26: #{tpu_custom_call.1} parent=0
    _
  %s7 = ssub.s32 1, %s5
  %s8 = scalar_select 0, %s7, %s5
  $region1: #{tpu_custom_call.1} parent=0
    #allocation2 [shape = 'u8[32768]{0}', space=vmem, size = 0x8000, scoped, tag = 'output window, operand 0, single buffered']
    #allocation3 [shape = 's32[1]{0}', space=sflag, size = 0x4, scoped, tag = 'scoped memory for tpu_custom_call.1']
    %9 = vsyncpa [#allocation3], 0
    // Predicated region
    $region2: #{tpu_custom_call.1} parent=1 // pred_check
      _
    $region3: #{tpu_custom_call.1} parent=1 // pred_check_branch
      %11 = sbr.rel (0) target = $region5
    $region4: #{tpu_custom_call.1} parent=1 // pred_region
      _
    $region5: #{tpu_custom_call.1} parent=1 // pred_fallthru
      _
    // Predicated region
    $region6: #{tpu_custom_call.1} parent=1 // pred_check
      _
    $region7: #{tpu_custom_call.1} parent=1 // pred_check_branch
      %13 = sbr.rel (0) target = $region9
    $region8: #{tpu_custom_call.1} parent=1 // pred_region
      _
    $region9: #{tpu_custom_call.1} parent=1 // pred_fallthru
      _
    // Predicated region
    $region10: #{tpu_custom_call.1} parent=1 // pred_check
      _
    $region11: #{tpu_custom_call.1} parent=1 // pred_check_branch
      %15 = sbr.rel (0) target = $region13
    $region12: #{tpu_custom_call.1} parent=1 // pred_region
      _
    $region13: #{tpu_custom_call.1} parent=1 // pred_fallthru
      _
    // Predicated region
    $region14: #{tpu_custom_call.1} parent=1 // pred_check
      _
    $region15: #{tpu_custom_call.1} parent=1 // pred_check_branch
      %17 = sbr.rel (0) target = $region17
    $region16: #{tpu_custom_call.1} parent=1 // pred_region
      _
    $region17: #{tpu_custom_call.1} parent=1 // pred_fallthru
      _
    %v18 = vld [vmem:[%s0] sm:$0xff]
    %v19 = vld [vmem:[%s0 + $0x8] sm:$0xff]
    %v20 = vld [vmem:[%s0 + $0x10] sm:$0xff]
    %v21 = vld [vmem:[%s0 + $0x18] sm:$0xff]
    %v22 = vld [vmem:[%s0 + $0x20] sm:$0xff]
    %v23 = vld [vmem:[%s0 + $0x28] sm:$0xff]
    %v24 = vld [vmem:[%s0 + $0x30] sm:$0xff]
    %v25 = vld [vmem:[%s0 + $0x38] sm:$0xff]
    %v26 = vld [vmem:[%s3] sm:$0xff]
    %v27 = vlaneseq
    %v28 = vshrl.u32 %v27, 7
    %v29 = vadd.s32 %v28, 8
    %v30 = vadd.s32 %v28, 16
    %v31 = vadd.s32 %v28, 24
    %v32 = vadd.s32 %v28, 32
    %v33 = vadd.s32 %v28, 40
    %v34 = vadd.s32 %v28, 48
    %v35 = vadd.s32 %v28, 56
    %vm36 = vcmp.lt.s32.totalorder %v28, 0
    %v37 = vsub.s32 0, %v28
    %v38 = vsel %vm36, %v37, %v28
    %v39 = vshrl.u32 %v38, 4
    %v40 = vand.u32 %v38, 15
    %v41 = vsub.s32 0, %v40
    %v42 = vsel %vm36, %v41, %v40
    %vm43 = vcmp.lt.s32.totalorder %v29, 0
    %v44 = vsub.s32 0, %v29
    %v45 = vsel %vm43, %v44, %v29
    %v46 = vshrl.u32 %v45, 4
    %v47 = vand.u32 %v45, 15
    %v48 = vsub.s32 0, %v47
    %v49 = vsel %vm43, %v48, %v47
    %vm50 = vcmp.lt.s32.totalorder %v30, 0
    %v51 = vsub.s32 0, %v30
    %v52 = vsel %vm50, %v51, %v30
    %v53 = vshrl.u32 %v52, 4
    %v54 = vand.u32 %v52, 15
    %v55 = vsub.s32 0, %v54
    %v56 = vsel %vm50, %v55, %v54
    %vm57 = vcmp.lt.s32.totalorder %v31, 0
    %v58 = vsub.s32 0, %v31
    %v59 = vsel %vm57, %v58, %v31
    %v60 = vshrl.u32 %v59, 4
    %v61 = vand.u32 %v59, 15
    %v62 = vsub.s32 0, %v61
    %v63 = vsel %vm57, %v62, %v61
    %vm64 = vcmp.lt.s32.totalorder %v32, 0
    %v65 = vsub.s32 0, %v32
    %v66 = vsel %vm64, %v65, %v32
    %v67 = vshrl.u32 %v66, 4
    %v68 = vand.u32 %v66, 15
    %v69 = vsub.s32 0, %v68
    %v70 = vsel %vm64, %v69, %v68
    %vm71 = vcmp.lt.s32.totalorder %v33, 0
    %v72 = vsub.s32 0, %v33
    %v73 = vsel %vm71, %v72, %v33
    %v74 = vshrl.u32 %v73, 4
    %v75 = vand.u32 %v73, 15
    %v76 = vsub.s32 0, %v75
    %v77 = vsel %vm71, %v76, %v75
    %vm78 = vcmp.lt.s32.totalorder %v34, 0
    %v79 = vsub.s32 0, %v34
    %v80 = vsel %vm78, %v79, %v34
    %v81 = vshrl.u32 %v80, 4
    %v82 = vand.u32 %v80, 15
    %v83 = vsub.s32 0, %v82
    %v84 = vsel %vm78, %v83, %v82
    %vm85 = vcmp.lt.s32.totalorder %v35, 0
    %v86 = vsub.s32 0, %v35
    %v87 = vsel %vm85, %v86, %v35
    %v88 = vshrl.u32 %v87, 4
    %v89 = vand.u32 %v87, 15
    %v90 = vsub.s32 0, %v89
    %v91 = vsel %vm85, %v90, %v89
    %vm92 = vcmp.ne.s32.totalorder %v42, 0
    %vm93 = vcmp.ne.s32.totalorder %v49, 0
    %vm94 = vcmp.ne.s32.totalorder %v56, 0
    %vm95 = vcmp.ne.s32.totalorder %v63, 0
    %vm96 = vcmp.ne.s32.totalorder %v70, 0
    %vm97 = vcmp.ne.s32.totalorder %v77, 0
    %vm98 = vcmp.ne.s32.totalorder %v84, 0
    %vm99 = vcmp.ne.s32.totalorder %v91, 0
    %vm100 = vcmp.lt.s32.totalorder %v42, 0
    %vm101 = vcmp.lt.s32.totalorder %v49, 0
    %vm102 = vcmp.lt.s32.totalorder %v56, 0
    %vm103 = vcmp.lt.s32.totalorder %v63, 0
    %vm104 = vcmp.lt.s32.totalorder %v70, 0
    %vm105 = vcmp.lt.s32.totalorder %v77, 0
    %vm106 = vcmp.lt.s32.totalorder %v84, 0
    %vm107 = vcmp.lt.s32.totalorder %v91, 0
    %vm108 = vmand %vm100, %vm92
    %vm109 = vmand %vm101, %vm93
    %vm110 = vmand %vm102, %vm94
    %vm111 = vmand %vm103, %vm95
    %vm112 = vmand %vm104, %vm96
    %vm113 = vmand %vm105, %vm97
    %vm114 = vmand %vm106, %vm98
    %vm115 = vmand %vm107, %vm99
    %v116 = vadd.s32 %v42, 16
    %v117 = vadd.s32 %v49, 16
    %v118 = vadd.s32 %v56, 16
    %v119 = vadd.s32 %v63, 16
    %v120 = vadd.s32 %v70, 16
    %v121 = vadd.s32 %v77, 16
    %v122 = vadd.s32 %v84, 16
    %v123 = vadd.s32 %v91, 16
    %v124 = vsel %vm108, %v116, %v42
    %v125 = vsel %vm109, %v117, %v49
    %v126 = vsel %vm110, %v118, %v56
    %v127 = vsel %vm111, %v119, %v63
    %v128 = vsel %vm112, %v120, %v70
    %v129 = vsel %vm113, %v121, %v77
    %v130 = vsel %vm114, %v122, %v84
    %v131 = vsel %vm115, %v123, %v91
    %vm132 = vcmp.eq.s32.totalorder %v124, 0
    %vm133 = vcmp.eq.s32.totalorder %v125, 0
    %vm134 = vcmp.eq.s32.totalorder %v126, 0
    %vm135 = vcmp.eq.s32.totalorder %v127, 0
    %vm136 = vcmp.eq.s32.totalorder %v128, 0
    %vm137 = vcmp.eq.s32.totalorder %v129, 0
    %vm138 = vcmp.eq.s32.totalorder %v130, 0
    %vm139 = vcmp.eq.s32.totalorder %v131, 0
    %vm140 = vcmp.eq.s32.totalorder %v124, 15
    %vm141 = vcmp.eq.s32.totalorder %v125, 15
    %vm142 = vcmp.eq.s32.totalorder %v126, 15
    %vm143 = vcmp.eq.s32.totalorder %v127, 15
    %vm144 = vcmp.eq.s32.totalorder %v128, 15
    %vm145 = vcmp.eq.s32.totalorder %v129, 15
    %vm146 = vcmp.eq.s32.totalorder %v130, 15
    %vm147 = vcmp.eq.s32.totalorder %v131, 15
    %v149 = vrot.slane %v25, 7
    %vm158 = vcmask 1040384
    %v159 = vrot.slane %v18, 7
    %v160 = vrot.slane %v19, 7
    %v161 = vsel %vm158, %v159, %v160
    %v162 = vrot.slane %v20, 7
    %v163 = vsel %vm158, %v160, %v162
    %v164 = vrot.slane %v21, 7
    %v165 = vsel %vm158, %v162, %v164
    %v166 = vrot.slane %v22, 7
    %v167 = vsel %vm158, %v164, %v166
    %v168 = vrot.slane %v23, 7
    %v169 = vsel %vm158, %v166, %v168
    %v170 = vrot.slane %v24, 7
    %v171 = vsel %vm158, %v168, %v170
    %v172 = vsel %vm158, %v170, %v149
    %v181 = vsel %vm158, %v149, %v159
    %v182 = vsel %vm132, 1, 0
    %v183 = vsel %vm133, 1, 0
    %v184 = vsel %vm134, 1, 0
    %v185 = vsel %vm135, 1, 0
    %v186 = vsel %vm136, 1, 0
    %v187 = vsel %vm137, 1, 0
    %v188 = vsel %vm138, 1, 0
    %v189 = vsel %vm139, 1, 0
    %vm190 = vcmp.eq.s32.totalorder %v182, 1
    %vm191 = vcmp.eq.s32.totalorder %v183, 1
    %vm192 = vcmp.eq.s32.totalorder %v184, 1
    %vm193 = vcmp.eq.s32.totalorder %v185, 1
    %vm194 = vcmp.eq.s32.totalorder %v186, 1
    %vm195 = vcmp.eq.s32.totalorder %v187, 1
    %vm196 = vcmp.eq.s32.totalorder %v188, 1
    %vm197 = vcmp.eq.s32.totalorder %v189, 1
    %v198 = vsel %vm190, 0.0, %v181
    %v199 = vsel %vm191, 0.0, %v161
    %v200 = vsel %vm192, 0.0, %v163
    %v201 = vsel %vm193, 0.0, %v165
    %v202 = vsel %vm194, 0.0, %v167
    %v203 = vsel %vm195, 0.0, %v169
    %v204 = vsel %vm196, 0.0, %v171
    %v205 = vsel %vm197, 0.0, %v172
    %vm206 = vcmask 1046528
    %v207 = vrot.slane %v18, 1
    %v208 = vrot.slane %v19, 1
    %v209 = vsel %vm206, %v207, %v208
    %v210 = vrot.slane %v20, 1
    %v211 = vsel %vm206, %v208, %v210
    %v212 = vrot.slane %v21, 1
    %v213 = vsel %vm206, %v210, %v212
    %v214 = vrot.slane %v22, 1
    %v215 = vsel %vm206, %v212, %v214
    %v216 = vrot.slane %v23, 1
    %v217 = vsel %vm206, %v214, %v216
    %v218 = vrot.slane %v24, 1
    %v219 = vsel %vm206, %v216, %v218
    %v220 = vrot.slane %v25, 1
    %v221 = vsel %vm206, %v218, %v220
    %v231 = vsel %vm206, %v220, %v207
    %v232 = vsel %vm140, 1, 0
    %v233 = vsel %vm141, 1, 0
    %v234 = vsel %vm142, 1, 0
    %v235 = vsel %vm143, 1, 0
    %v236 = vsel %vm144, 1, 0
    %v237 = vsel %vm145, 1, 0
    %v238 = vsel %vm146, 1, 0
    %v239 = vsel %vm147, 1, 0
    %vm240 = vcmp.eq.s32.totalorder %v232, 1
    %vm241 = vcmp.eq.s32.totalorder %v233, 1
    %vm242 = vcmp.eq.s32.totalorder %v234, 1
    %vm243 = vcmp.eq.s32.totalorder %v235, 1
    %vm244 = vcmp.eq.s32.totalorder %v236, 1
    %vm245 = vcmp.eq.s32.totalorder %v237, 1
    %vm246 = vcmp.eq.s32.totalorder %v238, 1
    %vm247 = vcmp.eq.s32.totalorder %v239, 1
    %v248 = vsel %vm240, 0.0, %v209
    %v249 = vsel %vm241, 0.0, %v211
    %v250 = vsel %vm242, 0.0, %v213
    %v251 = vsel %vm243, 0.0, %v215
    %v252 = vsel %vm244, 0.0, %v217
    %v253 = vsel %vm245, 0.0, %v219
    %v254 = vsel %vm246, 0.0, %v221
    %v255 = vsel %vm247, 0.0, %v231
    %v256 = vld [vmem:[%s1] sm:$0xff]
    %s257 = scalar_lea.vmem %s1, 8
    %v258 = vld [vmem:[%s257] sm:$0xff]
    %vm259 = vcmask 64512
    %v260 = vsel %vm259, %v18, 0
    %v262 = vsel %vm259, %v19, 0
    %v264 = vsel %vm259, %v20, 0
    %v266 = vsel %vm259, %v21, 0
    %v268 = vsel %vm259, %v22, 0
    %v270 = vsel %vm259, %v23, 0
    %v272 = vsel %vm259, %v24, 0
    %v274 = vsel %vm259, %v25, 0
    %276 = vmatprep.subr.mxu0 0.0
    %277 = vmatpush1.msra.mxu0 %v258
    %278 = vmatprep.subr.mxu0 0.0
    %279 = vmatpush1.msra.mxu0 0.0
    %280 = vmatprep.subr.mxu0 0.0
    %281 = vmatpush1.msra.mxu0 0.0
    %282 = vmatprep.subr.mxu0 0.0
    %283 = vmatpush1.msra.mxu0 0.0
    %284 = vmatprep.subr.mxu0 0.0
    %285 = vmatpush1.msra.mxu0 0.0
    %286 = vmatprep.subr.mxu0 0.0
    %287 = vmatpush1.msra.mxu0 0.0
    %288 = vmatprep.subr.mxu0 0.0
    %289 = vmatpush1.msra.mxu0 0.0
    %290 = vmatprep.subr.mxu0 0.0
    %291 = vmatpush1.msra.mxu0 0.0
    %292 = vmatprep.subr.mxu0 0.0
    %293 = vmatpush1.msra.mxu0 0.0
    %294 = vmatprep.subr.mxu0 0.0
    %295 = vmatpush1.msra.mxu0 0.0
    %296 = vmatprep.subr.mxu0 0.0
    %297 = vmatpush1.msra.mxu0 0.0
    %298 = vmatprep.subr.mxu0 0.0
    %299 = vmatpush1.msra.mxu0 0.0
    %300 = vmatprep.subr.mxu0 0.0
    %301 = vmatpush1.msra.mxu0 0.0
    %302 = vmatprep.subr.mxu0 0.0
    %303 = vmatpush1.msra.mxu0 0.0
    %304 = vmatprep.subr.mxu0 0.0
    %305 = vmatpush1.msra.mxu0 0.0
    %306 = vmatprep.subr.mxu0 0.0
    %307 = vmatpush1.msra.mxu0 0.0
    %308 = vmatprep.subr.mxu0 0.0
    %309 = vmatpush1.msra.mxu0 0.0
    %310 = vmatprep.subr.mxu0 0.0
    %311 = vmatpush1.msra.mxu0 0.0
    %312 = vmatprep.subr.mxu0 0.0
    %313 = vmatpush1.msra.mxu0 0.0
    %314 = vmatprep.subr.mxu0 0.0
    %315 = vmatpush1.msra.mxu0 0.0
    %316 = vmatprep.subr.mxu0 0.0
    %317 = vmatpush1.msra.mxu0 0.0
    %318 = vmatprep.subr.mxu0 0.0
    %319 = vmatpush1.msra.mxu0 0.0
    %320 = vmatprep.subr.mxu0 0.0
    %321 = vmatpush1.msra.mxu0 0.0
    %322 = vmatprep.subr.mxu0 0.0
    %323 = vmatpush1.msra.mxu0 0.0
    %324 = vmatprep.subr.mxu0 0.0
    %325 = vmatpush1.msra.mxu0 0.0
    %326 = vmatprep.subr.mxu0 0.0
    %327 = vmatpush1.msra.mxu0 0.0
    %328 = vmatprep.subr.mxu0 0.0
    %329 = vmatpush1.msra.mxu0 0.0
    %330 = vmatprep.subr.mxu0 0.0
    %331 = vmatpush1.msra.mxu0 0.0
    %332 = vmatprep.subr.mxu0 0.0
    %333 = vmatpush1.msra.mxu0 0.0
    %334 = vmatprep.subr.mxu0 0.0
    %335 = vmatpush1.msra.mxu0 0.0
    %336 = vmatprep.subr.mxu0 0.0
    %337 = vmatpush1.msra.mxu0 0.0
    %338 = vmatprep.subr.mxu0 0.0
    %339 = vmatpush1.msra.mxu0 0.0
    %340 = vmatprep.mubr.f32.mxu0 0.0
    %341 = vmatmul.mubr.f32.gmra.mrb[0].mxu0 %v260
    %v342 = vpop.f32.mrb[0].mxu0
    %v343 = vadd.f32 0.0, %v342
    %v344 = vpop.f32.mrb[0].mxu0
    %345 = vmatprep.mubr.f32.mxu0 0.0
    %346 = vmatmul.mubr.f32.gmra.mrb[0].mxu0 %v262
    %v347 = vpop.f32.mrb[0].mxu0
    %v348 = vadd.f32 0.0, %v347
    %v349 = vpop.f32.mrb[0].mxu0
    %350 = vmatprep.mubr.f32.mxu0 0.0
    %351 = vmatmul.mubr.f32.gmra.mrb[0].mxu0 %v264
    %v352 = vpop.f32.mrb[0].mxu0
    %v353 = vadd.f32 0.0, %v352
    %v354 = vpop.f32.mrb[0].mxu0
    %355 = vmatprep.mubr.f32.mxu0 0.0
    %356 = vmatmul.mubr.f32.gmra.mrb[0].mxu0 %v266
    %v357 = vpop.f32.mrb[0].mxu0
    %v358 = vadd.f32 0.0, %v357
    %v359 = vpop.f32.mrb[0].mxu0
    %360 = vmatprep.mubr.f32.mxu0 0.0
    %361 = vmatmul.mubr.f32.gmra.mrb[0].mxu0 %v268
    %v362 = vpop.f32.mrb[0].mxu0
    %v363 = vadd.f32 0.0, %v362
    %v364 = vpop.f32.mrb[0].mxu0
    %365 = vmatprep.mubr.f32.mxu0 0.0
    %366 = vmatmul.mubr.f32.gmra.mrb[0].mxu0 %v270
    %v367 = vpop.f32.mrb[0].mxu0
    %v368 = vadd.f32 0.0, %v367
    %v369 = vpop.f32.mrb[0].mxu0
    %370 = vmatprep.mubr.f32.mxu0 0.0
    %371 = vmatmul.mubr.f32.gmra.mrb[0].mxu0 %v272
    %v372 = vpop.f32.mrb[0].mxu0
    %v373 = vadd.f32 0.0, %v372
    %v374 = vpop.f32.mrb[0].mxu0
    %375 = vmatprep.mubr.f32.mxu0 0.0
    %376 = vmatmul.mubr.f32.gmra.mrb[0].mxu0 %v274
    %v377 = vpop.f32.mrb[0].mxu0
    %v378 = vadd.f32 0.0, %v377
    %v379 = vpop.f32.mrb[0].mxu0
    %380 = vdwg.mxu0
    %v382 = vsel %vm259, %v198, 0
    %v385 = vsel %vm259, %v199, 0
    %v388 = vsel %vm259, %v200, 0
    %v391 = vsel %vm259, %v201, 0
    %v394 = vsel %vm259, %v202, 0
    %v397 = vsel %vm259, %v203, 0
    %v400 = vsel %vm259, %v204, 0
    %v403 = vsel %vm259, %v205, 0
    %405 = vmatprep.subr.mxu0 0.0
    %406 = vmatpush1.msra.mxu0 %v256
    %407 = vmatprep.subr.mxu0 0.0
    %408 = vmatpush1.msra.mxu0 0.0
    %409 = vmatprep.subr.mxu0 0.0
    %410 = vmatpush1.msra.mxu0 0.0
    %411 = vmatprep.subr.mxu0 0.0
    %412 = vmatpush1.msra.mxu0 0.0
    %413 = vmatprep.subr.mxu0 0.0
    %414 = vmatpush1.msra.mxu0 0.0
    %415 = vmatprep.subr.mxu0 0.0
    %416 = vmatpush1.msra.mxu0 0.0
    %417 = vmatprep.subr.mxu0 0.0
    %418 = vmatpush1.msra.mxu0 0.0
    %419 = vmatprep.subr.mxu0 0.0
    %420 = vmatpush1.msra.mxu0 0.0
    %421 = vmatprep.subr.mxu0 0.0
    %422 = vmatpush1.msra.mxu0 0.0
    %423 = vmatprep.subr.mxu0 0.0
    %424 = vmatpush1.msra.mxu0 0.0
    %425 = vmatprep.subr.mxu0 0.0
    %426 = vmatpush1.msra.mxu0 0.0
    %427 = vmatprep.subr.mxu0 0.0
    %428 = vmatpush1.msra.mxu0 0.0
    %429 = vmatprep.subr.mxu0 0.0
    %430 = vmatpush1.msra.mxu0 0.0
    %431 = vmatprep.subr.mxu0 0.0
    %432 = vmatpush1.msra.mxu0 0.0
    %433 = vmatprep.subr.mxu0 0.0
    %434 = vmatpush1.msra.mxu0 0.0
    %435 = vmatprep.subr.mxu0 0.0
    %436 = vmatpush1.msra.mxu0 0.0
    %437 = vmatprep.subr.mxu0 0.0
    %438 = vmatpush1.msra.mxu0 0.0
    %439 = vmatprep.subr.mxu0 0.0
    %440 = vmatpush1.msra.mxu0 0.0
    %441 = vmatprep.subr.mxu0 0.0
    %442 = vmatpush1.msra.mxu0 0.0
    %443 = vmatprep.subr.mxu0 0.0
    %444 = vmatpush1.msra.mxu0 0.0
    %445 = vmatprep.subr.mxu0 0.0
    %446 = vmatpush1.msra.mxu0 0.0
    %447 = vmatprep.subr.mxu0 0.0
    %448 = vmatpush1.msra.mxu0 0.0
    %449 = vmatprep.subr.mxu0 0.0
    %450 = vmatpush1.msra.mxu0 0.0
    %451 = vmatprep.subr.mxu0 0.0
    %452 = vmatpush1.msra.mxu0 0.0
    %453 = vmatprep.subr.mxu0 0.0
    %454 = vmatpush1.msra.mxu0 0.0
    %455 = vmatprep.subr.mxu0 0.0
    %456 = vmatpush1.msra.mxu0 0.0
    %457 = vmatprep.subr.mxu0 0.0
    %458 = vmatpush1.msra.mxu0 0.0
    %459 = vmatprep.subr.mxu0 0.0
    %460 = vmatpush1.msra.mxu0 0.0
    %461 = vmatprep.subr.mxu0 0.0
    %462 = vmatpush1.msra.mxu0 0.0
    %463 = vmatprep.subr.mxu0 0.0
    %464 = vmatpush1.msra.mxu0 0.0
    %465 = vmatprep.subr.mxu0 0.0
    %466 = vmatpush1.msra.mxu0 0.0
    %467 = vmatprep.subr.mxu0 0.0
    %468 = vmatpush1.msra.mxu0 0.0
    %469 = vmatprep.mubr.f32.mxu0 0.0
    %470 = vmatmul.mubr.f32.gmra.mrb[0].mxu0 %v382
    %v471 = vpop.f32.mrb[0].mxu0
    %v472 = vadd.f32 %v343, %v471
    %v473 = vpop.f32.mrb[0].mxu0
    %474 = vmatprep.mubr.f32.mxu0 0.0
    %475 = vmatmul.mubr.f32.gmra.mrb[0].mxu0 %v385
    %v476 = vpop.f32.mrb[0].mxu0
    %v477 = vadd.f32 %v348, %v476
    %v478 = vpop.f32.mrb[0].mxu0
    %479 = vmatprep.mubr.f32.mxu0 0.0
    %480 = vmatmul.mubr.f32.gmra.mrb[0].mxu0 %v388
    %v481 = vpop.f32.mrb[0].mxu0
    %v482 = vadd.f32 %v353, %v481
    %v483 = vpop.f32.mrb[0].mxu0
    %484 = vmatprep.mubr.f32.mxu0 0.0
    %485 = vmatmul.mubr.f32.gmra.mrb[0].mxu0 %v391
    %v486 = vpop.f32.mrb[0].mxu0
    %v487 = vadd.f32 %v358, %v486
    %v488 = vpop.f32.mrb[0].mxu0
    %489 = vmatprep.mubr.f32.mxu0 0.0
    %490 = vmatmul.mubr.f32.gmra.mrb[0].mxu0 %v394
    %v491 = vpop.f32.mrb[0].mxu0
    %v492 = vadd.f32 %v363, %v491
    %v493 = vpop.f32.mrb[0].mxu0
    %494 = vmatprep.mubr.f32.mxu0 0.0
    %495 = vmatmul.mubr.f32.gmra.mrb[0].mxu0 %v397
    %v496 = vpop.f32.mrb[0].mxu0
    %v497 = vadd.f32 %v368, %v496
    %v498 = vpop.f32.mrb[0].mxu0
    %499 = vmatprep.mubr.f32.mxu0 0.0
    %500 = vmatmul.mubr.f32.gmra.mrb[0].mxu0 %v400
    %v501 = vpop.f32.mrb[0].mxu0
    %v502 = vadd.f32 %v373, %v501
    %v503 = vpop.f32.mrb[0].mxu0
    %504 = vmatprep.mubr.f32.mxu0 0.0
    %505 = vmatmul.mubr.f32.gmra.mrb[0].mxu0 %v403
    %v506 = vpop.f32.mrb[0].mxu0
    %v507 = vadd.f32 %v378, %v506
    %v508 = vpop.f32.mrb[0].mxu0
    %509 = vdwg.mxu0
    %s510 = scalar_lea.vmem %s1, 16
    %v511 = vld [vmem:[%s510] sm:$0xff]
    %v513 = vsel %vm259, %v248, 0
    %v516 = vsel %vm259, %v249, 0
    %v519 = vsel %vm259, %v250, 0
    %v522 = vsel %vm259, %v251, 0
    %v525 = vsel %vm259, %v252, 0
    %v528 = vsel %vm259, %v253, 0
    %v531 = vsel %vm259, %v254, 0
    %v534 = vsel %vm259, %v255, 0
    %536 = vmatprep.subr.mxu0 0.0
    %537 = vmatpush1.msra.mxu0 %v511
    %538 = vmatprep.subr.mxu0 0.0
    %539 = vmatpush1.msra.mxu0 0.0
    %540 = vmatprep.subr.mxu0 0.0
    %541 = vmatpush1.msra.mxu0 0.0
    %542 = vmatprep.subr.mxu0 0.0
    %543 = vmatpush1.msra.mxu0 0.0
    %544 = vmatprep.subr.mxu0 0.0
    %545 = vmatpush1.msra.mxu0 0.0
    %546 = vmatprep.subr.mxu0 0.0
    %547 = vmatpush1.msra.mxu0 0.0
    %548 = vmatprep.subr.mxu0 0.0
    %549 = vmatpush1.msra.mxu0 0.0
    %550 = vmatprep.subr.mxu0 0.0
    %551 = vmatpush1.msra.mxu0 0.0
    %552 = vmatprep.subr.mxu0 0.0
    %553 = vmatpush1.msra.mxu0 0.0
    %554 = vmatprep.subr.mxu0 0.0
    %555 = vmatpush1.msra.mxu0 0.0
    %556 = vmatprep.subr.mxu0 0.0
    %557 = vmatpush1.msra.mxu0 0.0
    %558 = vmatprep.subr.mxu0 0.0
    %559 = vmatpush1.msra.mxu0 0.0
    %560 = vmatprep.subr.mxu0 0.0
    %561 = vmatpush1.msra.mxu0 0.0
    %562 = vmatprep.subr.mxu0 0.0
    %563 = vmatpush1.msra.mxu0 0.0
    %564 = vmatprep.subr.mxu0 0.0
    %565 = vmatpush1.msra.mxu0 0.0
    %566 = vmatprep.subr.mxu0 0.0
    %567 = vmatpush1.msra.mxu0 0.0
    %568 = vmatprep.subr.mxu0 0.0
    %569 = vmatpush1.msra.mxu0 0.0
    %570 = vmatprep.subr.mxu0 0.0
    %571 = vmatpush1.msra.mxu0 0.0
    %572 = vmatprep.subr.mxu0 0.0
    %573 = vmatpush1.msra.mxu0 0.0
    %574 = vmatprep.subr.mxu0 0.0
    %575 = vmatpush1.msra.mxu0 0.0
    %576 = vmatprep.subr.mxu0 0.0
    %577 = vmatpush1.msra.mxu0 0.0
    %578 = vmatprep.subr.mxu0 0.0
    %579 = vmatpush1.msra.mxu0 0.0
    %580 = vmatprep.subr.mxu0 0.0
    %581 = vmatpush1.msra.mxu0 0.0
    %582 = vmatprep.subr.mxu0 0.0
    %583 = vmatpush1.msra.mxu0 0.0
    %584 = vmatprep.subr.mxu0 0.0
    %585 = vmatpush1.msra.mxu0 0.0
    %586 = vmatprep.subr.mxu0 0.0
    %587 = vmatpush1.msra.mxu0 0.0
    %588 = vmatprep.subr.mxu0 0.0
    %589 = vmatpush1.msra.mxu0 0.0
    %590 = vmatprep.subr.mxu0 0.0
    %591 = vmatpush1.msra.mxu0 0.0
    %592 = vmatprep.subr.mxu0 0.0
    %593 = vmatpush1.msra.mxu0 0.0
    %594 = vmatprep.subr.mxu0 0.0
    %595 = vmatpush1.msra.mxu0 0.0
    %596 = vmatprep.subr.mxu0 0.0
    %597 = vmatpush1.msra.mxu0 0.0
    %598 = vmatprep.subr.mxu0 0.0
    %599 = vmatpush1.msra.mxu0 0.0
    %600 = vmatprep.mubr.f32.mxu0 0.0
    %601 = vmatmul.mubr.f32.gmra.mrb[0].mxu0 %v513
    %v602 = vpop.f32.mrb[0].mxu0
    %v603 = vadd.f32 0.0, %v602
    %v604 = vpop.f32.mrb[0].mxu0
    %605 = vmatprep.mubr.f32.mxu0 0.0
    %606 = vmatmul.mubr.f32.gmra.mrb[0].mxu0 %v516
    %v607 = vpop.f32.mrb[0].mxu0
    %v608 = vadd.f32 0.0, %v607
    %v609 = vpop.f32.mrb[0].mxu0
    %610 = vmatprep.mubr.f32.mxu0 0.0
    %611 = vmatmul.mubr.f32.gmra.mrb[0].mxu0 %v519
    %v612 = vpop.f32.mrb[0].mxu0
    %v613 = vadd.f32 0.0, %v612
    %v614 = vpop.f32.mrb[0].mxu0
    %615 = vmatprep.mubr.f32.mxu0 0.0
    %616 = vmatmul.mubr.f32.gmra.mrb[0].mxu0 %v522
    %v617 = vpop.f32.mrb[0].mxu0
    %v618 = vadd.f32 0.0, %v617
    %v619 = vpop.f32.mrb[0].mxu0
    %620 = vmatprep.mubr.f32.mxu0 0.0
    %621 = vmatmul.mubr.f32.gmra.mrb[0].mxu0 %v525
    %v622 = vpop.f32.mrb[0].mxu0
    %v623 = vadd.f32 0.0, %v622
    %v624 = vpop.f32.mrb[0].mxu0
    %625 = vmatprep.mubr.f32.mxu0 0.0
    %626 = vmatmul.mubr.f32.gmra.mrb[0].mxu0 %v528
    %v627 = vpop.f32.mrb[0].mxu0
    %v628 = vadd.f32 0.0, %v627
    %v629 = vpop.f32.mrb[0].mxu0
    %630 = vmatprep.mubr.f32.mxu0 0.0
    %631 = vmatmul.mubr.f32.gmra.mrb[0].mxu0 %v531
    %v632 = vpop.f32.mrb[0].mxu0
    %v633 = vadd.f32 0.0, %v632
    %v634 = vpop.f32.mrb[0].mxu0
    %635 = vmatprep.mubr.f32.mxu0 0.0
    %636 = vmatmul.mubr.f32.gmra.mrb[0].mxu0 %v534
    %v637 = vpop.f32.mrb[0].mxu0
    %v638 = vadd.f32 0.0, %v637
    %v639 = vpop.f32.mrb[0].mxu0
    %640 = vdwg.mxu0
    %v641 = vadd.f32 %v472, %v603
    %v642 = vadd.f32 %v477, %v608
    %v643 = vadd.f32 %v482, %v613
    %v644 = vadd.f32 %v487, %v618
    %v645 = vadd.f32 %v492, %v623
    %v646 = vadd.f32 %v497, %v628
    %v647 = vadd.f32 %v502, %v633
    %v648 = vadd.f32 %v507, %v638
    %v649 = vlaneseq
    %v650 = vshrl.u32 %v649, 7
    %v651 = vsub.s32 0, %v650
    %v652 = vrot.slane %v26, %v651
    %v653 = vadd.f32 %v641, %v652
    %v654 = vadd.f32 %v642, %v652
    %v655 = vadd.f32 %v643, %v652
    %v656 = vadd.f32 %v644, %v652
    %v657 = vadd.f32 %v645, %v652
    %v658 = vadd.f32 %v646, %v652
    %v659 = vadd.f32 %v647, %v652
    %v660 = vadd.f32 %v648, %v652
    %vm661 = vcmp.gt.f32.partialorder %v653, 0.0
    %vm662 = vcmp.gt.f32.partialorder %v654, 0.0
    %vm663 = vcmp.gt.f32.partialorder %v655, 0.0
    %vm664 = vcmp.gt.f32.partialorder %v656, 0.0
    %vm665 = vcmp.gt.f32.partialorder %v657, 0.0
    %vm666 = vcmp.gt.f32.partialorder %v658, 0.0
    %vm667 = vcmp.gt.f32.partialorder %v659, 0.0
    %vm668 = vcmp.gt.f32.partialorder %v660, 0.0
    %v669 = vmul.f32 %v653, 0.01
    %v670 = vmul.f32 %v654, 0.01
    %v671 = vmul.f32 %v655, 0.01
    %v672 = vmul.f32 %v656, 0.01
    %v673 = vmul.f32 %v657, 0.01
    %v674 = vmul.f32 %v658, 0.01
    %v675 = vmul.f32 %v659, 0.01
    %v676 = vmul.f32 %v660, 0.01
    %v677 = vsel %vm661, %v653, %v669
    %v678 = vsel %vm662, %v654, %v670
    %v679 = vsel %vm663, %v655, %v671
    %v680 = vsel %vm664, %v656, %v672
    %v681 = vsel %vm665, %v657, %v673
    %v682 = vsel %vm666, %v658, %v674
    %v683 = vsel %vm667, %v659, %v675
    %v684 = vsel %vm668, %v660, %v676
    %v686 = vrot.slane %v684, 7
    %v695 = vrot.slane %v677, 7
    %v696 = vrot.slane %v678, 7
    %v697 = vsel %vm158, %v695, %v696
    %v698 = vrot.slane %v679, 7
    %v699 = vsel %vm158, %v696, %v698
    %v700 = vrot.slane %v680, 7
    %v701 = vsel %vm158, %v698, %v700
    %v702 = vrot.slane %v681, 7
    %v703 = vsel %vm158, %v700, %v702
    %v704 = vrot.slane %v682, 7
    %v705 = vsel %vm158, %v702, %v704
    %v706 = vrot.slane %v683, 7
    %v707 = vsel %vm158, %v704, %v706
    %v708 = vsel %vm158, %v706, %v686
    %v717 = vsel %vm158, %v686, %v695
    %v718 = vsel %vm190, 0.0, %v717
    %v719 = vsel %vm191, 0.0, %v697
    %v720 = vsel %vm192, 0.0, %v699
    %v721 = vsel %vm193, 0.0, %v701
    %v722 = vsel %vm194, 0.0, %v703
    %v723 = vsel %vm195, 0.0, %v705
    %v724 = vsel %vm196, 0.0, %v707
    %v725 = vsel %vm197, 0.0, %v708
    %v726 = vrot.slane %v677, 1
    %v727 = vrot.slane %v678, 1
    %v728 = vsel %vm206, %v726, %v727
    %v729 = vrot.slane %v679, 1
    %v730 = vsel %vm206, %v727, %v729
    %v731 = vrot.slane %v680, 1
    %v732 = vsel %vm206, %v729, %v731
    %v733 = vrot.slane %v681, 1
    %v734 = vsel %vm206, %v731, %v733
    %v735 = vrot.slane %v682, 1
    %v736 = vsel %vm206, %v733, %v735
    %v737 = vrot.slane %v683, 1
    %v738 = vsel %vm206, %v735, %v737
    %v739 = vrot.slane %v684, 1
    %v740 = vsel %vm206, %v737, %v739
    %v750 = vsel %vm206, %v739, %v726
    %v751 = vsel %vm240, 0.0, %v728
    %v752 = vsel %vm241, 0.0, %v730
    %v753 = vsel %vm242, 0.0, %v732
    %v754 = vsel %vm243, 0.0, %v734
    %v755 = vsel %vm244, 0.0, %v736
    %v756 = vsel %vm245, 0.0, %v738
    %v757 = vsel %vm246, 0.0, %v740
    %v758 = vsel %vm247, 0.0, %v750
    %s759 = scalar_lea.vmem %s1, 24
    %v760 = vld [vmem:[%s759] sm:$0xff]
    %s761 = scalar_lea.vmem %s1, 32
    %v762 = vld [vmem:[%s761] sm:$0xff]
    %v763 = vsel %vm259, %v677, 0
    %v765 = vsel %vm259, %v678, 0
    %v767 = vsel %vm259, %v679, 0
    %v769 = vsel %vm259, %v680, 0
    %v771 = vsel %vm259, %v681, 0
    %v773 = vsel %vm259, %v682, 0
    %v775 = vsel %vm259, %v683, 0
    %v777 = vsel %vm259, %v684, 0
    %779 = vmatprep.subr.mxu0 0.0
    %780 = vmatpush1.msra.mxu0 %v762
    %781 = vmatprep.subr.mxu0 0.0
    %782 = vmatpush1.msra.mxu0 0.0
    %783 = vmatprep.subr.mxu0 0.0
    %784 = vmatpush1.msra.mxu0 0.0
    %785 = vmatprep.subr.mxu0 0.0
    %786 = vmatpush1.msra.mxu0 0.0
    %787 = vmatprep.subr.mxu0 0.0
    %788 = vmatpush1.msra.mxu0 0.0
    %789 = vmatprep.subr.mxu0 0.0
    %790 = vmatpush1.msra.mxu0 0.0
    %791 = vmatprep.subr.mxu0 0.0
    %792 = vmatpush1.msra.mxu0 0.0
    %793 = vmatprep.subr.mxu0 0.0
    %794 = vmatpush1.msra.mxu0 0.0
    %795 = vmatprep.subr.mxu0 0.0
    %796 = vmatpush1.msra.mxu0 0.0
    %797 = vmatprep.subr.mxu0 0.0
    %798 = vmatpush1.msra.mxu0 0.0
    %799 = vmatprep.subr.mxu0 0.0
    %800 = vmatpush1.msra.mxu0 0.0
    %801 = vmatprep.subr.mxu0 0.0
    %802 = vmatpush1.msra.mxu0 0.0
    %803 = vmatprep.subr.mxu0 0.0
    %804 = vmatpush1.msra.mxu0 0.0
    %805 = vmatprep.subr.mxu0 0.0
    %806 = vmatpush1.msra.mxu0 0.0
    %807 = vmatprep.subr.mxu0 0.0
    %808 = vmatpush1.msra.mxu0 0.0
    %809 = vmatprep.subr.mxu0 0.0
    %810 = vmatpush1.msra.mxu0 0.0
    %811 = vmatprep.subr.mxu0 0.0
    %812 = vmatpush1.msra.mxu0 0.0
    %813 = vmatprep.subr.mxu0 0.0
    %814 = vmatpush1.msra.mxu0 0.0
    %815 = vmatprep.subr.mxu0 0.0
    %816 = vmatpush1.msra.mxu0 0.0
    %817 = vmatprep.subr.mxu0 0.0
    %818 = vmatpush1.msra.mxu0 0.0
    %819 = vmatprep.subr.mxu0 0.0
    %820 = vmatpush1.msra.mxu0 0.0
    %821 = vmatprep.subr.mxu0 0.0
    %822 = vmatpush1.msra.mxu0 0.0
    %823 = vmatprep.subr.mxu0 0.0
    %824 = vmatpush1.msra.mxu0 0.0
    %825 = vmatprep.subr.mxu0 0.0
    %826 = vmatpush1.msra.mxu0 0.0
    %827 = vmatprep.subr.mxu0 0.0
    %828 = vmatpush1.msra.mxu0 0.0
    %829 = vmatprep.subr.mxu0 0.0
    %830 = vmatpush1.msra.mxu0 0.0
    %831 = vmatprep.subr.mxu0 0.0
    %832 = vmatpush1.msra.mxu0 0.0
    %833 = vmatprep.subr.mxu0 0.0
    %834 = vmatpush1.msra.mxu0 0.0
    %835 = vmatprep.subr.mxu0 0.0
    %836 = vmatpush1.msra.mxu0 0.0
    %837 = vmatprep.subr.mxu0 0.0
    %838 = vmatpush1.msra.mxu0 0.0
    %839 = vmatprep.subr.mxu0 0.0
    %840 = vmatpush1.msra.mxu0 0.0
    %841 = vmatprep.subr.mxu0 0.0
    %842 = vmatpush1.msra.mxu0 0.0
    %843 = vmatprep.mubr.f32.mxu0 0.0
    %844 = vmatmul.mubr.f32.gmra.mrb[0].mxu0 %v763
    %v845 = vpop.f32.mrb[0].mxu0
    %v846 = vadd.f32 0.0, %v845
    %v847 = vpop.f32.mrb[0].mxu0
    %848 = vmatprep.mubr.f32.mxu0 0.0
    %849 = vmatmul.mubr.f32.gmra.mrb[0].mxu0 %v765
    %v850 = vpop.f32.mrb[0].mxu0
    %v851 = vadd.f32 0.0, %v850
    %v852 = vpop.f32.mrb[0].mxu0
    %853 = vmatprep.mubr.f32.mxu0 0.0
    %854 = vmatmul.mubr.f32.gmra.mrb[0].mxu0 %v767
    %v855 = vpop.f32.mrb[0].mxu0
    %v856 = vadd.f32 0.0, %v855
    %v857 = vpop.f32.mrb[0].mxu0
    %858 = vmatprep.mubr.f32.mxu0 0.0
    %859 = vmatmul.mubr.f32.gmra.mrb[0].mxu0 %v769
    %v860 = vpop.f32.mrb[0].mxu0
    %v861 = vadd.f32 0.0, %v860
    %v862 = vpop.f32.mrb[0].mxu0
    %863 = vmatprep.mubr.f32.mxu0 0.0
    %864 = vmatmul.mubr.f32.gmra.mrb[0].mxu0 %v771
    %v865 = vpop.f32.mrb[0].mxu0
    %v866 = vadd.f32 0.0, %v865
    %v867 = vpop.f32.mrb[0].mxu0
    %868 = vmatprep.mubr.f32.mxu0 0.0
    %869 = vmatmul.mubr.f32.gmra.mrb[0].mxu0 %v773
    %v870 = vpop.f32.mrb[0].mxu0
    %v871 = vadd.f32 0.0, %v870
    %v872 = vpop.f32.mrb[0].mxu0
    %873 = vmatprep.mubr.f32.mxu0 0.0
    %874 = vmatmul.mubr.f32.gmra.mrb[0].mxu0 %v775
    %v875 = vpop.f32.mrb[0].mxu0
    %v876 = vadd.f32 0.0, %v875
    %v877 = vpop.f32.mrb[0].mxu0
    %878 = vmatprep.mubr.f32.mxu0 0.0
    %879 = vmatmul.mubr.f32.gmra.mrb[0].mxu0 %v777
    %v880 = vpop.f32.mrb[0].mxu0
    %v881 = vadd.f32 0.0, %v880
    %v882 = vpop.f32.mrb[0].mxu0
    %883 = vdwg.mxu0
    %v885 = vsel %vm259, %v718, 0
    %v888 = vsel %vm259, %v719, 0
    %v891 = vsel %vm259, %v720, 0
    %v894 = vsel %vm259, %v721, 0
    %v897 = vsel %vm259, %v722, 0
    %v900 = vsel %vm259, %v723, 0
    %v903 = vsel %vm259, %v724, 0
    %v906 = vsel %vm259, %v725, 0
    %908 = vmatprep.subr.mxu0 0.0
    %909 = vmatpush1.msra.mxu0 %v760
    %910 = vmatprep.subr.mxu0 0.0
    %911 = vmatpush1.msra.mxu0 0.0
    %912 = vmatprep.subr.mxu0 0.0
    %913 = vmatpush1.msra.mxu0 0.0
    %914 = vmatprep.subr.mxu0 0.0
    %915 = vmatpush1.msra.mxu0 0.0
    %916 = vmatprep.subr.mxu0 0.0
    %917 = vmatpush1.msra.mxu0 0.0
    %918 = vmatprep.subr.mxu0 0.0
    %919 = vmatpush1.msra.mxu0 0.0
    %920 = vmatprep.subr.mxu0 0.0
    %921 = vmatpush1.msra.mxu0 0.0
    %922 = vmatprep.subr.mxu0 0.0
    %923 = vmatpush1.msra.mxu0 0.0
    %924 = vmatprep.subr.mxu0 0.0
    %925 = vmatpush1.msra.mxu0 0.0
    %926 = vmatprep.subr.mxu0 0.0
    %927 = vmatpush1.msra.mxu0 0.0
    %928 = vmatprep.subr.mxu0 0.0
    %929 = vmatpush1.msra.mxu0 0.0
    %930 = vmatprep.subr.mxu0 0.0
    %931 = vmatpush1.msra.mxu0 0.0
    %932 = vmatprep.subr.mxu0 0.0
    %933 = vmatpush1.msra.mxu0 0.0
    %934 = vmatprep.subr.mxu0 0.0
    %935 = vmatpush1.msra.mxu0 0.0
    %936 = vmatprep.subr.mxu0 0.0
    %937 = vmatpush1.msra.mxu0 0.0
    %938 = vmatprep.subr.mxu0 0.0
    %939 = vmatpush1.msra.mxu0 0.0
    %940 = vmatprep.subr.mxu0 0.0
    %941 = vmatpush1.msra.mxu0 0.0
    %942 = vmatprep.subr.mxu0 0.0
    %943 = vmatpush1.msra.mxu0 0.0
    %944 = vmatprep.subr.mxu0 0.0
    %945 = vmatpush1.msra.mxu0 0.0
    %946 = vmatprep.subr.mxu0 0.0
    %947 = vmatpush1.msra.mxu0 0.0
    %948 = vmatprep.subr.mxu0 0.0
    %949 = vmatpush1.msra.mxu0 0.0
    %950 = vmatprep.subr.mxu0 0.0
    %951 = vmatpush1.msra.mxu0 0.0
    %952 = vmatprep.subr.mxu0 0.0
    %953 = vmatpush1.msra.mxu0 0.0
    %954 = vmatprep.subr.mxu0 0.0
    %955 = vmatpush1.msra.mxu0 0.0
    %956 = vmatprep.subr.mxu0 0.0
    %957 = vmatpush1.msra.mxu0 0.0
    %958 = vmatprep.subr.mxu0 0.0
    %959 = vmatpush1.msra.mxu0 0.0
    %960 = vmatprep.subr.mxu0 0.0
    %961 = vmatpush1.msra.mxu0 0.0
    %962 = vmatprep.subr.mxu0 0.0
    %963 = vmatpush1.msra.mxu0 0.0
    %964 = vmatprep.subr.mxu0 0.0
    %965 = vmatpush1.msra.mxu0 0.0
    %966 = vmatprep.subr.mxu0 0.0
    %967 = vmatpush1.msra.mxu0 0.0
    %968 = vmatprep.subr.mxu0 0.0
    %969 = vmatpush1.msra.mxu0 0.0
    %970 = vmatprep.subr.mxu0 0.0
    %971 = vmatpush1.msra.mxu0 0.0
    %972 = vmatprep.mubr.f32.mxu0 0.0
    %973 = vmatmul.mubr.f32.gmra.mrb[0].mxu0 %v885
    %v974 = vpop.f32.mrb[0].mxu0
    %v975 = vadd.f32 %v846, %v974
    %v976 = vpop.f32.mrb[0].mxu0
    %977 = vmatprep.mubr.f32.mxu0 0.0
    %978 = vmatmul.mubr.f32.gmra.mrb[0].mxu0 %v888
    %v979 = vpop.f32.mrb[0].mxu0
    %v980 = vadd.f32 %v851, %v979
    %v981 = vpop.f32.mrb[0].mxu0
    %982 = vmatprep.mubr.f32.mxu0 0.0
    %983 = vmatmul.mubr.f32.gmra.mrb[0].mxu0 %v891
    %v984 = vpop.f32.mrb[0].mxu0
    %v985 = vadd.f32 %v856, %v984
    %v986 = vpop.f32.mrb[0].mxu0
    %987 = vmatprep.mubr.f32.mxu0 0.0
    %988 = vmatmul.mubr.f32.gmra.mrb[0].mxu0 %v894
    %v989 = vpop.f32.mrb[0].mxu0
    %v990 = vadd.f32 %v861, %v989
    %v991 = vpop.f32.mrb[0].mxu0
    %992 = vmatprep.mubr.f32.mxu0 0.0
    %993 = vmatmul.mubr.f32.gmra.mrb[0].mxu0 %v897
    %v994 = vpop.f32.mrb[0].mxu0
    %v995 = vadd.f32 %v866, %v994
    %v996 = vpop.f32.mrb[0].mxu0
    %997 = vmatprep.mubr.f32.mxu0 0.0
    %998 = vmatmul.mubr.f32.gmra.mrb[0].mxu0 %v900
    %v999 = vpop.f32.mrb[0].mxu0
    %v1000 = vadd.f32 %v871, %v999
    %v1001 = vpop.f32.mrb[0].mxu0
    %1002 = vmatprep.mubr.f32.mxu0 0.0
    %1003 = vmatmul.mubr.f32.gmra.mrb[0].mxu0 %v903
    %v1004 = vpop.f32.mrb[0].mxu0
    %v1005 = vadd.f32 %v876, %v1004
    %v1006 = vpop.f32.mrb[0].mxu0
    %1007 = vmatprep.mubr.f32.mxu0 0.0
    %1008 = vmatmul.mubr.f32.gmra.mrb[0].mxu0 %v906
    %v1009 = vpop.f32.mrb[0].mxu0
    %v1010 = vadd.f32 %v881, %v1009
    %v1011 = vpop.f32.mrb[0].mxu0
    %1012 = vdwg.mxu0
    %s1013 = scalar_lea.vmem %s1, 40
    %v1014 = vld [vmem:[%s1013] sm:$0xff]
    %v1016 = vsel %vm259, %v751, 0
    %v1019 = vsel %vm259, %v752, 0
    %v1022 = vsel %vm259, %v753, 0
    %v1025 = vsel %vm259, %v754, 0
    %v1028 = vsel %vm259, %v755, 0
    %v1031 = vsel %vm259, %v756, 0
    %v1034 = vsel %vm259, %v757, 0
    %v1037 = vsel %vm259, %v758, 0
    %1039 = vmatprep.subr.mxu0 0.0
    %1040 = vmatpush1.msra.mxu0 %v1014
    %1041 = vmatprep.subr.mxu0 0.0
    %1042 = vmatpush1.msra.mxu0 0.0
    %1043 = vmatprep.subr.mxu0 0.0
    %1044 = vmatpush1.msra.mxu0 0.0
    %1045 = vmatprep.subr.mxu0 0.0
    %1046 = vmatpush1.msra.mxu0 0.0
    %1047 = vmatprep.subr.mxu0 0.0
    %1048 = vmatpush1.msra.mxu0 0.0
    %1049 = vmatprep.subr.mxu0 0.0
    %1050 = vmatpush1.msra.mxu0 0.0
    %1051 = vmatprep.subr.mxu0 0.0
    %1052 = vmatpush1.msra.mxu0 0.0
    %1053 = vmatprep.subr.mxu0 0.0
    %1054 = vmatpush1.msra.mxu0 0.0
    %1055 = vmatprep.subr.mxu0 0.0
    %1056 = vmatpush1.msra.mxu0 0.0
    %1057 = vmatprep.subr.mxu0 0.0
    %1058 = vmatpush1.msra.mxu0 0.0
    %1059 = vmatprep.subr.mxu0 0.0
    %1060 = vmatpush1.msra.mxu0 0.0
    %1061 = vmatprep.subr.mxu0 0.0
    %1062 = vmatpush1.msra.mxu0 0.0
    %1063 = vmatprep.subr.mxu0 0.0
    %1064 = vmatpush1.msra.mxu0 0.0
    %1065 = vmatprep.subr.mxu0 0.0
    %1066 = vmatpush1.msra.mxu0 0.0
    %1067 = vmatprep.subr.mxu0 0.0
    %1068 = vmatpush1.msra.mxu0 0.0
    %1069 = vmatprep.subr.mxu0 0.0
    %1070 = vmatpush1.msra.mxu0 0.0
    %1071 = vmatprep.subr.mxu0 0.0
    %1072 = vmatpush1.msra.mxu0 0.0
    %1073 = vmatprep.subr.mxu0 0.0
    %1074 = vmatpush1.msra.mxu0 0.0
    %1075 = vmatprep.subr.mxu0 0.0
    %1076 = vmatpush1.msra.mxu0 0.0
    %1077 = vmatprep.subr.mxu0 0.0
    %1078 = vmatpush1.msra.mxu0 0.0
    %1079 = vmatprep.subr.mxu0 0.0
    %1080 = vmatpush1.msra.mxu0 0.0
    %1081 = vmatprep.subr.mxu0 0.0
    %1082 = vmatpush1.msra.mxu0 0.0
    %1083 = vmatprep.subr.mxu0 0.0
    %1084 = vmatpush1.msra.mxu0 0.0
    %1085 = vmatprep.subr.mxu0 0.0
    %1086 = vmatpush1.msra.mxu0 0.0
    %1087 = vmatprep.subr.mxu0 0.0
    %1088 = vmatpush1.msra.mxu0 0.0
    %1089 = vmatprep.subr.mxu0 0.0
    %1090 = vmatpush1.msra.mxu0 0.0
    %1091 = vmatprep.subr.mxu0 0.0
    %1092 = vmatpush1.msra.mxu0 0.0
    %1093 = vmatprep.subr.mxu0 0.0
    %1094 = vmatpush1.msra.mxu0 0.0
    %1095 = vmatprep.subr.mxu0 0.0
    %1096 = vmatpush1.msra.mxu0 0.0
    %1097 = vmatprep.subr.mxu0 0.0
    %1098 = vmatpush1.msra.mxu0 0.0
    %1099 = vmatprep.subr.mxu0 0.0
    %1100 = vmatpush1.msra.mxu0 0.0
    %1101 = vmatprep.subr.mxu0 0.0
    %1102 = vmatpush1.msra.mxu0 0.0
    %1103 = vmatprep.mubr.f32.mxu0 0.0
    %1104 = vmatmul.mubr.f32.gmra.mrb[0].mxu0 %v1016
    %v1105 = vpop.f32.mrb[0].mxu0
    %v1106 = vadd.f32 0.0, %v1105
    %v1107 = vpop.f32.mrb[0].mxu0
    %1108 = vmatprep.mubr.f32.mxu0 0.0
    %1109 = vmatmul.mubr.f32.gmra.mrb[0].mxu0 %v1019
    %v1110 = vpop.f32.mrb[0].mxu0
    %v1111 = vadd.f32 0.0, %v1110
    %v1112 = vpop.f32.mrb[0].mxu0
    %1113 = vmatprep.mubr.f32.mxu0 0.0
    %1114 = vmatmul.mubr.f32.gmra.mrb[0].mxu0 %v1022
    %v1115 = vpop.f32.mrb[0].mxu0
    %v1116 = vadd.f32 0.0, %v1115
    %v1117 = vpop.f32.mrb[0].mxu0
    %1118 = vmatprep.mubr.f32.mxu0 0.0
    %1119 = vmatmul.mubr.f32.gmra.mrb[0].mxu0 %v1025
    %v1120 = vpop.f32.mrb[0].mxu0
    %v1121 = vadd.f32 0.0, %v1120
    %v1122 = vpop.f32.mrb[0].mxu0
    %1123 = vmatprep.mubr.f32.mxu0 0.0
    %1124 = vmatmul.mubr.f32.gmra.mrb[0].mxu0 %v1028
    %v1125 = vpop.f32.mrb[0].mxu0
    %v1126 = vadd.f32 0.0, %v1125
    %v1127 = vpop.f32.mrb[0].mxu0
    %1128 = vmatprep.mubr.f32.mxu0 0.0
    %1129 = vmatmul.mubr.f32.gmra.mrb[0].mxu0 %v1031
    %v1130 = vpop.f32.mrb[0].mxu0
    %v1131 = vadd.f32 0.0, %v1130
    %v1132 = vpop.f32.mrb[0].mxu0
    %1133 = vmatprep.mubr.f32.mxu0 0.0
    %1134 = vmatmul.mubr.f32.gmra.mrb[0].mxu0 %v1034
    %v1135 = vpop.f32.mrb[0].mxu0
    %v1136 = vadd.f32 0.0, %v1135
    %v1137 = vpop.f32.mrb[0].mxu0
    %1138 = vmatprep.mubr.f32.mxu0 0.0
    %1139 = vmatmul.mubr.f32.gmra.mrb[0].mxu0 %v1037
    %v1140 = vpop.f32.mrb[0].mxu0
    %v1141 = vadd.f32 0.0, %v1140
    %v1142 = vpop.f32.mrb[0].mxu0
    %1143 = vdwg.mxu0
    %v1144 = vadd.f32 %v975, %v1106
    %v1145 = vadd.f32 %v980, %v1111
    %v1146 = vadd.f32 %v985, %v1116
    %v1147 = vadd.f32 %v990, %v1121
    %v1148 = vadd.f32 %v995, %v1126
    %v1149 = vadd.f32 %v1000, %v1131
    %v1150 = vadd.f32 %v1005, %v1136
    %v1151 = vadd.f32 %v1010, %v1141
    %v1152 = vlaneseq
    %v1153 = vshrl.u32 %v1152, 7
    %v1154 = vsub.s32 1, %v1153
    %v1155 = vrot.slane %v26, %v1154
    %v1156 = vadd.f32 %v1144, %v1155
    %v1157 = vadd.f32 %v1145, %v1155
    %v1158 = vadd.f32 %v1146, %v1155
    %v1159 = vadd.f32 %v1147, %v1155
    %v1160 = vadd.f32 %v1148, %v1155
    %v1161 = vadd.f32 %v1149, %v1155
    %v1162 = vadd.f32 %v1150, %v1155
    %v1163 = vadd.f32 %v1151, %v1155
    %vm1164 = vcmp.gt.f32.partialorder %v1156, 0.0
    %vm1165 = vcmp.gt.f32.partialorder %v1157, 0.0
    %vm1166 = vcmp.gt.f32.partialorder %v1158, 0.0
    %vm1167 = vcmp.gt.f32.partialorder %v1159, 0.0
    %vm1168 = vcmp.gt.f32.partialorder %v1160, 0.0
    %vm1169 = vcmp.gt.f32.partialorder %v1161, 0.0
    %vm1170 = vcmp.gt.f32.partialorder %v1162, 0.0
    %vm1171 = vcmp.gt.f32.partialorder %v1163, 0.0
    %v1172 = vmul.f32 %v1156, 0.01
    %v1173 = vmul.f32 %v1157, 0.01
    %v1174 = vmul.f32 %v1158, 0.01
    %v1175 = vmul.f32 %v1159, 0.01
    %v1176 = vmul.f32 %v1160, 0.01
    %v1177 = vmul.f32 %v1161, 0.01
    %v1178 = vmul.f32 %v1162, 0.01
    %v1179 = vmul.f32 %v1163, 0.01
    %v1180 = vsel %vm1164, %v1156, %v1172
    %v1181 = vsel %vm1165, %v1157, %v1173
    %v1182 = vsel %vm1166, %v1158, %v1174
    %v1183 = vsel %vm1167, %v1159, %v1175
    %v1184 = vsel %vm1168, %v1160, %v1176
    %v1185 = vsel %vm1169, %v1161, %v1177
    %v1186 = vsel %vm1170, %v1162, %v1178
    %v1187 = vsel %vm1171, %v1163, %v1179
    %v1189 = vrot.slane %v1187, 7
    %v1198 = vrot.slane %v1180, 7
    %v1199 = vrot.slane %v1181, 7
    %v1200 = vsel %vm158, %v1198, %v1199
    %v1201 = vrot.slane %v1182, 7
    %v1202 = vsel %vm158, %v1199, %v1201
    %v1203 = vrot.slane %v1183, 7
    %v1204 = vsel %vm158, %v1201, %v1203
    %v1205 = vrot.slane %v1184, 7
    %v1206 = vsel %vm158, %v1203, %v1205
    %v1207 = vrot.slane %v1185, 7
    %v1208 = vsel %vm158, %v1205, %v1207
    %v1209 = vrot.slane %v1186, 7
    %v1210 = vsel %vm158, %v1207, %v1209
    %v1211 = vsel %vm158, %v1209, %v1189
    %v1220 = vsel %vm158, %v1189, %v1198
    %v1221 = vsel %vm190, 0.0, %v1220
    %v1222 = vsel %vm191, 0.0, %v1200
    %v1223 = vsel %vm192, 0.0, %v1202
    %v1224 = vsel %vm193, 0.0, %v1204
    %v1225 = vsel %vm194, 0.0, %v1206
    %v1226 = vsel %vm195, 0.0, %v1208
    %v1227 = vsel %vm196, 0.0, %v1210
    %v1228 = vsel %vm197, 0.0, %v1211
    %v1229 = vrot.slane %v1180, 1
    %v1230 = vrot.slane %v1181, 1
    %v1231 = vsel %vm206, %v1229, %v1230
    %v1232 = vrot.slane %v1182, 1
    %v1233 = vsel %vm206, %v1230, %v1232
    %v1234 = vrot.slane %v1183, 1
    %v1235 = vsel %vm206, %v1232, %v1234
    %v1236 = vrot.slane %v1184, 1
    %v1237 = vsel %vm206, %v1234, %v1236
    %v1238 = vrot.slane %v1185, 1
    %v1239 = vsel %vm206, %v1236, %v1238
    %v1240 = vrot.slane %v1186, 1
    %v1241 = vsel %vm206, %v1238, %v1240
    %v1242 = vrot.slane %v1187, 1
    %v1243 = vsel %vm206, %v1240, %v1242
    %v1253 = vsel %vm206, %v1242, %v1229
    %v1254 = vsel %vm240, 0.0, %v1231
    %v1255 = vsel %vm241, 0.0, %v1233
    %v1256 = vsel %vm242, 0.0, %v1235
    %v1257 = vsel %vm243, 0.0, %v1237
    %v1258 = vsel %vm244, 0.0, %v1239
    %v1259 = vsel %vm245, 0.0, %v1241
    %v1260 = vsel %vm246, 0.0, %v1243
    %v1261 = vsel %vm247, 0.0, %v1253
    %s1262 = scalar_lea.vmem %s1, 48
    %v1263 = vld [vmem:[%s1262] sm:$0xff]
    %s1264 = scalar_lea.vmem %s1, 56
    %v1265 = vld [vmem:[%s1264] sm:$0xff]
    %v1266 = vsel %vm259, %v1180, 0
    %v1268 = vsel %vm259, %v1181, 0
    %v1270 = vsel %vm259, %v1182, 0
    %v1272 = vsel %vm259, %v1183, 0
    %v1274 = vsel %vm259, %v1184, 0
    %v1276 = vsel %vm259, %v1185, 0
    %v1278 = vsel %vm259, %v1186, 0
    %v1280 = vsel %vm259, %v1187, 0
    %1282 = vmatprep.subr.mxu0 0.0
    %1283 = vmatpush1.msra.mxu0 %v1265
    %1284 = vmatprep.subr.mxu0 0.0
    %1285 = vmatpush1.msra.mxu0 0.0
    %1286 = vmatprep.subr.mxu0 0.0
    %1287 = vmatpush1.msra.mxu0 0.0
    %1288 = vmatprep.subr.mxu0 0.0
    %1289 = vmatpush1.msra.mxu0 0.0
    %1290 = vmatprep.subr.mxu0 0.0
    %1291 = vmatpush1.msra.mxu0 0.0
    %1292 = vmatprep.subr.mxu0 0.0
    %1293 = vmatpush1.msra.mxu0 0.0
    %1294 = vmatprep.subr.mxu0 0.0
    %1295 = vmatpush1.msra.mxu0 0.0
    %1296 = vmatprep.subr.mxu0 0.0
    %1297 = vmatpush1.msra.mxu0 0.0
    %1298 = vmatprep.subr.mxu0 0.0
    %1299 = vmatpush1.msra.mxu0 0.0
    %1300 = vmatprep.subr.mxu0 0.0
    %1301 = vmatpush1.msra.mxu0 0.0
    %1302 = vmatprep.subr.mxu0 0.0
    %1303 = vmatpush1.msra.mxu0 0.0
    %1304 = vmatprep.subr.mxu0 0.0
    %1305 = vmatpush1.msra.mxu0 0.0
    %1306 = vmatprep.subr.mxu0 0.0
    %1307 = vmatpush1.msra.mxu0 0.0
    %1308 = vmatprep.subr.mxu0 0.0
    %1309 = vmatpush1.msra.mxu0 0.0
    %1310 = vmatprep.subr.mxu0 0.0
    %1311 = vmatpush1.msra.mxu0 0.0
    %1312 = vmatprep.subr.mxu0 0.0
    %1313 = vmatpush1.msra.mxu0 0.0
    %1314 = vmatprep.subr.mxu0 0.0
    %1315 = vmatpush1.msra.mxu0 0.0
    %1316 = vmatprep.subr.mxu0 0.0
    %1317 = vmatpush1.msra.mxu0 0.0
    %1318 = vmatprep.subr.mxu0 0.0
    %1319 = vmatpush1.msra.mxu0 0.0
    %1320 = vmatprep.subr.mxu0 0.0
    %1321 = vmatpush1.msra.mxu0 0.0
    %1322 = vmatprep.subr.mxu0 0.0
    %1323 = vmatpush1.msra.mxu0 0.0
    %1324 = vmatprep.subr.mxu0 0.0
    %1325 = vmatpush1.msra.mxu0 0.0
    %1326 = vmatprep.subr.mxu0 0.0
    %1327 = vmatpush1.msra.mxu0 0.0
    %1328 = vmatprep.subr.mxu0 0.0
    %1329 = vmatpush1.msra.mxu0 0.0
    %1330 = vmatprep.subr.mxu0 0.0
    %1331 = vmatpush1.msra.mxu0 0.0
    %1332 = vmatprep.subr.mxu0 0.0
    %1333 = vmatpush1.msra.mxu0 0.0
    %1334 = vmatprep.subr.mxu0 0.0
    %1335 = vmatpush1.msra.mxu0 0.0
    %1336 = vmatprep.subr.mxu0 0.0
    %1337 = vmatpush1.msra.mxu0 0.0
    %1338 = vmatprep.subr.mxu0 0.0
    %1339 = vmatpush1.msra.mxu0 0.0
    %1340 = vmatprep.subr.mxu0 0.0
    %1341 = vmatpush1.msra.mxu0 0.0
    %1342 = vmatprep.subr.mxu0 0.0
    %1343 = vmatpush1.msra.mxu0 0.0
    %1344 = vmatprep.subr.mxu0 0.0
    %1345 = vmatpush1.msra.mxu0 0.0
    %1346 = vmatprep.mubr.f32.mxu0 0.0
    %1347 = vmatmul.mubr.f32.gmra.mrb[0].mxu0 %v1266
    %v1348 = vpop.f32.mrb[0].mxu0
    %v1349 = vadd.f32 0.0, %v1348
    %v1350 = vpop.f32.mrb[0].mxu0
    %1351 = vmatprep.mubr.f32.mxu0 0.0
    %1352 = vmatmul.mubr.f32.gmra.mrb[0].mxu0 %v1268
    %v1353 = vpop.f32.mrb[0].mxu0
    %v1354 = vadd.f32 0.0, %v1353
    %v1355 = vpop.f32.mrb[0].mxu0
    %1356 = vmatprep.mubr.f32.mxu0 0.0
    %1357 = vmatmul.mubr.f32.gmra.mrb[0].mxu0 %v1270
    %v1358 = vpop.f32.mrb[0].mxu0
    %v1359 = vadd.f32 0.0, %v1358
    %v1360 = vpop.f32.mrb[0].mxu0
    %1361 = vmatprep.mubr.f32.mxu0 0.0
    %1362 = vmatmul.mubr.f32.gmra.mrb[0].mxu0 %v1272
    %v1363 = vpop.f32.mrb[0].mxu0
    %v1364 = vadd.f32 0.0, %v1363
    %v1365 = vpop.f32.mrb[0].mxu0
    %1366 = vmatprep.mubr.f32.mxu0 0.0
    %1367 = vmatmul.mubr.f32.gmra.mrb[0].mxu0 %v1274
    %v1368 = vpop.f32.mrb[0].mxu0
    %v1369 = vadd.f32 0.0, %v1368
    %v1370 = vpop.f32.mrb[0].mxu0
    %1371 = vmatprep.mubr.f32.mxu0 0.0
    %1372 = vmatmul.mubr.f32.gmra.mrb[0].mxu0 %v1276
    %v1373 = vpop.f32.mrb[0].mxu0
    %v1374 = vadd.f32 0.0, %v1373
    %v1375 = vpop.f32.mrb[0].mxu0
    %1376 = vmatprep.mubr.f32.mxu0 0.0
    %1377 = vmatmul.mubr.f32.gmra.mrb[0].mxu0 %v1278
    %v1378 = vpop.f32.mrb[0].mxu0
    %v1379 = vadd.f32 0.0, %v1378
    %v1380 = vpop.f32.mrb[0].mxu0
    %1381 = vmatprep.mubr.f32.mxu0 0.0
    %1382 = vmatmul.mubr.f32.gmra.mrb[0].mxu0 %v1280
    %v1383 = vpop.f32.mrb[0].mxu0
    %v1384 = vadd.f32 0.0, %v1383
    %v1385 = vpop.f32.mrb[0].mxu0
    %1386 = vdwg.mxu0
    %v1388 = vsel %vm259, %v1221, 0
    %v1391 = vsel %vm259, %v1222, 0
    %v1394 = vsel %vm259, %v1223, 0
    %v1397 = vsel %vm259, %v1224, 0
    %v1400 = vsel %vm259, %v1225, 0
    %v1403 = vsel %vm259, %v1226, 0
    %v1406 = vsel %vm259, %v1227, 0
    %v1409 = vsel %vm259, %v1228, 0
    %1411 = vmatprep.subr.mxu0 0.0
    %1412 = vmatpush1.msra.mxu0 %v1263
    %1413 = vmatprep.subr.mxu0 0.0
    %1414 = vmatpush1.msra.mxu0 0.0
    %1415 = vmatprep.subr.mxu0 0.0
    %1416 = vmatpush1.msra.mxu0 0.0
    %1417 = vmatprep.subr.mxu0 0.0
    %1418 = vmatpush1.msra.mxu0 0.0
    %1419 = vmatprep.subr.mxu0 0.0
    %1420 = vmatpush1.msra.mxu0 0.0
    %1421 = vmatprep.subr.mxu0 0.0
    %1422 = vmatpush1.msra.mxu0 0.0
    %1423 = vmatprep.subr.mxu0 0.0
    %1424 = vmatpush1.msra.mxu0 0.0
    %1425 = vmatprep.subr.mxu0 0.0
    %1426 = vmatpush1.msra.mxu0 0.0
    %1427 = vmatprep.subr.mxu0 0.0
    %1428 = vmatpush1.msra.mxu0 0.0
    %1429 = vmatprep.subr.mxu0 0.0
    %1430 = vmatpush1.msra.mxu0 0.0
    %1431 = vmatprep.subr.mxu0 0.0
    %1432 = vmatpush1.msra.mxu0 0.0
    %1433 = vmatprep.subr.mxu0 0.0
    %1434 = vmatpush1.msra.mxu0 0.0
    %1435 = vmatprep.subr.mxu0 0.0
    %1436 = vmatpush1.msra.mxu0 0.0
    %1437 = vmatprep.subr.mxu0 0.0
    %1438 = vmatpush1.msra.mxu0 0.0
    %1439 = vmatprep.subr.mxu0 0.0
    %1440 = vmatpush1.msra.mxu0 0.0
    %1441 = vmatprep.subr.mxu0 0.0
    %1442 = vmatpush1.msra.mxu0 0.0
    %1443 = vmatprep.subr.mxu0 0.0
    %1444 = vmatpush1.msra.mxu0 0.0
    %1445 = vmatprep.subr.mxu0 0.0
    %1446 = vmatpush1.msra.mxu0 0.0
    %1447 = vmatprep.subr.mxu0 0.0
    %1448 = vmatpush1.msra.mxu0 0.0
    %1449 = vmatprep.subr.mxu0 0.0
    %1450 = vmatpush1.msra.mxu0 0.0
    %1451 = vmatprep.subr.mxu0 0.0
    %1452 = vmatpush1.msra.mxu0 0.0
    %1453 = vmatprep.subr.mxu0 0.0
    %1454 = vmatpush1.msra.mxu0 0.0
    %1455 = vmatprep.subr.mxu0 0.0
    %1456 = vmatpush1.msra.mxu0 0.0
    %1457 = vmatprep.subr.mxu0 0.0
    %1458 = vmatpush1.msra.mxu0 0.0
    %1459 = vmatprep.subr.mxu0 0.0
    %1460 = vmatpush1.msra.mxu0 0.0
    %1461 = vmatprep.subr.mxu0 0.0
    %1462 = vmatpush1.msra.mxu0 0.0
    %1463 = vmatprep.subr.mxu0 0.0
    %1464 = vmatpush1.msra.mxu0 0.0
    %1465 = vmatprep.subr.mxu0 0.0
    %1466 = vmatpush1.msra.mxu0 0.0
    %1467 = vmatprep.subr.mxu0 0.0
    %1468 = vmatpush1.msra.mxu0 0.0
    %1469 = vmatprep.subr.mxu0 0.0
    %1470 = vmatpush1.msra.mxu0 0.0
    %1471 = vmatprep.subr.mxu0 0.0
    %1472 = vmatpush1.msra.mxu0 0.0
    %1473 = vmatprep.subr.mxu0 0.0
    %1474 = vmatpush1.msra.mxu0 0.0
    %1475 = vmatprep.mubr.f32.mxu0 0.0
    %1476 = vmatmul.mubr.f32.gmra.mrb[0].mxu0 %v1388
    %v1477 = vpop.f32.mrb[0].mxu0
    %v1478 = vadd.f32 %v1349, %v1477
    %v1479 = vpop.f32.mrb[0].mxu0
    %1480 = vmatprep.mubr.f32.mxu0 0.0
    %1481 = vmatmul.mubr.f32.gmra.mrb[0].mxu0 %v1391
    %v1482 = vpop.f32.mrb[0].mxu0
    %v1483 = vadd.f32 %v1354, %v1482
    %v1484 = vpop.f32.mrb[0].mxu0
    %1485 = vmatprep.mubr.f32.mxu0 0.0
    %1486 = vmatmul.mubr.f32.gmra.mrb[0].mxu0 %v1394
    %v1487 = vpop.f32.mrb[0].mxu0
    %v1488 = vadd.f32 %v1359, %v1487
    %v1489 = vpop.f32.mrb[0].mxu0
    %1490 = vmatprep.mubr.f32.mxu0 0.0
    %1491 = vmatmul.mubr.f32.gmra.mrb[0].mxu0 %v1397
    %v1492 = vpop.f32.mrb[0].mxu0
    %v1493 = vadd.f32 %v1364, %v1492
    %v1494 = vpop.f32.mrb[0].mxu0
    %1495 = vmatprep.mubr.f32.mxu0 0.0
    %1496 = vmatmul.mubr.f32.gmra.mrb[0].mxu0 %v1400
    %v1497 = vpop.f32.mrb[0].mxu0
    %v1498 = vadd.f32 %v1369, %v1497
    %v1499 = vpop.f32.mrb[0].mxu0
    %1500 = vmatprep.mubr.f32.mxu0 0.0
    %1501 = vmatmul.mubr.f32.gmra.mrb[0].mxu0 %v1403
    %v1502 = vpop.f32.mrb[0].mxu0
    %v1503 = vadd.f32 %v1374, %v1502
    %v1504 = vpop.f32.mrb[0].mxu0
    %1505 = vmatprep.mubr.f32.mxu0 0.0
    %1506 = vmatmul.mubr.f32.gmra.mrb[0].mxu0 %v1406
    %v1507 = vpop.f32.mrb[0].mxu0
    %v1508 = vadd.f32 %v1379, %v1507
    %v1509 = vpop.f32.mrb[0].mxu0
    %1510 = vmatprep.mubr.f32.mxu0 0.0
    %1511 = vmatmul.mubr.f32.gmra.mrb[0].mxu0 %v1409
    %v1512 = vpop.f32.mrb[0].mxu0
    %v1513 = vadd.f32 %v1384, %v1512
    %v1514 = vpop.f32.mrb[0].mxu0
    %1515 = vdwg.mxu0
    %s1516 = scalar_lea.vmem %s1, 64
    %v1517 = vld [vmem:[%s1516] sm:$0xff]
    %v1519 = vsel %vm259, %v1254, 0
    %v1522 = vsel %vm259, %v1255, 0
    %v1525 = vsel %vm259, %v1256, 0
    %v1528 = vsel %vm259, %v1257, 0
    %v1531 = vsel %vm259, %v1258, 0
    %v1534 = vsel %vm259, %v1259, 0
    %v1537 = vsel %vm259, %v1260, 0
    %v1540 = vsel %vm259, %v1261, 0
    %1542 = vmatprep.subr.mxu0 0.0
    %1543 = vmatpush1.msra.mxu0 %v1517
    %1544 = vmatprep.subr.mxu0 0.0
    %1545 = vmatpush1.msra.mxu0 0.0
    %1546 = vmatprep.subr.mxu0 0.0
    %1547 = vmatpush1.msra.mxu0 0.0
    %1548 = vmatprep.subr.mxu0 0.0
    %1549 = vmatpush1.msra.mxu0 0.0
    %1550 = vmatprep.subr.mxu0 0.0
    %1551 = vmatpush1.msra.mxu0 0.0
    %1552 = vmatprep.subr.mxu0 0.0
    %1553 = vmatpush1.msra.mxu0 0.0
    %1554 = vmatprep.subr.mxu0 0.0
    %1555 = vmatpush1.msra.mxu0 0.0
    %1556 = vmatprep.subr.mxu0 0.0
    %1557 = vmatpush1.msra.mxu0 0.0
    %1558 = vmatprep.subr.mxu0 0.0
    %1559 = vmatpush1.msra.mxu0 0.0
    %1560 = vmatprep.subr.mxu0 0.0
    %1561 = vmatpush1.msra.mxu0 0.0
    %1562 = vmatprep.subr.mxu0 0.0
    %1563 = vmatpush1.msra.mxu0 0.0
    %1564 = vmatprep.subr.mxu0 0.0
    %1565 = vmatpush1.msra.mxu0 0.0
    %1566 = vmatprep.subr.mxu0 0.0
    %1567 = vmatpush1.msra.mxu0 0.0
    %1568 = vmatprep.subr.mxu0 0.0
    %1569 = vmatpush1.msra.mxu0 0.0
    %1570 = vmatprep.subr.mxu0 0.0
    %1571 = vmatpush1.msra.mxu0 0.0
    %1572 = vmatprep.subr.mxu0 0.0
    %1573 = vmatpush1.msra.mxu0 0.0
    %1574 = vmatprep.subr.mxu0 0.0
    %1575 = vmatpush1.msra.mxu0 0.0
    %1576 = vmatprep.subr.mxu0 0.0
    %1577 = vmatpush1.msra.mxu0 0.0
    %1578 = vmatprep.subr.mxu0 0.0
    %1579 = vmatpush1.msra.mxu0 0.0
    %1580 = vmatprep.subr.mxu0 0.0
    %1581 = vmatpush1.msra.mxu0 0.0
    %1582 = vmatprep.subr.mxu0 0.0
    %1583 = vmatpush1.msra.mxu0 0.0
    %1584 = vmatprep.subr.mxu0 0.0
    %1585 = vmatpush1.msra.mxu0 0.0
    %1586 = vmatprep.subr.mxu0 0.0
    %1587 = vmatpush1.msra.mxu0 0.0
    %1588 = vmatprep.subr.mxu0 0.0
    %1589 = vmatpush1.msra.mxu0 0.0
    %1590 = vmatprep.subr.mxu0 0.0
    %1591 = vmatpush1.msra.mxu0 0.0
    %1592 = vmatprep.subr.mxu0 0.0
    %1593 = vmatpush1.msra.mxu0 0.0
    %1594 = vmatprep.subr.mxu0 0.0
    %1595 = vmatpush1.msra.mxu0 0.0
    %1596 = vmatprep.subr.mxu0 0.0
    %1597 = vmatpush1.msra.mxu0 0.0
    %1598 = vmatprep.subr.mxu0 0.0
    %1599 = vmatpush1.msra.mxu0 0.0
    %1600 = vmatprep.subr.mxu0 0.0
    %1601 = vmatpush1.msra.mxu0 0.0
    %1602 = vmatprep.subr.mxu0 0.0
    %1603 = vmatpush1.msra.mxu0 0.0
    %1604 = vmatprep.subr.mxu0 0.0
    %1605 = vmatpush1.msra.mxu0 0.0
    %1606 = vmatprep.mubr.f32.mxu0 0.0
    %1607 = vmatmul.mubr.f32.gmra.mrb[0].mxu0 %v1519
    %v1608 = vpop.f32.mrb[0].mxu0
    %v1609 = vadd.f32 0.0, %v1608
    %v1610 = vpop.f32.mrb[0].mxu0
    %1611 = vmatprep.mubr.f32.mxu0 0.0
    %1612 = vmatmul.mubr.f32.gmra.mrb[0].mxu0 %v1522
    %v1613 = vpop.f32.mrb[0].mxu0
    %v1614 = vadd.f32 0.0, %v1613
    %v1615 = vpop.f32.mrb[0].mxu0
    %1616 = vmatprep.mubr.f32.mxu0 0.0
    %1617 = vmatmul.mubr.f32.gmra.mrb[0].mxu0 %v1525
    %v1618 = vpop.f32.mrb[0].mxu0
    %v1619 = vadd.f32 0.0, %v1618
    %v1620 = vpop.f32.mrb[0].mxu0
    %1621 = vmatprep.mubr.f32.mxu0 0.0
    %1622 = vmatmul.mubr.f32.gmra.mrb[0].mxu0 %v1528
    %v1623 = vpop.f32.mrb[0].mxu0
    %v1624 = vadd.f32 0.0, %v1623
    %v1625 = vpop.f32.mrb[0].mxu0
    %1626 = vmatprep.mubr.f32.mxu0 0.0
    %1627 = vmatmul.mubr.f32.gmra.mrb[0].mxu0 %v1531
    %v1628 = vpop.f32.mrb[0].mxu0
    %v1629 = vadd.f32 0.0, %v1628
    %v1630 = vpop.f32.mrb[0].mxu0
    %1631 = vmatprep.mubr.f32.mxu0 0.0
    %1632 = vmatmul.mubr.f32.gmra.mrb[0].mxu0 %v1534
    %v1633 = vpop.f32.mrb[0].mxu0
    %v1634 = vadd.f32 0.0, %v1633
    %v1635 = vpop.f32.mrb[0].mxu0
    %1636 = vmatprep.mubr.f32.mxu0 0.0
    %1637 = vmatmul.mubr.f32.gmra.mrb[0].mxu0 %v1537
    %v1638 = vpop.f32.mrb[0].mxu0
    %v1639 = vadd.f32 0.0, %v1638
    %v1640 = vpop.f32.mrb[0].mxu0
    %1641 = vmatprep.mubr.f32.mxu0 0.0
    %1642 = vmatmul.mubr.f32.gmra.mrb[0].mxu0 %v1540
    %v1643 = vpop.f32.mrb[0].mxu0
    %v1644 = vadd.f32 0.0, %v1643
    %v1645 = vpop.f32.mrb[0].mxu0
    %1646 = vdwg.mxu0
    %v1647 = vadd.f32 %v1478, %v1609
    %v1648 = vadd.f32 %v1483, %v1614
    %v1649 = vadd.f32 %v1488, %v1619
    %v1650 = vadd.f32 %v1493, %v1624
    %v1651 = vadd.f32 %v1498, %v1629
    %v1652 = vadd.f32 %v1503, %v1634
    %v1653 = vadd.f32 %v1508, %v1639
    %v1654 = vadd.f32 %v1513, %v1644
    %v1655 = vlaneseq
    %v1656 = vshrl.u32 %v1655, 7
    %v1657 = vsub.s32 2, %v1656
    %v1658 = vrot.slane %v26, %v1657
    %v1659 = vadd.f32 %v1647, %v1658
    %v1660 = vadd.f32 %v1648, %v1658
    %v1661 = vadd.f32 %v1649, %v1658
    %v1662 = vadd.f32 %v1650, %v1658
    %v1663 = vadd.f32 %v1651, %v1658
    %v1664 = vadd.f32 %v1652, %v1658
    %v1665 = vadd.f32 %v1653, %v1658
    %v1666 = vadd.f32 %v1654, %v1658
    %vm1667 = vcmp.gt.f32.partialorder %v1659, 0.0
    %vm1668 = vcmp.gt.f32.partialorder %v1660, 0.0
    %vm1669 = vcmp.gt.f32.partialorder %v1661, 0.0
    %vm1670 = vcmp.gt.f32.partialorder %v1662, 0.0
    %vm1671 = vcmp.gt.f32.partialorder %v1663, 0.0
    %vm1672 = vcmp.gt.f32.partialorder %v1664, 0.0
    %vm1673 = vcmp.gt.f32.partialorder %v1665, 0.0
    %vm1674 = vcmp.gt.f32.partialorder %v1666, 0.0
    %v1675 = vmul.f32 %v1659, 0.01
    %v1676 = vmul.f32 %v1660, 0.01
    %v1677 = vmul.f32 %v1661, 0.01
    %v1678 = vmul.f32 %v1662, 0.01
    %v1679 = vmul.f32 %v1663, 0.01
    %v1680 = vmul.f32 %v1664, 0.01
    %v1681 = vmul.f32 %v1665, 0.01
    %v1682 = vmul.f32 %v1666, 0.01
    %v1683 = vsel %vm1667, %v1659, %v1675
    %v1684 = vsel %vm1668, %v1660, %v1676
    %v1685 = vsel %vm1669, %v1661, %v1677
    %v1686 = vsel %vm1670, %v1662, %v1678
    %v1687 = vsel %vm1671, %v1663, %v1679
    %v1688 = vsel %vm1672, %v1664, %v1680
    %v1689 = vsel %vm1673, %v1665, %v1681
    %v1690 = vsel %vm1674, %v1666, %v1682
    %v1692 = vrot.slane %v1690, 7
    %v1701 = vrot.slane %v1683, 7
    %v1702 = vrot.slane %v1684, 7
    %v1703 = vsel %vm158, %v1701, %v1702
    %v1704 = vrot.slane %v1685, 7
    %v1705 = vsel %vm158, %v1702, %v1704
    %v1706 = vrot.slane %v1686, 7
    %v1707 = vsel %vm158, %v1704, %v1706
    %v1708 = vrot.slane %v1687, 7
    %v1709 = vsel %vm158, %v1706, %v1708
    %v1710 = vrot.slane %v1688, 7
    %v1711 = vsel %vm158, %v1708, %v1710
    %v1712 = vrot.slane %v1689, 7
    %v1713 = vsel %vm158, %v1710, %v1712
    %v1714 = vsel %vm158, %v1712, %v1692
    %v1723 = vsel %vm158, %v1692, %v1701
    %v1724 = vsel %vm190, 0.0, %v1723
    %v1725 = vsel %vm191, 0.0, %v1703
    %v1726 = vsel %vm192, 0.0, %v1705
    %v1727 = vsel %vm193, 0.0, %v1707
    %v1728 = vsel %vm194, 0.0, %v1709
    %v1729 = vsel %vm195, 0.0, %v1711
    %v1730 = vsel %vm196, 0.0, %v1713
    %v1731 = vsel %vm197, 0.0, %v1714
    %v1732 = vrot.slane %v1683, 1
    %v1733 = vrot.slane %v1684, 1
    %v1734 = vsel %vm206, %v1732, %v1733
    %v1735 = vrot.slane %v1685, 1
    %v1736 = vsel %vm206, %v1733, %v1735
    %v1737 = vrot.slane %v1686, 1
    %v1738 = vsel %vm206, %v1735, %v1737
    %v1739 = vrot.slane %v1687, 1
    %v1740 = vsel %vm206, %v1737, %v1739
    %v1741 = vrot.slane %v1688, 1
    %v1742 = vsel %vm206, %v1739, %v1741
    %v1743 = vrot.slane %v1689, 1
    %v1744 = vsel %vm206, %v1741, %v1743
    %v1745 = vrot.slane %v1690, 1
    %v1746 = vsel %vm206, %v1743, %v1745
    %v1756 = vsel %vm206, %v1745, %v1732
    %v1757 = vsel %vm240, 0.0, %v1734
    %v1758 = vsel %vm241, 0.0, %v1736
    %v1759 = vsel %vm242, 0.0, %v1738
    %v1760 = vsel %vm243, 0.0, %v1740
    %v1761 = vsel %vm244, 0.0, %v1742
    %v1762 = vsel %vm245, 0.0, %v1744
    %v1763 = vsel %vm246, 0.0, %v1746
    %v1764 = vsel %vm247, 0.0, %v1756
    %s1765 = scalar_lea.vmem %s1, 72
    %v1766 = vld [vmem:[%s1765] sm:$0xff]
    %s1767 = scalar_lea.vmem %s1, 80
    %v1768 = vld [vmem:[%s1767] sm:$0xff]
    %v1769 = vsel %vm259, %v1683, 0
    %v1771 = vsel %vm259, %v1684, 0
    %v1773 = vsel %vm259, %v1685, 0
    %v1775 = vsel %vm259, %v1686, 0
    %v1777 = vsel %vm259, %v1687, 0
    %v1779 = vsel %vm259, %v1688, 0
    %v1781 = vsel %vm259, %v1689, 0
    %v1783 = vsel %vm259, %v1690, 0
    %1785 = vmatprep.subr.mxu0 0.0
    %1786 = vmatpush1.msra.mxu0 %v1768
    %1787 = vmatprep.subr.mxu0 0.0
    %1788 = vmatpush1.msra.mxu0 0.0
    %1789 = vmatprep.subr.mxu0 0.0
    %1790 = vmatpush1.msra.mxu0 0.0
    %1791 = vmatprep.subr.mxu0 0.0
    %1792 = vmatpush1.msra.mxu0 0.0
    %1793 = vmatprep.subr.mxu0 0.0
    %1794 = vmatpush1.msra.mxu0 0.0
    %1795 = vmatprep.subr.mxu0 0.0
    %1796 = vmatpush1.msra.mxu0 0.0
    %1797 = vmatprep.subr.mxu0 0.0
    %1798 = vmatpush1.msra.mxu0 0.0
    %1799 = vmatprep.subr.mxu0 0.0
    %1800 = vmatpush1.msra.mxu0 0.0
    %1801 = vmatprep.subr.mxu0 0.0
    %1802 = vmatpush1.msra.mxu0 0.0
    %1803 = vmatprep.subr.mxu0 0.0
    %1804 = vmatpush1.msra.mxu0 0.0
    %1805 = vmatprep.subr.mxu0 0.0
    %1806 = vmatpush1.msra.mxu0 0.0
    %1807 = vmatprep.subr.mxu0 0.0
    %1808 = vmatpush1.msra.mxu0 0.0
    %1809 = vmatprep.subr.mxu0 0.0
    %1810 = vmatpush1.msra.mxu0 0.0
    %1811 = vmatprep.subr.mxu0 0.0
    %1812 = vmatpush1.msra.mxu0 0.0
    %1813 = vmatprep.subr.mxu0 0.0
    %1814 = vmatpush1.msra.mxu0 0.0
    %1815 = vmatprep.subr.mxu0 0.0
    %1816 = vmatpush1.msra.mxu0 0.0
    %1817 = vmatprep.subr.mxu0 0.0
    %1818 = vmatpush1.msra.mxu0 0.0
    %1819 = vmatprep.subr.mxu0 0.0
    %1820 = vmatpush1.msra.mxu0 0.0
    %1821 = vmatprep.subr.mxu0 0.0
    %1822 = vmatpush1.msra.mxu0 0.0
    %1823 = vmatprep.subr.mxu0 0.0
    %1824 = vmatpush1.msra.mxu0 0.0
    %1825 = vmatprep.subr.mxu0 0.0
    %1826 = vmatpush1.msra.mxu0 0.0
    %1827 = vmatprep.subr.mxu0 0.0
    %1828 = vmatpush1.msra.mxu0 0.0
    %1829 = vmatprep.subr.mxu0 0.0
    %1830 = vmatpush1.msra.mxu0 0.0
    %1831 = vmatprep.subr.mxu0 0.0
    %1832 = vmatpush1.msra.mxu0 0.0
    %1833 = vmatprep.subr.mxu0 0.0
    %1834 = vmatpush1.msra.mxu0 0.0
    %1835 = vmatprep.subr.mxu0 0.0
    %1836 = vmatpush1.msra.mxu0 0.0
    %1837 = vmatprep.subr.mxu0 0.0
    %1838 = vmatpush1.msra.mxu0 0.0
    %1839 = vmatprep.subr.mxu0 0.0
    %1840 = vmatpush1.msra.mxu0 0.0
    %1841 = vmatprep.subr.mxu0 0.0
    %1842 = vmatpush1.msra.mxu0 0.0
    %1843 = vmatprep.subr.mxu0 0.0
    %1844 = vmatpush1.msra.mxu0 0.0
    %1845 = vmatprep.subr.mxu0 0.0
    %1846 = vmatpush1.msra.mxu0 0.0
    %1847 = vmatprep.subr.mxu0 0.0
    %1848 = vmatpush1.msra.mxu0 0.0
    %1849 = vmatprep.mubr.f32.mxu0 0.0
    %1850 = vmatmul.mubr.f32.gmra.mrb[0].mxu0 %v1769
    %v1851 = vpop.f32.mrb[0].mxu0
    %v1852 = vadd.f32 0.0, %v1851
    %v1853 = vpop.f32.mrb[0].mxu0
    %1854 = vmatprep.mubr.f32.mxu0 0.0
    %1855 = vmatmul.mubr.f32.gmra.mrb[0].mxu0 %v1771
    %v1856 = vpop.f32.mrb[0].mxu0
    %v1857 = vadd.f32 0.0, %v1856
    %v1858 = vpop.f32.mrb[0].mxu0
    %1859 = vmatprep.mubr.f32.mxu0 0.0
    %1860 = vmatmul.mubr.f32.gmra.mrb[0].mxu0 %v1773
    %v1861 = vpop.f32.mrb[0].mxu0
    %v1862 = vadd.f32 0.0, %v1861
    %v1863 = vpop.f32.mrb[0].mxu0
    %1864 = vmatprep.mubr.f32.mxu0 0.0
    %1865 = vmatmul.mubr.f32.gmra.mrb[0].mxu0 %v1775
    %v1866 = vpop.f32.mrb[0].mxu0
    %v1867 = vadd.f32 0.0, %v1866
    %v1868 = vpop.f32.mrb[0].mxu0
    %1869 = vmatprep.mubr.f32.mxu0 0.0
    %1870 = vmatmul.mubr.f32.gmra.mrb[0].mxu0 %v1777
    %v1871 = vpop.f32.mrb[0].mxu0
    %v1872 = vadd.f32 0.0, %v1871
    %v1873 = vpop.f32.mrb[0].mxu0
    %1874 = vmatprep.mubr.f32.mxu0 0.0
    %1875 = vmatmul.mubr.f32.gmra.mrb[0].mxu0 %v1779
    %v1876 = vpop.f32.mrb[0].mxu0
    %v1877 = vadd.f32 0.0, %v1876
    %v1878 = vpop.f32.mrb[0].mxu0
    %1879 = vmatprep.mubr.f32.mxu0 0.0
    %1880 = vmatmul.mubr.f32.gmra.mrb[0].mxu0 %v1781
    %v1881 = vpop.f32.mrb[0].mxu0
    %v1882 = vadd.f32 0.0, %v1881
    %v1883 = vpop.f32.mrb[0].mxu0
    %1884 = vmatprep.mubr.f32.mxu0 0.0
    %1885 = vmatmul.mubr.f32.gmra.mrb[0].mxu0 %v1783
    %v1886 = vpop.f32.mrb[0].mxu0
    %v1887 = vadd.f32 0.0, %v1886
    %v1888 = vpop.f32.mrb[0].mxu0
    %1889 = vdwg.mxu0
    %v1891 = vsel %vm259, %v1724, 0
    %v1894 = vsel %vm259, %v1725, 0
    %v1897 = vsel %vm259, %v1726, 0
    %v1900 = vsel %vm259, %v1727, 0
    %v1903 = vsel %vm259, %v1728, 0
    %v1906 = vsel %vm259, %v1729, 0
    %v1909 = vsel %vm259, %v1730, 0
    %v1912 = vsel %vm259, %v1731, 0
    %1914 = vmatprep.subr.mxu0 0.0
    %1915 = vmatpush1.msra.mxu0 %v1766
    %1916 = vmatprep.subr.mxu0 0.0
    %1917 = vmatpush1.msra.mxu0 0.0
    %1918 = vmatprep.subr.mxu0 0.0
    %1919 = vmatpush1.msra.mxu0 0.0
    %1920 = vmatprep.subr.mxu0 0.0
    %1921 = vmatpush1.msra.mxu0 0.0
    %1922 = vmatprep.subr.mxu0 0.0
    %1923 = vmatpush1.msra.mxu0 0.0
    %1924 = vmatprep.subr.mxu0 0.0
    %1925 = vmatpush1.msra.mxu0 0.0
    %1926 = vmatprep.subr.mxu0 0.0
    %1927 = vmatpush1.msra.mxu0 0.0
    %1928 = vmatprep.subr.mxu0 0.0
    %1929 = vmatpush1.msra.mxu0 0.0
    %1930 = vmatprep.subr.mxu0 0.0
    %1931 = vmatpush1.msra.mxu0 0.0
    %1932 = vmatprep.subr.mxu0 0.0
    %1933 = vmatpush1.msra.mxu0 0.0
    %1934 = vmatprep.subr.mxu0 0.0
    %1935 = vmatpush1.msra.mxu0 0.0
    %1936 = vmatprep.subr.mxu0 0.0
    %1937 = vmatpush1.msra.mxu0 0.0
    %1938 = vmatprep.subr.mxu0 0.0
    %1939 = vmatpush1.msra.mxu0 0.0
    %1940 = vmatprep.subr.mxu0 0.0
    %1941 = vmatpush1.msra.mxu0 0.0
    %1942 = vmatprep.subr.mxu0 0.0
    %1943 = vmatpush1.msra.mxu0 0.0
    %1944 = vmatprep.subr.mxu0 0.0
    %1945 = vmatpush1.msra.mxu0 0.0
    %1946 = vmatprep.subr.mxu0 0.0
    %1947 = vmatpush1.msra.mxu0 0.0
    %1948 = vmatprep.subr.mxu0 0.0
    %1949 = vmatpush1.msra.mxu0 0.0
    %1950 = vmatprep.subr.mxu0 0.0
    %1951 = vmatpush1.msra.mxu0 0.0
    %1952 = vmatprep.subr.mxu0 0.0
    %1953 = vmatpush1.msra.mxu0 0.0
    %1954 = vmatprep.subr.mxu0 0.0
    %1955 = vmatpush1.msra.mxu0 0.0
    %1956 = vmatprep.subr.mxu0 0.0
    %1957 = vmatpush1.msra.mxu0 0.0
    %1958 = vmatprep.subr.mxu0 0.0
    %1959 = vmatpush1.msra.mxu0 0.0
    %1960 = vmatprep.subr.mxu0 0.0
    %1961 = vmatpush1.msra.mxu0 0.0
    %1962 = vmatprep.subr.mxu0 0.0
    %1963 = vmatpush1.msra.mxu0 0.0
    %1964 = vmatprep.subr.mxu0 0.0
    %1965 = vmatpush1.msra.mxu0 0.0
    %1966 = vmatprep.subr.mxu0 0.0
    %1967 = vmatpush1.msra.mxu0 0.0
    %1968 = vmatprep.subr.mxu0 0.0
    %1969 = vmatpush1.msra.mxu0 0.0
    %1970 = vmatprep.subr.mxu0 0.0
    %1971 = vmatpush1.msra.mxu0 0.0
    %1972 = vmatprep.subr.mxu0 0.0
    %1973 = vmatpush1.msra.mxu0 0.0
    %1974 = vmatprep.subr.mxu0 0.0
    %1975 = vmatpush1.msra.mxu0 0.0
    %1976 = vmatprep.subr.mxu0 0.0
    %1977 = vmatpush1.msra.mxu0 0.0
    %1978 = vmatprep.mubr.f32.mxu0 0.0
    %1979 = vmatmul.mubr.f32.gmra.mrb[0].mxu0 %v1891
    %v1980 = vpop.f32.mrb[0].mxu0
    %v1981 = vadd.f32 %v1852, %v1980
    %v1982 = vpop.f32.mrb[0].mxu0
    %1983 = vmatprep.mubr.f32.mxu0 0.0
    %1984 = vmatmul.mubr.f32.gmra.mrb[0].mxu0 %v1894
    %v1985 = vpop.f32.mrb[0].mxu0
    %v1986 = vadd.f32 %v1857, %v1985
    %v1987 = vpop.f32.mrb[0].mxu0
    %1988 = vmatprep.mubr.f32.mxu0 0.0
    %1989 = vmatmul.mubr.f32.gmra.mrb[0].mxu0 %v1897
    %v1990 = vpop.f32.mrb[0].mxu0
    %v1991 = vadd.f32 %v1862, %v1990
    %v1992 = vpop.f32.mrb[0].mxu0
    %1993 = vmatprep.mubr.f32.mxu0 0.0
    %1994 = vmatmul.mubr.f32.gmra.mrb[0].mxu0 %v1900
    %v1995 = vpop.f32.mrb[0].mxu0
    %v1996 = vadd.f32 %v1867, %v1995
    %v1997 = vpop.f32.mrb[0].mxu0
    %1998 = vmatprep.mubr.f32.mxu0 0.0
    %1999 = vmatmul.mubr.f32.gmra.mrb[0].mxu0 %v1903
    %v2000 = vpop.f32.mrb[0].mxu0
    %v2001 = vadd.f32 %v1872, %v2000
    %v2002 = vpop.f32.mrb[0].mxu0
    %2003 = vmatprep.mubr.f32.mxu0 0.0
    %2004 = vmatmul.mubr.f32.gmra.mrb[0].mxu0 %v1906
    %v2005 = vpop.f32.mrb[0].mxu0
    %v2006 = vadd.f32 %v1877, %v2005
    %v2007 = vpop.f32.mrb[0].mxu0
    %2008 = vmatprep.mubr.f32.mxu0 0.0
    %2009 = vmatmul.mubr.f32.gmra.mrb[0].mxu0 %v1909
    %v2010 = vpop.f32.mrb[0].mxu0
    %v2011 = vadd.f32 %v1882, %v2010
    %v2012 = vpop.f32.mrb[0].mxu0
    %2013 = vmatprep.mubr.f32.mxu0 0.0
    %2014 = vmatmul.mubr.f32.gmra.mrb[0].mxu0 %v1912
    %v2015 = vpop.f32.mrb[0].mxu0
    %v2016 = vadd.f32 %v1887, %v2015
    %v2017 = vpop.f32.mrb[0].mxu0
    %2018 = vdwg.mxu0
    %s2019 = scalar_lea.vmem %s1, 88
    %v2020 = vld [vmem:[%s2019] sm:$0xff]
    %v2022 = vsel %vm259, %v1757, 0
    %v2025 = vsel %vm259, %v1758, 0
    %v2028 = vsel %vm259, %v1759, 0
    %v2031 = vsel %vm259, %v1760, 0
    %v2034 = vsel %vm259, %v1761, 0
    %v2037 = vsel %vm259, %v1762, 0
    %v2040 = vsel %vm259, %v1763, 0
    %v2043 = vsel %vm259, %v1764, 0
    %2045 = vmatprep.subr.mxu0 0.0
    %2046 = vmatpush1.msra.mxu0 %v2020
    %2047 = vmatprep.subr.mxu0 0.0
    %2048 = vmatpush1.msra.mxu0 0.0
    %2049 = vmatprep.subr.mxu0 0.0
    %2050 = vmatpush1.msra.mxu0 0.0
    %2051 = vmatprep.subr.mxu0 0.0
    %2052 = vmatpush1.msra.mxu0 0.0
    %2053 = vmatprep.subr.mxu0 0.0
    %2054 = vmatpush1.msra.mxu0 0.0
    %2055 = vmatprep.subr.mxu0 0.0
    %2056 = vmatpush1.msra.mxu0 0.0
    %2057 = vmatprep.subr.mxu0 0.0
    %2058 = vmatpush1.msra.mxu0 0.0
    %2059 = vmatprep.subr.mxu0 0.0
    %2060 = vmatpush1.msra.mxu0 0.0
    %2061 = vmatprep.subr.mxu0 0.0
    %2062 = vmatpush1.msra.mxu0 0.0
    %2063 = vmatprep.subr.mxu0 0.0
    %2064 = vmatpush1.msra.mxu0 0.0
    %2065 = vmatprep.subr.mxu0 0.0
    %2066 = vmatpush1.msra.mxu0 0.0
    %2067 = vmatprep.subr.mxu0 0.0
    %2068 = vmatpush1.msra.mxu0 0.0
    %2069 = vmatprep.subr.mxu0 0.0
    %2070 = vmatpush1.msra.mxu0 0.0
    %2071 = vmatprep.subr.mxu0 0.0
    %2072 = vmatpush1.msra.mxu0 0.0
    %2073 = vmatprep.subr.mxu0 0.0
    %2074 = vmatpush1.msra.mxu0 0.0
    %2075 = vmatprep.subr.mxu0 0.0
    %2076 = vmatpush1.msra.mxu0 0.0
    %2077 = vmatprep.subr.mxu0 0.0
    %2078 = vmatpush1.msra.mxu0 0.0
    %2079 = vmatprep.subr.mxu0 0.0
    %2080 = vmatpush1.msra.mxu0 0.0
    %2081 = vmatprep.subr.mxu0 0.0
    %2082 = vmatpush1.msra.mxu0 0.0
    %2083 = vmatprep.subr.mxu0 0.0
    %2084 = vmatpush1.msra.mxu0 0.0
    %2085 = vmatprep.subr.mxu0 0.0
    %2086 = vmatpush1.msra.mxu0 0.0
    %2087 = vmatprep.subr.mxu0 0.0
    %2088 = vmatpush1.msra.mxu0 0.0
    %2089 = vmatprep.subr.mxu0 0.0
    %2090 = vmatpush1.msra.mxu0 0.0
    %2091 = vmatprep.subr.mxu0 0.0
    %2092 = vmatpush1.msra.mxu0 0.0
    %2093 = vmatprep.subr.mxu0 0.0
    %2094 = vmatpush1.msra.mxu0 0.0
    %2095 = vmatprep.subr.mxu0 0.0
    %2096 = vmatpush1.msra.mxu0 0.0
    %2097 = vmatprep.subr.mxu0 0.0
    %2098 = vmatpush1.msra.mxu0 0.0
    %2099 = vmatprep.subr.mxu0 0.0
    %2100 = vmatpush1.msra.mxu0 0.0
    %2101 = vmatprep.subr.mxu0 0.0
    %2102 = vmatpush1.msra.mxu0 0.0
    %2103 = vmatprep.subr.mxu0 0.0
    %2104 = vmatpush1.msra.mxu0 0.0
    %2105 = vmatprep.subr.mxu0 0.0
    %2106 = vmatpush1.msra.mxu0 0.0
    %2107 = vmatprep.subr.mxu0 0.0
    %2108 = vmatpush1.msra.mxu0 0.0
    %2109 = vmatprep.mubr.f32.mxu0 0.0
    %2110 = vmatmul.mubr.f32.gmra.mrb[0].mxu0 %v2022
    %v2111 = vpop.f32.mrb[0].mxu0
    %v2112 = vadd.f32 0.0, %v2111
    %v2113 = vpop.f32.mrb[0].mxu0
    %2114 = vmatprep.mubr.f32.mxu0 0.0
    %2115 = vmatmul.mubr.f32.gmra.mrb[0].mxu0 %v2025
    %v2116 = vpop.f32.mrb[0].mxu0
    %v2117 = vadd.f32 0.0, %v2116
    %v2118 = vpop.f32.mrb[0].mxu0
    %2119 = vmatprep.mubr.f32.mxu0 0.0
    %2120 = vmatmul.mubr.f32.gmra.mrb[0].mxu0 %v2028
    %v2121 = vpop.f32.mrb[0].mxu0
    %v2122 = vadd.f32 0.0, %v2121
    %v2123 = vpop.f32.mrb[0].mxu0
    %2124 = vmatprep.mubr.f32.mxu0 0.0
    %2125 = vmatmul.mubr.f32.gmra.mrb[0].mxu0 %v2031
    %v2126 = vpop.f32.mrb[0].mxu0
    %v2127 = vadd.f32 0.0, %v2126
    %v2128 = vpop.f32.mrb[0].mxu0
    %2129 = vmatprep.mubr.f32.mxu0 0.0
    %2130 = vmatmul.mubr.f32.gmra.mrb[0].mxu0 %v2034
    %v2131 = vpop.f32.mrb[0].mxu0
    %v2132 = vadd.f32 0.0, %v2131
    %v2133 = vpop.f32.mrb[0].mxu0
    %2134 = vmatprep.mubr.f32.mxu0 0.0
    %2135 = vmatmul.mubr.f32.gmra.mrb[0].mxu0 %v2037
    %v2136 = vpop.f32.mrb[0].mxu0
    %v2137 = vadd.f32 0.0, %v2136
    %v2138 = vpop.f32.mrb[0].mxu0
    %2139 = vmatprep.mubr.f32.mxu0 0.0
    %2140 = vmatmul.mubr.f32.gmra.mrb[0].mxu0 %v2040
    %v2141 = vpop.f32.mrb[0].mxu0
    %v2142 = vadd.f32 0.0, %v2141
    %v2143 = vpop.f32.mrb[0].mxu0
    %2144 = vmatprep.mubr.f32.mxu0 0.0
    %2145 = vmatmul.mubr.f32.gmra.mrb[0].mxu0 %v2043
    %v2146 = vpop.f32.mrb[0].mxu0
    %v2147 = vadd.f32 0.0, %v2146
    %v2148 = vpop.f32.mrb[0].mxu0
    %2149 = vdwg.mxu0
    %v2150 = vadd.f32 %v1981, %v2112
    %v2151 = vadd.f32 %v1986, %v2117
    %v2152 = vadd.f32 %v1991, %v2122
    %v2153 = vadd.f32 %v1996, %v2127
    %v2154 = vadd.f32 %v2001, %v2132
    %v2155 = vadd.f32 %v2006, %v2137
    %v2156 = vadd.f32 %v2011, %v2142
    %v2157 = vadd.f32 %v2016, %v2147
    %v2158 = vlaneseq
    %v2159 = vshrl.u32 %v2158, 7
    %v2160 = vsub.s32 3, %v2159
    %v2161 = vrot.slane %v26, %v2160
    %v2162 = vadd.f32 %v2150, %v2161
    %v2163 = vadd.f32 %v2151, %v2161
    %v2164 = vadd.f32 %v2152, %v2161
    %v2165 = vadd.f32 %v2153, %v2161
    %v2166 = vadd.f32 %v2154, %v2161
    %v2167 = vadd.f32 %v2155, %v2161
    %v2168 = vadd.f32 %v2156, %v2161
    %v2169 = vadd.f32 %v2157, %v2161
    %vm2170 = vcmp.gt.f32.partialorder %v2162, 0.0
    %vm2171 = vcmp.gt.f32.partialorder %v2163, 0.0
    %vm2172 = vcmp.gt.f32.partialorder %v2164, 0.0
    %vm2173 = vcmp.gt.f32.partialorder %v2165, 0.0
    %vm2174 = vcmp.gt.f32.partialorder %v2166, 0.0
    %vm2175 = vcmp.gt.f32.partialorder %v2167, 0.0
    %vm2176 = vcmp.gt.f32.partialorder %v2168, 0.0
    %vm2177 = vcmp.gt.f32.partialorder %v2169, 0.0
    %v2178 = vmul.f32 %v2162, 0.01
    %v2179 = vmul.f32 %v2163, 0.01
    %v2180 = vmul.f32 %v2164, 0.01
    %v2181 = vmul.f32 %v2165, 0.01
    %v2182 = vmul.f32 %v2166, 0.01
    %v2183 = vmul.f32 %v2167, 0.01
    %v2184 = vmul.f32 %v2168, 0.01
    %v2185 = vmul.f32 %v2169, 0.01
    %v2186 = vsel %vm2170, %v2162, %v2178
    %v2187 = vsel %vm2171, %v2163, %v2179
    %v2188 = vsel %vm2172, %v2164, %v2180
    %v2189 = vsel %vm2173, %v2165, %v2181
    %v2190 = vsel %vm2174, %v2166, %v2182
    %v2191 = vsel %vm2175, %v2167, %v2183
    %v2192 = vsel %vm2176, %v2168, %v2184
    %v2193 = vsel %vm2177, %v2169, %v2185
    %v2195 = vrot.slane %v2193, 7
    %v2204 = vrot.slane %v2186, 7
    %v2205 = vrot.slane %v2187, 7
    %v2206 = vsel %vm158, %v2204, %v2205
    %v2207 = vrot.slane %v2188, 7
    %v2208 = vsel %vm158, %v2205, %v2207
    %v2209 = vrot.slane %v2189, 7
    %v2210 = vsel %vm158, %v2207, %v2209
    %v2211 = vrot.slane %v2190, 7
    %v2212 = vsel %vm158, %v2209, %v2211
    %v2213 = vrot.slane %v2191, 7
    %v2214 = vsel %vm158, %v2211, %v2213
    %v2215 = vrot.slane %v2192, 7
    %v2216 = vsel %vm158, %v2213, %v2215
    %v2217 = vsel %vm158, %v2215, %v2195
    %v2226 = vsel %vm158, %v2195, %v2204
    %v2227 = vsel %vm190, 0.0, %v2226
    %v2228 = vsel %vm191, 0.0, %v2206
    %v2229 = vsel %vm192, 0.0, %v2208
    %v2230 = vsel %vm193, 0.0, %v2210
    %v2231 = vsel %vm194, 0.0, %v2212
    %v2232 = vsel %vm195, 0.0, %v2214
    %v2233 = vsel %vm196, 0.0, %v2216
    %v2234 = vsel %vm197, 0.0, %v2217
    %v2235 = vrot.slane %v2186, 1
    %v2236 = vrot.slane %v2187, 1
    %v2237 = vsel %vm206, %v2235, %v2236
    %v2238 = vrot.slane %v2188, 1
    %v2239 = vsel %vm206, %v2236, %v2238
    %v2240 = vrot.slane %v2189, 1
    %v2241 = vsel %vm206, %v2238, %v2240
    %v2242 = vrot.slane %v2190, 1
    %v2243 = vsel %vm206, %v2240, %v2242
    %v2244 = vrot.slane %v2191, 1
    %v2245 = vsel %vm206, %v2242, %v2244
    %v2246 = vrot.slane %v2192, 1
    %v2247 = vsel %vm206, %v2244, %v2246
    %v2248 = vrot.slane %v2193, 1
    %v2249 = vsel %vm206, %v2246, %v2248
    %v2259 = vsel %vm206, %v2248, %v2235
    %v2260 = vsel %vm240, 0.0, %v2237
    %v2261 = vsel %vm241, 0.0, %v2239
    %v2262 = vsel %vm242, 0.0, %v2241
    %v2263 = vsel %vm243, 0.0, %v2243
    %v2264 = vsel %vm244, 0.0, %v2245
    %v2265 = vsel %vm245, 0.0, %v2247
    %v2266 = vsel %vm246, 0.0, %v2249
    %v2267 = vsel %vm247, 0.0, %v2259
    %s2268 = scalar_lea.vmem %s1, 96
    %v2269 = vld [vmem:[%s2268] sm:$0xff]
    %s2270 = scalar_lea.vmem %s1, 104
    %v2271 = vld [vmem:[%s2270] sm:$0xff]
    %v2272 = vsel %vm259, %v2186, 0
    %v2274 = vsel %vm259, %v2187, 0
    %v2276 = vsel %vm259, %v2188, 0
    %v2278 = vsel %vm259, %v2189, 0
    %v2280 = vsel %vm259, %v2190, 0
    %v2282 = vsel %vm259, %v2191, 0
    %v2284 = vsel %vm259, %v2192, 0
    %v2286 = vsel %vm259, %v2193, 0
    %2288 = vmatprep.subr.mxu0 0.0
    %2289 = vmatpush1.msra.mxu0 %v2271
    %2290 = vmatprep.subr.mxu0 0.0
    %2291 = vmatpush1.msra.mxu0 0.0
    %2292 = vmatprep.subr.mxu0 0.0
    %2293 = vmatpush1.msra.mxu0 0.0
    %2294 = vmatprep.subr.mxu0 0.0
    %2295 = vmatpush1.msra.mxu0 0.0
    %2296 = vmatprep.subr.mxu0 0.0
    %2297 = vmatpush1.msra.mxu0 0.0
    %2298 = vmatprep.subr.mxu0 0.0
    %2299 = vmatpush1.msra.mxu0 0.0
    %2300 = vmatprep.subr.mxu0 0.0
    %2301 = vmatpush1.msra.mxu0 0.0
    %2302 = vmatprep.subr.mxu0 0.0
    %2303 = vmatpush1.msra.mxu0 0.0
    %2304 = vmatprep.subr.mxu0 0.0
    %2305 = vmatpush1.msra.mxu0 0.0
    %2306 = vmatprep.subr.mxu0 0.0
    %2307 = vmatpush1.msra.mxu0 0.0
    %2308 = vmatprep.subr.mxu0 0.0
    %2309 = vmatpush1.msra.mxu0 0.0
    %2310 = vmatprep.subr.mxu0 0.0
    %2311 = vmatpush1.msra.mxu0 0.0
    %2312 = vmatprep.subr.mxu0 0.0
    %2313 = vmatpush1.msra.mxu0 0.0
    %2314 = vmatprep.subr.mxu0 0.0
    %2315 = vmatpush1.msra.mxu0 0.0
    %2316 = vmatprep.subr.mxu0 0.0
    %2317 = vmatpush1.msra.mxu0 0.0
    %2318 = vmatprep.subr.mxu0 0.0
    %2319 = vmatpush1.msra.mxu0 0.0
    %2320 = vmatprep.subr.mxu0 0.0
    %2321 = vmatpush1.msra.mxu0 0.0
    %2322 = vmatprep.subr.mxu0 0.0
    %2323 = vmatpush1.msra.mxu0 0.0
    %2324 = vmatprep.subr.mxu0 0.0
    %2325 = vmatpush1.msra.mxu0 0.0
    %2326 = vmatprep.subr.mxu0 0.0
    %2327 = vmatpush1.msra.mxu0 0.0
    %2328 = vmatprep.subr.mxu0 0.0
    %2329 = vmatpush1.msra.mxu0 0.0
    %2330 = vmatprep.subr.mxu0 0.0
    %2331 = vmatpush1.msra.mxu0 0.0
    %2332 = vmatprep.subr.mxu0 0.0
    %2333 = vmatpush1.msra.mxu0 0.0
    %2334 = vmatprep.subr.mxu0 0.0
    %2335 = vmatpush1.msra.mxu0 0.0
    %2336 = vmatprep.subr.mxu0 0.0
    %2337 = vmatpush1.msra.mxu0 0.0
    %2338 = vmatprep.subr.mxu0 0.0
    %2339 = vmatpush1.msra.mxu0 0.0
    %2340 = vmatprep.subr.mxu0 0.0
    %2341 = vmatpush1.msra.mxu0 0.0
    %2342 = vmatprep.subr.mxu0 0.0
    %2343 = vmatpush1.msra.mxu0 0.0
    %2344 = vmatprep.subr.mxu0 0.0
    %2345 = vmatpush1.msra.mxu0 0.0
    %2346 = vmatprep.subr.mxu0 0.0
    %2347 = vmatpush1.msra.mxu0 0.0
    %2348 = vmatprep.subr.mxu0 0.0
    %2349 = vmatpush1.msra.mxu0 0.0
    %2350 = vmatprep.subr.mxu0 0.0
    %2351 = vmatpush1.msra.mxu0 0.0
    %2352 = vmatprep.mubr.f32.mxu0 0.0
    %2353 = vmatmul.mubr.f32.gmra.mrb[0].mxu0 %v2272
    %v2354 = vpop.f32.mrb[0].mxu0
    %v2355 = vadd.f32 0.0, %v2354
    %v2356 = vpop.f32.mrb[0].mxu0
    %2357 = vmatprep.mubr.f32.mxu0 0.0
    %2358 = vmatmul.mubr.f32.gmra.mrb[0].mxu0 %v2274
    %v2359 = vpop.f32.mrb[0].mxu0
    %v2360 = vadd.f32 0.0, %v2359
    %v2361 = vpop.f32.mrb[0].mxu0
    %2362 = vmatprep.mubr.f32.mxu0 0.0
    %2363 = vmatmul.mubr.f32.gmra.mrb[0].mxu0 %v2276
    %v2364 = vpop.f32.mrb[0].mxu0
    %v2365 = vadd.f32 0.0, %v2364
    %v2366 = vpop.f32.mrb[0].mxu0
    %2367 = vmatprep.mubr.f32.mxu0 0.0
    %2368 = vmatmul.mubr.f32.gmra.mrb[0].mxu0 %v2278
    %v2369 = vpop.f32.mrb[0].mxu0
    %v2370 = vadd.f32 0.0, %v2369
    %v2371 = vpop.f32.mrb[0].mxu0
    %2372 = vmatprep.mubr.f32.mxu0 0.0
    %2373 = vmatmul.mubr.f32.gmra.mrb[0].mxu0 %v2280
    %v2374 = vpop.f32.mrb[0].mxu0
    %v2375 = vadd.f32 0.0, %v2374
    %v2376 = vpop.f32.mrb[0].mxu0
    %2377 = vmatprep.mubr.f32.mxu0 0.0
    %2378 = vmatmul.mubr.f32.gmra.mrb[0].mxu0 %v2282
    %v2379 = vpop.f32.mrb[0].mxu0
    %v2380 = vadd.f32 0.0, %v2379
    %v2381 = vpop.f32.mrb[0].mxu0
    %2382 = vmatprep.mubr.f32.mxu0 0.0
    %2383 = vmatmul.mubr.f32.gmra.mrb[0].mxu0 %v2284
    %v2384 = vpop.f32.mrb[0].mxu0
    %v2385 = vadd.f32 0.0, %v2384
    %v2386 = vpop.f32.mrb[0].mxu0
    %2387 = vmatprep.mubr.f32.mxu0 0.0
    %2388 = vmatmul.mubr.f32.gmra.mrb[0].mxu0 %v2286
    %v2389 = vpop.f32.mrb[0].mxu0
    %v2390 = vadd.f32 0.0, %v2389
    %v2391 = vpop.f32.mrb[0].mxu0
    %2392 = vdwg.mxu0
    %v2394 = vsel %vm259, %v2227, 0
    %v2397 = vsel %vm259, %v2228, 0
    %v2400 = vsel %vm259, %v2229, 0
    %v2403 = vsel %vm259, %v2230, 0
    %v2406 = vsel %vm259, %v2231, 0
    %v2409 = vsel %vm259, %v2232, 0
    %v2412 = vsel %vm259, %v2233, 0
    %v2415 = vsel %vm259, %v2234, 0
    %2417 = vmatprep.subr.mxu0 0.0
    %2418 = vmatpush1.msra.mxu0 %v2269
    %2419 = vmatprep.subr.mxu0 0.0
    %2420 = vmatpush1.msra.mxu0 0.0
    %2421 = vmatprep.subr.mxu0 0.0
    %2422 = vmatpush1.msra.mxu0 0.0
    %2423 = vmatprep.subr.mxu0 0.0
    %2424 = vmatpush1.msra.mxu0 0.0
    %2425 = vmatprep.subr.mxu0 0.0
    %2426 = vmatpush1.msra.mxu0 0.0
    %2427 = vmatprep.subr.mxu0 0.0
    %2428 = vmatpush1.msra.mxu0 0.0
    %2429 = vmatprep.subr.mxu0 0.0
    %2430 = vmatpush1.msra.mxu0 0.0
    %2431 = vmatprep.subr.mxu0 0.0
    %2432 = vmatpush1.msra.mxu0 0.0
    %2433 = vmatprep.subr.mxu0 0.0
    %2434 = vmatpush1.msra.mxu0 0.0
    %2435 = vmatprep.subr.mxu0 0.0
    %2436 = vmatpush1.msra.mxu0 0.0
    %2437 = vmatprep.subr.mxu0 0.0
    %2438 = vmatpush1.msra.mxu0 0.0
    %2439 = vmatprep.subr.mxu0 0.0
    %2440 = vmatpush1.msra.mxu0 0.0
    %2441 = vmatprep.subr.mxu0 0.0
    %2442 = vmatpush1.msra.mxu0 0.0
    %2443 = vmatprep.subr.mxu0 0.0
    %2444 = vmatpush1.msra.mxu0 0.0
    %2445 = vmatprep.subr.mxu0 0.0
    %2446 = vmatpush1.msra.mxu0 0.0
    %2447 = vmatprep.subr.mxu0 0.0
    %2448 = vmatpush1.msra.mxu0 0.0
    %2449 = vmatprep.subr.mxu0 0.0
    %2450 = vmatpush1.msra.mxu0 0.0
    %2451 = vmatprep.subr.mxu0 0.0
    %2452 = vmatpush1.msra.mxu0 0.0
    %2453 = vmatprep.subr.mxu0 0.0
    %2454 = vmatpush1.msra.mxu0 0.0
    %2455 = vmatprep.subr.mxu0 0.0
    %2456 = vmatpush1.msra.mxu0 0.0
    %2457 = vmatprep.subr.mxu0 0.0
    %2458 = vmatpush1.msra.mxu0 0.0
    %2459 = vmatprep.subr.mxu0 0.0
    %2460 = vmatpush1.msra.mxu0 0.0
    %2461 = vmatprep.subr.mxu0 0.0
    %2462 = vmatpush1.msra.mxu0 0.0
    %2463 = vmatprep.subr.mxu0 0.0
    %2464 = vmatpush1.msra.mxu0 0.0
    %2465 = vmatprep.subr.mxu0 0.0
    %2466 = vmatpush1.msra.mxu0 0.0
    %2467 = vmatprep.subr.mxu0 0.0
    %2468 = vmatpush1.msra.mxu0 0.0
    %2469 = vmatprep.subr.mxu0 0.0
    %2470 = vmatpush1.msra.mxu0 0.0
    %2471 = vmatprep.subr.mxu0 0.0
    %2472 = vmatpush1.msra.mxu0 0.0
    %2473 = vmatprep.subr.mxu0 0.0
    %2474 = vmatpush1.msra.mxu0 0.0
    %2475 = vmatprep.subr.mxu0 0.0
    %2476 = vmatpush1.msra.mxu0 0.0
    %2477 = vmatprep.subr.mxu0 0.0
    %2478 = vmatpush1.msra.mxu0 0.0
    %2479 = vmatprep.subr.mxu0 0.0
    %2480 = vmatpush1.msra.mxu0 0.0
    %2481 = vmatprep.mubr.f32.mxu0 0.0
    %2482 = vmatmul.mubr.f32.gmra.mrb[0].mxu0 %v2394
    %v2483 = vpop.f32.mrb[0].mxu0
    %v2484 = vadd.f32 %v2355, %v2483
    %v2485 = vpop.f32.mrb[0].mxu0
    %2486 = vmatprep.mubr.f32.mxu0 0.0
    %2487 = vmatmul.mubr.f32.gmra.mrb[0].mxu0 %v2397
    %v2488 = vpop.f32.mrb[0].mxu0
    %v2489 = vadd.f32 %v2360, %v2488
    %v2490 = vpop.f32.mrb[0].mxu0
    %2491 = vmatprep.mubr.f32.mxu0 0.0
    %2492 = vmatmul.mubr.f32.gmra.mrb[0].mxu0 %v2400
    %v2493 = vpop.f32.mrb[0].mxu0
    %v2494 = vadd.f32 %v2365, %v2493
    %v2495 = vpop.f32.mrb[0].mxu0
    %2496 = vmatprep.mubr.f32.mxu0 0.0
    %2497 = vmatmul.mubr.f32.gmra.mrb[0].mxu0 %v2403
    %v2498 = vpop.f32.mrb[0].mxu0
    %v2499 = vadd.f32 %v2370, %v2498
    %v2500 = vpop.f32.mrb[0].mxu0
    %2501 = vmatprep.mubr.f32.mxu0 0.0
    %2502 = vmatmul.mubr.f32.gmra.mrb[0].mxu0 %v2406
    %v2503 = vpop.f32.mrb[0].mxu0
    %v2504 = vadd.f32 %v2375, %v2503
    %v2505 = vpop.f32.mrb[0].mxu0
    %2506 = vmatprep.mubr.f32.mxu0 0.0
    %2507 = vmatmul.mubr.f32.gmra.mrb[0].mxu0 %v2409
    %v2508 = vpop.f32.mrb[0].mxu0
    %v2509 = vadd.f32 %v2380, %v2508
    %v2510 = vpop.f32.mrb[0].mxu0
    %2511 = vmatprep.mubr.f32.mxu0 0.0
    %2512 = vmatmul.mubr.f32.gmra.mrb[0].mxu0 %v2412
    %v2513 = vpop.f32.mrb[0].mxu0
    %v2514 = vadd.f32 %v2385, %v2513
    %v2515 = vpop.f32.mrb[0].mxu0
    %2516 = vmatprep.mubr.f32.mxu0 0.0
    %2517 = vmatmul.mubr.f32.gmra.mrb[0].mxu0 %v2415
    %v2518 = vpop.f32.mrb[0].mxu0
    %v2519 = vadd.f32 %v2390, %v2518
    %v2520 = vpop.f32.mrb[0].mxu0
    %2521 = vdwg.mxu0
    %s2522 = scalar_lea.vmem %s1, 112
    %v2523 = vld [vmem:[%s2522] sm:$0xff]
    %v2525 = vsel %vm259, %v2260, 0
    %v2528 = vsel %vm259, %v2261, 0
    %v2531 = vsel %vm259, %v2262, 0
    %v2534 = vsel %vm259, %v2263, 0
    %v2537 = vsel %vm259, %v2264, 0
    %v2540 = vsel %vm259, %v2265, 0
    %v2543 = vsel %vm259, %v2266, 0
    %v2546 = vsel %vm259, %v2267, 0
    %2548 = vmatprep.subr.mxu0 0.0
    %2549 = vmatpush1.msra.mxu0 %v2523
    %2550 = vmatprep.subr.mxu0 0.0
    %2551 = vmatpush1.msra.mxu0 0.0
    %2552 = vmatprep.subr.mxu0 0.0
    %2553 = vmatpush1.msra.mxu0 0.0
    %2554 = vmatprep.subr.mxu0 0.0
    %2555 = vmatpush1.msra.mxu0 0.0
    %2556 = vmatprep.subr.mxu0 0.0
    %2557 = vmatpush1.msra.mxu0 0.0
    %2558 = vmatprep.subr.mxu0 0.0
    %2559 = vmatpush1.msra.mxu0 0.0
    %2560 = vmatprep.subr.mxu0 0.0
    %2561 = vmatpush1.msra.mxu0 0.0
    %2562 = vmatprep.subr.mxu0 0.0
    %2563 = vmatpush1.msra.mxu0 0.0
    %2564 = vmatprep.subr.mxu0 0.0
    %2565 = vmatpush1.msra.mxu0 0.0
    %2566 = vmatprep.subr.mxu0 0.0
    %2567 = vmatpush1.msra.mxu0 0.0
    %2568 = vmatprep.subr.mxu0 0.0
    %2569 = vmatpush1.msra.mxu0 0.0
    %2570 = vmatprep.subr.mxu0 0.0
    %2571 = vmatpush1.msra.mxu0 0.0
    %2572 = vmatprep.subr.mxu0 0.0
    %2573 = vmatpush1.msra.mxu0 0.0
    %2574 = vmatprep.subr.mxu0 0.0
    %2575 = vmatpush1.msra.mxu0 0.0
    %2576 = vmatprep.subr.mxu0 0.0
    %2577 = vmatpush1.msra.mxu0 0.0
    %2578 = vmatprep.subr.mxu0 0.0
    %2579 = vmatpush1.msra.mxu0 0.0
    %2580 = vmatprep.subr.mxu0 0.0
    %2581 = vmatpush1.msra.mxu0 0.0
    %2582 = vmatprep.subr.mxu0 0.0
    %2583 = vmatpush1.msra.mxu0 0.0
    %2584 = vmatprep.subr.mxu0 0.0
    %2585 = vmatpush1.msra.mxu0 0.0
    %2586 = vmatprep.subr.mxu0 0.0
    %2587 = vmatpush1.msra.mxu0 0.0
    %2588 = vmatprep.subr.mxu0 0.0
    %2589 = vmatpush1.msra.mxu0 0.0
    %2590 = vmatprep.subr.mxu0 0.0
    %2591 = vmatpush1.msra.mxu0 0.0
    %2592 = vmatprep.subr.mxu0 0.0
    %2593 = vmatpush1.msra.mxu0 0.0
    %2594 = vmatprep.subr.mxu0 0.0
    %2595 = vmatpush1.msra.mxu0 0.0
    %2596 = vmatprep.subr.mxu0 0.0
    %2597 = vmatpush1.msra.mxu0 0.0
    %2598 = vmatprep.subr.mxu0 0.0
    %2599 = vmatpush1.msra.mxu0 0.0
    %2600 = vmatprep.subr.mxu0 0.0
    %2601 = vmatpush1.msra.mxu0 0.0
    %2602 = vmatprep.subr.mxu0 0.0
    %2603 = vmatpush1.msra.mxu0 0.0
    %2604 = vmatprep.subr.mxu0 0.0
    %2605 = vmatpush1.msra.mxu0 0.0
    %2606 = vmatprep.subr.mxu0 0.0
    %2607 = vmatpush1.msra.mxu0 0.0
    %2608 = vmatprep.subr.mxu0 0.0
    %2609 = vmatpush1.msra.mxu0 0.0
    %2610 = vmatprep.subr.mxu0 0.0
    %2611 = vmatpush1.msra.mxu0 0.0
    %2612 = vmatprep.mubr.f32.mxu0 0.0
    %2613 = vmatmul.mubr.f32.gmra.mrb[0].mxu0 %v2525
    %v2614 = vpop.f32.mrb[0].mxu0
    %v2615 = vadd.f32 0.0, %v2614
    %v2616 = vpop.f32.mrb[0].mxu0
    %2617 = vmatprep.mubr.f32.mxu0 0.0
    %2618 = vmatmul.mubr.f32.gmra.mrb[0].mxu0 %v2528
    %v2619 = vpop.f32.mrb[0].mxu0
    %v2620 = vadd.f32 0.0, %v2619
    %v2621 = vpop.f32.mrb[0].mxu0
    %2622 = vmatprep.mubr.f32.mxu0 0.0
    %2623 = vmatmul.mubr.f32.gmra.mrb[0].mxu0 %v2531
    %v2624 = vpop.f32.mrb[0].mxu0
    %v2625 = vadd.f32 0.0, %v2624
    %v2626 = vpop.f32.mrb[0].mxu0
    %2627 = vmatprep.mubr.f32.mxu0 0.0
    %2628 = vmatmul.mubr.f32.gmra.mrb[0].mxu0 %v2534
    %v2629 = vpop.f32.mrb[0].mxu0
    %v2630 = vadd.f32 0.0, %v2629
    %v2631 = vpop.f32.mrb[0].mxu0
    %2632 = vmatprep.mubr.f32.mxu0 0.0
    %2633 = vmatmul.mubr.f32.gmra.mrb[0].mxu0 %v2537
    %v2634 = vpop.f32.mrb[0].mxu0
    %v2635 = vadd.f32 0.0, %v2634
    %v2636 = vpop.f32.mrb[0].mxu0
    %2637 = vmatprep.mubr.f32.mxu0 0.0
    %2638 = vmatmul.mubr.f32.gmra.mrb[0].mxu0 %v2540
    %v2639 = vpop.f32.mrb[0].mxu0
    %v2640 = vadd.f32 0.0, %v2639
    %v2641 = vpop.f32.mrb[0].mxu0
    %2642 = vmatprep.mubr.f32.mxu0 0.0
    %2643 = vmatmul.mubr.f32.gmra.mrb[0].mxu0 %v2543
    %v2644 = vpop.f32.mrb[0].mxu0
    %v2645 = vadd.f32 0.0, %v2644
    %v2646 = vpop.f32.mrb[0].mxu0
    %2647 = vmatprep.mubr.f32.mxu0 0.0
    %2648 = vmatmul.mubr.f32.gmra.mrb[0].mxu0 %v2546
    %v2649 = vpop.f32.mrb[0].mxu0
    %v2650 = vadd.f32 0.0, %v2649
    %v2651 = vpop.f32.mrb[0].mxu0
    %2652 = vdwg.mxu0
    %v2653 = vadd.f32 %v2484, %v2615
    %v2654 = vadd.f32 %v2489, %v2620
    %v2655 = vadd.f32 %v2494, %v2625
    %v2656 = vadd.f32 %v2499, %v2630
    %v2657 = vadd.f32 %v2504, %v2635
    %v2658 = vadd.f32 %v2509, %v2640
    %v2659 = vadd.f32 %v2514, %v2645
    %v2660 = vadd.f32 %v2519, %v2650
    %v2661 = vlaneseq
    %v2662 = vshrl.u32 %v2661, 7
    %v2663 = vsub.s32 4, %v2662
    %v2664 = vrot.slane %v26, %v2663
    %v2665 = vadd.f32 %v2653, %v2664
    %v2666 = vadd.f32 %v2654, %v2664
    %v2667 = vadd.f32 %v2655, %v2664
    %v2668 = vadd.f32 %v2656, %v2664
    %v2669 = vadd.f32 %v2657, %v2664
    %v2670 = vadd.f32 %v2658, %v2664
    %v2671 = vadd.f32 %v2659, %v2664
    %v2672 = vadd.f32 %v2660, %v2664
    %vm2673 = vcmp.gt.f32.partialorder %v2665, 0.0
    %vm2674 = vcmp.gt.f32.partialorder %v2666, 0.0
    %vm2675 = vcmp.gt.f32.partialorder %v2667, 0.0
    %vm2676 = vcmp.gt.f32.partialorder %v2668, 0.0
    %vm2677 = vcmp.gt.f32.partialorder %v2669, 0.0
    %vm2678 = vcmp.gt.f32.partialorder %v2670, 0.0
    %vm2679 = vcmp.gt.f32.partialorder %v2671, 0.0
    %vm2680 = vcmp.gt.f32.partialorder %v2672, 0.0
    %v2681 = vmul.f32 %v2665, 0.01
    %v2682 = vmul.f32 %v2666, 0.01
    %v2683 = vmul.f32 %v2667, 0.01
    %v2684 = vmul.f32 %v2668, 0.01
    %v2685 = vmul.f32 %v2669, 0.01
    %v2686 = vmul.f32 %v2670, 0.01
    %v2687 = vmul.f32 %v2671, 0.01
    %v2688 = vmul.f32 %v2672, 0.01
    %v2689 = vsel %vm2673, %v2665, %v2681
    %v2690 = vsel %vm2674, %v2666, %v2682
    %v2691 = vsel %vm2675, %v2667, %v2683
    %v2692 = vsel %vm2676, %v2668, %v2684
    %v2693 = vsel %vm2677, %v2669, %v2685
    %v2694 = vsel %vm2678, %v2670, %v2686
    %v2695 = vsel %vm2679, %v2671, %v2687
    %v2696 = vsel %vm2680, %v2672, %v2688
    %v2697 = vsel %vm259, %v2689, 0.0
    %2698 = vadd.xlane.f32.xlu0 %v2697
    %v2699 = vpop.xlane.xlu0 %2698
    %v2700 = vsel %vm259, %v2690, 0.0
    %2701 = vadd.xlane.f32.xlu0 %v2700
    %v2702 = vpop.xlane.xlu0 %2701
    %v2703 = vsel %vm259, %v2691, 0.0
    %2704 = vadd.xlane.f32.xlu0 %v2703
    %v2705 = vpop.xlane.xlu0 %2704
    %v2706 = vsel %vm259, %v2692, 0.0
    %2707 = vadd.xlane.f32.xlu0 %v2706
    %v2708 = vpop.xlane.xlu0 %2707
    %v2709 = vsel %vm259, %v2693, 0.0
    %2710 = vadd.xlane.f32.xlu0 %v2709
    %v2711 = vpop.xlane.xlu0 %2710
    %v2712 = vsel %vm259, %v2694, 0.0
    %2713 = vadd.xlane.f32.xlu0 %v2712
    %v2714 = vpop.xlane.xlu0 %2713
    %v2715 = vsel %vm259, %v2695, 0.0
    %2716 = vadd.xlane.f32.xlu0 %v2715
    %v2717 = vpop.xlane.xlu0 %2716
    %v2718 = vsel %vm259, %v2696, 0.0
    %2719 = vadd.xlane.f32.xlu0 %v2718
    %v2720 = vpop.xlane.xlu0 %2719
    %v2721 = vrcp.pop 8.0
    %v2722 = vmul.f32 %v2699, %v2721
    %v2723 = vmul.f32 %v2702, %v2721
    %v2724 = vmul.f32 %v2705, %v2721
    %v2725 = vmul.f32 %v2708, %v2721
    %v2726 = vmul.f32 %v2711, %v2721
    %v2727 = vmul.f32 %v2714, %v2721
    %v2728 = vmul.f32 %v2717, %v2721
    %v2729 = vmul.f32 %v2720, %v2721
    %v2730 = vsub.f32 %v2689, %v2722
    %v2731 = vsub.f32 %v2690, %v2723
    %v2732 = vsub.f32 %v2691, %v2724
    %v2733 = vsub.f32 %v2692, %v2725
    %v2734 = vsub.f32 %v2693, %v2726
    %v2735 = vsub.f32 %v2694, %v2727
    %v2736 = vsub.f32 %v2695, %v2728
    %v2737 = vsub.f32 %v2696, %v2729
    %v2738 = vmul.f32 %v2730, %v2730
    %v2739 = vmul.f32 %v2731, %v2731
    %v2740 = vmul.f32 %v2732, %v2732
    %v2741 = vmul.f32 %v2733, %v2733
    %v2742 = vmul.f32 %v2734, %v2734
    %v2743 = vmul.f32 %v2735, %v2735
    %v2744 = vmul.f32 %v2736, %v2736
    %v2745 = vmul.f32 %v2737, %v2737
    %v2746 = vsel %vm259, %v2738, 0.0
    %2747 = vadd.xlane.f32.xlu0 %v2746
    %v2748 = vpop.xlane.xlu0 %2747
    %v2749 = vsel %vm259, %v2739, 0.0
    %2750 = vadd.xlane.f32.xlu0 %v2749
    %v2751 = vpop.xlane.xlu0 %2750
    %v2752 = vsel %vm259, %v2740, 0.0
    %2753 = vadd.xlane.f32.xlu0 %v2752
    %v2754 = vpop.xlane.xlu0 %2753
    %v2755 = vsel %vm259, %v2741, 0.0
    %2756 = vadd.xlane.f32.xlu0 %v2755
    %v2757 = vpop.xlane.xlu0 %2756
    %v2758 = vsel %vm259, %v2742, 0.0
    %2759 = vadd.xlane.f32.xlu0 %v2758
    %v2760 = vpop.xlane.xlu0 %2759
    %v2761 = vsel %vm259, %v2743, 0.0
    %2762 = vadd.xlane.f32.xlu0 %v2761
    %v2763 = vpop.xlane.xlu0 %2762
    %v2764 = vsel %vm259, %v2744, 0.0
    %2765 = vadd.xlane.f32.xlu0 %v2764
    %v2766 = vpop.xlane.xlu0 %2765
    %v2767 = vsel %vm259, %v2745, 0.0
    %2768 = vadd.xlane.f32.xlu0 %v2767
    %v2769 = vpop.xlane.xlu0 %2768
    %v2770 = vmul.f32 %v2748, %v2721
    %v2771 = vmul.f32 %v2751, %v2721
    %v2772 = vmul.f32 %v2754, %v2721
    %v2773 = vmul.f32 %v2757, %v2721
    %v2774 = vmul.f32 %v2760, %v2721
    %v2775 = vmul.f32 %v2763, %v2721
    %v2776 = vmul.f32 %v2766, %v2721
    %v2777 = vmul.f32 %v2769, %v2721
    %v2778 = vadd.f32 %v2770, 1e-05
    %v2779 = vadd.f32 %v2771, 1e-05
    %v2780 = vadd.f32 %v2772, 1e-05
    %v2781 = vadd.f32 %v2773, 1e-05
    %v2782 = vadd.f32 %v2774, 1e-05
    %v2783 = vadd.f32 %v2775, 1e-05
    %v2784 = vadd.f32 %v2776, 1e-05
    %v2785 = vadd.f32 %v2777, 1e-05
    %v2786 = vrsqrt.pop %v2778
    %v2787 = vrsqrt.pop %v2779
    %v2788 = vrsqrt.pop %v2780
    %v2789 = vrsqrt.pop %v2781
    %v2790 = vrsqrt.pop %v2782
    %v2791 = vrsqrt.pop %v2783
    %v2792 = vrsqrt.pop %v2784
    %v2793 = vrsqrt.pop %v2785
    %v2794 = vmul.f32 %v2730, %v2786
    %v2795 = vmul.f32 %v2731, %v2787
    %v2796 = vmul.f32 %v2732, %v2788
    %v2797 = vmul.f32 %v2733, %v2789
    %v2798 = vmul.f32 %v2734, %v2790
    %v2799 = vmul.f32 %v2735, %v2791
    %v2800 = vmul.f32 %v2736, %v2792
    %v2801 = vmul.f32 %v2737, %v2793
    %v2802 = vlaneseq
    %v2803 = vshrl.u32 %v2802, 7
    %v2804 = vsub.s32 5, %v2803
    %v2805 = vrot.slane %v26, %v2804
    %v2806 = vmul.f32 %v2794, %v2805
    %v2807 = vmul.f32 %v2795, %v2805
    %v2808 = vmul.f32 %v2796, %v2805
    %v2809 = vmul.f32 %v2797, %v2805
    %v2810 = vmul.f32 %v2798, %v2805
    %v2811 = vmul.f32 %v2799, %v2805
    %v2812 = vmul.f32 %v2800, %v2805
    %v2813 = vmul.f32 %v2801, %v2805
    %v2814 = vlaneseq
    %v2815 = vshrl.u32 %v2814, 7
    %v2816 = vsub.s32 6, %v2815
    %v2817 = vrot.slane %v26, %v2816
    %v2818 = vadd.f32 %v2806, %v2817
    %v2819 = vadd.f32 %v2807, %v2817
    %v2820 = vadd.f32 %v2808, %v2817
    %v2821 = vadd.f32 %v2809, %v2817
    %v2822 = vadd.f32 %v2810, %v2817
    %v2823 = vadd.f32 %v2811, %v2817
    %v2824 = vadd.f32 %v2812, %v2817
    %v2825 = vadd.f32 %v2813, %v2817
    %v2826 = vld [vmem:[%s2] sm:$0xff]
    %v2827 = vlaneseq
    %v2828 = vshrl.u32 %v2827, 7
    %v2829 = vsub.s32 7, %v2828
    %v2830 = vrot.slane %v26, %v2829
    %v2832 = vsel %vm259, %v2818, 0
    %v2835 = vsel %vm259, %v2819, 0
    %v2838 = vsel %vm259, %v2820, 0
    %v2841 = vsel %vm259, %v2821, 0
    %v2844 = vsel %vm259, %v2822, 0
    %v2847 = vsel %vm259, %v2823, 0
    %v2850 = vsel %vm259, %v2824, 0
    %v2853 = vsel %vm259, %v2825, 0
    %2855 = vmatprep.subr.mxu0 0.0
    %2856 = vmatpush1.msra.mxu0 %v2826
    %2857 = vmatprep.subr.mxu0 0.0
    %2858 = vmatpush1.msra.mxu0 0.0
    %2859 = vmatprep.subr.mxu0 0.0
    %2860 = vmatpush1.msra.mxu0 0.0
    %2861 = vmatprep.subr.mxu0 0.0
    %2862 = vmatpush1.msra.mxu0 0.0
    %2863 = vmatprep.subr.mxu0 0.0
    %2864 = vmatpush1.msra.mxu0 0.0
    %2865 = vmatprep.subr.mxu0 0.0
    %2866 = vmatpush1.msra.mxu0 0.0
    %2867 = vmatprep.subr.mxu0 0.0
    %2868 = vmatpush1.msra.mxu0 0.0
    %2869 = vmatprep.subr.mxu0 0.0
    %2870 = vmatpush1.msra.mxu0 0.0
    %2871 = vmatprep.subr.mxu0 0.0
    %2872 = vmatpush1.msra.mxu0 0.0
    %2873 = vmatprep.subr.mxu0 0.0
    %2874 = vmatpush1.msra.mxu0 0.0
    %2875 = vmatprep.subr.mxu0 0.0
    %2876 = vmatpush1.msra.mxu0 0.0
    %2877 = vmatprep.subr.mxu0 0.0
    %2878 = vmatpush1.msra.mxu0 0.0
    %2879 = vmatprep.subr.mxu0 0.0
    %2880 = vmatpush1.msra.mxu0 0.0
    %2881 = vmatprep.subr.mxu0 0.0
    %2882 = vmatpush1.msra.mxu0 0.0
    %2883 = vmatprep.subr.mxu0 0.0
    %2884 = vmatpush1.msra.mxu0 0.0
    %2885 = vmatprep.subr.mxu0 0.0
    %2886 = vmatpush1.msra.mxu0 0.0
    %2887 = vmatprep.subr.mxu0 0.0
    %2888 = vmatpush1.msra.mxu0 0.0
    %2889 = vmatprep.subr.mxu0 0.0
    %2890 = vmatpush1.msra.mxu0 0.0
    %2891 = vmatprep.subr.mxu0 0.0
    %2892 = vmatpush1.msra.mxu0 0.0
    %2893 = vmatprep.subr.mxu0 0.0
    %2894 = vmatpush1.msra.mxu0 0.0
    %2895 = vmatprep.subr.mxu0 0.0
    %2896 = vmatpush1.msra.mxu0 0.0
    %2897 = vmatprep.subr.mxu0 0.0
    %2898 = vmatpush1.msra.mxu0 0.0
    %2899 = vmatprep.subr.mxu0 0.0
    %2900 = vmatpush1.msra.mxu0 0.0
    %2901 = vmatprep.subr.mxu0 0.0
    %2902 = vmatpush1.msra.mxu0 0.0
    %2903 = vmatprep.subr.mxu0 0.0
    %2904 = vmatpush1.msra.mxu0 0.0
    %2905 = vmatprep.subr.mxu0 0.0
    %2906 = vmatpush1.msra.mxu0 0.0
    %2907 = vmatprep.subr.mxu0 0.0
    %2908 = vmatpush1.msra.mxu0 0.0
    %2909 = vmatprep.subr.mxu0 0.0
    %2910 = vmatpush1.msra.mxu0 0.0
    %2911 = vmatprep.subr.mxu0 0.0
    %2912 = vmatpush1.msra.mxu0 0.0
    %2913 = vmatprep.subr.mxu0 0.0
    %2914 = vmatpush1.msra.mxu0 0.0
    %2915 = vmatprep.subr.mxu0 0.0
    %2916 = vmatpush1.msra.mxu0 0.0
    %2917 = vmatprep.subr.mxu0 0.0
    %2918 = vmatpush1.msra.mxu0 0.0
    %2919 = vmatprep.mubr.f32.mxu0 0.0
    %2920 = vmatmul.mubr.f32.gmra.mrb[0].mxu0 %v2832
    %v2921 = vpop.f32.mrb[0].mxu0
    %v2922 = vadd.f32 %v2830, %v2921
    %v2923 = vpop.f32.mrb[0].mxu0
    %2924 = vmatprep.mubr.f32.mxu0 0.0
    %2925 = vmatmul.mubr.f32.gmra.mrb[0].mxu0 %v2835
    %v2926 = vpop.f32.mrb[0].mxu0
    %v2927 = vadd.f32 %v2830, %v2926
    %v2928 = vpop.f32.mrb[0].mxu0
    %2929 = vmatprep.mubr.f32.mxu0 0.0
    %2930 = vmatmul.mubr.f32.gmra.mrb[0].mxu0 %v2838
    %v2931 = vpop.f32.mrb[0].mxu0
    %v2932 = vadd.f32 %v2830, %v2931
    %v2933 = vpop.f32.mrb[0].mxu0
    %2934 = vmatprep.mubr.f32.mxu0 0.0
    %2935 = vmatmul.mubr.f32.gmra.mrb[0].mxu0 %v2841
    %v2936 = vpop.f32.mrb[0].mxu0
    %v2937 = vadd.f32 %v2830, %v2936
    %v2938 = vpop.f32.mrb[0].mxu0
    %2939 = vmatprep.mubr.f32.mxu0 0.0
    %2940 = vmatmul.mubr.f32.gmra.mrb[0].mxu0 %v2844
    %v2941 = vpop.f32.mrb[0].mxu0
    %v2942 = vadd.f32 %v2830, %v2941
    %v2943 = vpop.f32.mrb[0].mxu0
    %2944 = vmatprep.mubr.f32.mxu0 0.0
    %2945 = vmatmul.mubr.f32.gmra.mrb[0].mxu0 %v2847
    %v2946 = vpop.f32.mrb[0].mxu0
    %v2947 = vadd.f32 %v2830, %v2946
    %v2948 = vpop.f32.mrb[0].mxu0
    %2949 = vmatprep.mubr.f32.mxu0 0.0
    %2950 = vmatmul.mubr.f32.gmra.mrb[0].mxu0 %v2850
    %v2951 = vpop.f32.mrb[0].mxu0
    %v2952 = vadd.f32 %v2830, %v2951
    %v2953 = vpop.f32.mrb[0].mxu0
    %2954 = vmatprep.mubr.f32.mxu0 0.0
    %2955 = vmatmul.mubr.f32.gmra.mrb[0].mxu0 %v2853
    %v2956 = vpop.f32.mrb[0].mxu0
    %v2957 = vadd.f32 %v2830, %v2956
    %v2958 = vpop.f32.mrb[0].mxu0
    %2959 = vdwg.mxu0
    %2960 = vst [vmem:[#allocation2] sm:$0xff] %v2922
    %2961 = vst [vmem:[#allocation2 + $0x8] sm:$0xff] %v2927
    %2962 = vst [vmem:[#allocation2 + $0x10] sm:$0xff] %v2932
    %2963 = vst [vmem:[#allocation2 + $0x18] sm:$0xff] %v2937
    %2964 = vst [vmem:[#allocation2 + $0x20] sm:$0xff] %v2942
    %2965 = vst [vmem:[#allocation2 + $0x28] sm:$0xff] %v2947
    %2966 = vst [vmem:[#allocation2 + $0x30] sm:$0xff] %v2952
    %2967 = vst [vmem:[#allocation2 + $0x38] sm:$0xff] %v2957
    // Predicated region
    $region18: #{tpu_custom_call.1} parent=1 // pred_check
      _
    $region19: #{tpu_custom_call.1} parent=1 // pred_check_branch
      %2969 = sbr.rel (0) target = $region21
    $region20: #{tpu_custom_call.1} parent=1 // pred_region
      %s2971 = ssub.s32 1024, 1024
      %2972 = vsyncadd [#allocation3], %s2971
      %s2973 = sshll.u32 [#allocation2], 4
      %s2974 = int_to_ptr.vmem [resolvable:$true] %s2973
      %2979 = dma.vmem_to_hbm [thread:$0]  %s2974, 1024, %s4, [#allocation3], 128, 128, 8
    $region21: #{tpu_custom_call.1} parent=1 // pred_fallthru
      _
    // Predicated region
    $region22: #{tpu_custom_call.1} parent=1 // pred_check
      _
    $region23: #{tpu_custom_call.1} parent=1 // pred_check_branch
      %2981 = sbr.rel (0) target = $region25
    $region24: #{tpu_custom_call.1} parent=1 // pred_region
      %2982 = dma.done [#allocation3], 1024
    $region25: #{tpu_custom_call.1} parent=1 // pred_fallthru
      _
    %2983 = vsyncpa [#allocation3], 1

</llo_original>
